<compile_context>
chip_gen: v7x
topology: tpu7x:2x2x1
jax: 0.10.0
libtpu: 0.0.40
codegen_flags: <defaults>
</compile_context>

<pallas_src>
import math
import jax
import jax.numpy as jnp
from jax.experimental import pallas as pl
from jax.experimental.pallas import tpu as pltpu


# ------------------------------ fused kernel ------------------------------- #

def _layer_norm(x, gamma, beta, eps=1e-5):
    # x: (N, D) f32; gamma/beta: (1, D) f32
    mean = jnp.mean(x, axis=-1, keepdims=True)
    xc = x - mean
    var = jnp.mean(xc * xc, axis=-1, keepdims=True)
    return xc * jax.lax.rsqrt(var + eps) * gamma + beta


def _make_fused_kernel(e_layers, d_model):
    """Embed + e_layers encoder layers + final LN + (transposed) decoder + de-norm."""
    scale = 1.0 / math.sqrt(d_model)
    nt = (((1,), (1,)), ((), ()))  # contract last dims of both operands (A @ B^T)

    def kernel(x_ref, mask_ref, std_ref, mean_ref,
               we_ref, w1_ref, w2_ref, wdt_ref, bdt_ref,
               vd_ref, vf_ref, o_ref):
        x = x_ref[...]                 # (R, S) f32, already normalized
        mask = mask_ref[...]           # (R, R) f32 block-diagonal cluster mask

        # ---- embedding: Linear(S -> D) over every (b, v, l) row ----
        be = vd_ref[0:1, :]
        h = jnp.dot(x.astype(jnp.bfloat16), we_ref[...],
                    preferred_element_type=jnp.float32) + be      # (R, D) f32

        # ---- encoder stack (statically unrolled), 2-D layout throughout ----
        for l in range(e_layers):
            base = 3 + 5 * l
            g1 = vd_ref[base + 0:base + 1, :]
            c1 = vd_ref[base + 1:base + 2, :]
            g2 = vd_ref[base + 2:base + 3, :]
            c2 = vd_ref[base + 3:base + 4, :]
            b2 = vd_ref[base + 4:base + 5, :]
            b1 = vf_ref[l:l + 1, :]

            h_bf = h.astype(jnp.bfloat16)
            # block-diagonal clustered attention: one QK^T, one PV matmul
            s = jax.lax.dot_general(h_bf, h_bf, nt,
                                    preferred_element_type=jnp.float32)
            s = s * scale + mask
            s = s - jnp.max(s, axis=-1, keepdims=True)
            p = jnp.exp(s)
            p = p * pl.reciprocal(jnp.sum(p, axis=-1, keepdims=True), approx=True)
            attn = jnp.dot(p.astype(jnp.bfloat16), h_bf,
                           preferred_element_type=jnp.float32)     # (R, D)

            x2 = _layer_norm(h + attn, g1, c1)
            f = jnp.dot(x2.astype(jnp.bfloat16), w1_ref[l],
                        preferred_element_type=jnp.float32) + b1
            f = jnp.maximum(f, 0.0)
            y = jnp.dot(f.astype(jnp.bfloat16), w2_ref[l],
                        preferred_element_type=jnp.float32) + b2
            h = _layer_norm(x2 + y, g2, c2)

        # ---- final encoder norm ----
        out2 = _layer_norm(h, vd_ref[1:2, :], vd_ref[2:3, :])       # (R, D)

        # ---- decoder computed transposed -> lane-dense (P, R) store ----
        dec_t = jax.lax.dot_general(wdt_ref[...], out2.astype(jnp.bfloat16), nt,
                                    preferred_element_type=jnp.float32)
        dec_t = dec_t + bdt_ref[...]                                # (P, R)

        # ---- de-normalization: per-(b, l) std/mean broadcast over (v, p) ----
        o_ref[...] = dec_t * std_ref[...] + mean_ref[...]

    return kernel


def pallas_fused_model(x_rows, mask, std_row, mean_row, params):
    """x_rows: (B*V*L, S) normalized rows (ordered b, v, l).
    mask: (nblk, Rb, Rb); std_row/mean_row: (nblk, 1, Rb).
    Returns (nblk, P, Rb) de-normalized decoder output (transposed layout)."""
    _, S = x_rows.shape
    nblk, _, Rb = mask.shape
    D = params['we'].shape[1]
    E, _, d_ff = params['w1'].shape
    P = params['wdt'].shape[0]
    n_vd = params['vd'].shape[0]

    kernel = _make_fused_kernel(E, D)

    def fixed2(shape):
        return pl.BlockSpec(shape, lambda b: (0, 0))

    def fixed3(shape):
        return pl.BlockSpec(shape, lambda b: (0, 0, 0))

    in_specs = [
        pl.BlockSpec((Rb, S), lambda b: (b, 0)),             # x rows (per block)
        pl.BlockSpec((None, Rb, Rb), lambda b: (b, 0, 0)),   # cluster mask
        pl.BlockSpec((None, 1, Rb), lambda b: (b, 0, 0)),    # std  per row
        pl.BlockSpec((None, 1, Rb), lambda b: (b, 0, 0)),    # mean per row
        fixed2((S, D)),                                      # embed weight (bf16)
        fixed3((E, D, d_ff)),                                # conv1 weights (bf16)
        fixed3((E, d_ff, D)),                                # conv2 weights (bf16)
        fixed2((P, D)),                                      # decoder weight^T (bf16)
        fixed2((P, 1)),                                      # decoder bias (column)
        fixed2((n_vd, D)),                                   # packed D-wide vectors
        fixed2((E, d_ff)),                                   # packed d_ff-wide vectors
    ]
    out_spec = pl.BlockSpec((None, P, Rb), lambda b: (b, 0, 0))

    return pl.pallas_call(
        kernel,
        out_shape=jax.ShapeDtypeStruct((nblk, P, Rb), jnp.float32),
        grid=(nblk,),
        in_specs=in_specs,
        out_specs=out_spec,
        compiler_params=pltpu.CompilerParams(dimension_semantics=("parallel",)),
    )(x_rows, mask, std_row, mean_row,
      params['we'], params['w1'], params['w2'], params['wdt'], params['bdt'],
      params['vd'], params['vf'])


# ------------------------------- glue (JAX) -------------------------------- #

def cluster_determine(feat, k=3):
    # TODO(synk): original ClusterDetermine algorithm unspecified; single k-means
    # assignment step with the first k rows as centroids (deterministic).
    cent = feat[:, :k, :]                                        # (B, k, F)
    d2 = jnp.sum((feat[:, :, None, :] - cent[:, None, :, :]) ** 2, axis=-1)
    return jnp.argmin(d2, axis=-1).astype(jnp.int32)             # (B, L)


def init_linear(key, in_dim, out_dim):
    # weight pre-transposed (Din, Dout); bias (1, Dout)  (PyTorch-default init)
    k1, k2 = jax.random.split(key)
    lim = 1.0 / math.sqrt(in_dim)
    w = jax.random.uniform(k1, (in_dim, out_dim), jnp.float32, -lim, lim)
    b = jax.random.uniform(k2, (1, out_dim), jnp.float32, -lim, lim)
    return w, b


def init_params(settings, seed=42):
    S, P, D, E = (settings['seq_len'], settings['pred_len'],
                  settings['d_model'], settings['e_layers'])
    d_ff = 4 * D
    key = jax.random.PRNGKey(seed)
    keys = jax.random.split(key, 2 + 2 * E)
    we, be = init_linear(keys[0], S, D)
    wd, bd = init_linear(keys[1], D, P)
    w1s, b1s, w2s, b2s = [], [], [], []
    for l in range(E):
        w1, b1 = init_linear(keys[2 + 2 * l], D, d_ff)
        w2, b2 = init_linear(keys[3 + 2 * l], d_ff, D)
        w1s.append(w1); b1s.append(b1); w2s.append(w2); b2s.append(b2)

    ones_d = jnp.ones((1, D), jnp.float32)
    zeros_d = jnp.zeros((1, D), jnp.float32)
    # packed D-wide rows: [be, gn, cn] + per layer [g1, c1, g2, c2, b2]
    rows = [be, ones_d, zeros_d]
    for l in range(E):
        rows += [ones_d, zeros_d, ones_d, zeros_d, b2s[l]]
    vd = jnp.concatenate(rows, axis=0).astype(jnp.float32)       # (3+5E, D)
    vf = jnp.concatenate(b1s, axis=0).astype(jnp.float32)        # (E, d_ff)

    return {
        'we': we.astype(jnp.bfloat16),                           # (S, D)
        'w1': jnp.stack(w1s).astype(jnp.bfloat16),               # (E, D, d_ff)
        'w2': jnp.stack(w2s).astype(jnp.bfloat16),               # (E, d_ff, D)
        'wdt': wd.T.astype(jnp.bfloat16),                        # (P, D)
        'bdt': bd.T.astype(jnp.float32),                         # (P, 1)
        'vd': vd, 'vf': vf,
    }


def _multi_tensorcore_chip():
    # v7x has 2 TensorCores per chip: keep grid=(B,) parallel there so each core
    # takes one batch; fold the batch into a single grid step everywhere else.
    try:
        kind = jax.devices()[0].device_kind.lower()
    except Exception:
        return False
    return ('v7' in kind) or ('7x' in kind)


def model_forward(params, input_arr, settings):
    norm_flag = settings['norm_flag']
    assert norm_flag in ('batch', 'sample', 'None')
    B, V, S, H, W = input_arr.shape
    L = H * W
    P = settings['pred_len']

    # (B, V, S, H, W) -> (B, V, L, S): single transpose on the main path
    x = input_arr.reshape(B, V, S, L).transpose(0, 1, 3, 2).astype(jnp.float32)

    # cluster labels from raw (pre-norm) per-location features (B, L, V*S)
    feat = x.transpose(0, 2, 1, 3).reshape(B, L, V * S)
    labels = cluster_determine(feat)                             # (B, L)

    # normalization stats (tiny reductions, plain XLA); de-norm happens in-kernel
    if norm_flag == 'sample':
        mean = jnp.mean(x, axis=(1, 3), keepdims=True)           # per (b, l)
        xc = x - mean
        var = jnp.mean(xc * xc, axis=(1, 3), keepdims=True)
        std = jnp.sqrt(var + 1e-5)
        x = xc / std
        std_bl = std.reshape(B, L)
        mean_bl = mean.reshape(B, L)
    elif norm_flag == 'batch':
        mean = jnp.mean(x, axis=(0, 1, 3), keepdims=True)        # per location
        xc = x - mean
        var = jnp.mean(xc * xc, axis=(0, 1, 3), keepdims=True)
        std = jnp.sqrt(var + 1e-5)
        x = xc / std
        std_bl = jnp.broadcast_to(std.reshape(1, L), (B, L))
        mean_bl = jnp.broadcast_to(mean.reshape(1, L), (B, L))
    else:  # 'None'
        std_bl = jnp.ones((B, L), jnp.float32)
        mean_bl = jnp.zeros((B, L), jnp.float32)

    fold = (B < 2) or (not _multi_tensorcore_chip())

    x_rows = x.reshape(B * V * L, S)                             # rows ordered (b, v, l)
    same = labels[:, :, None] == labels[:, None, :]              # (B, L, L)
    eye_v = jnp.eye(V, dtype=bool)
    std_rows = jnp.broadcast_to(std_bl[:, None, :], (B, V, L))
    mean_rows = jnp.broadcast_to(mean_bl[:, None, :], (B, V, L))

    if fold:
        # one grid step, block-diagonal over (batch, variable)
        Rb = B * V * L
        eye_b = jnp.eye(B, dtype=bool)
        m = (eye_b[:, None, None, :, None, None]
             & eye_v[None, :, None, None, :, None]
             & same[:, None, :, None, None, :])
        mask = jnp.where(m, 0.0, -1e9).astype(jnp.float32).reshape(1, Rb, Rb)
        std_row = std_rows.reshape(1, 1, Rb)
        mean_row = mean_rows.reshape(1, 1, Rb)
    else:
        # grid=(B,) parallel (v7x: one batch per TensorCore), block-diag over V
        Rb = V * L
        m = eye_v[None, :, None, :, None] & same[:, None, :, None, :]
        mask = jnp.where(m, 0.0, -1e9).astype(jnp.float32).reshape(B, Rb, Rb)
        std_row = std_rows.reshape(B, 1, Rb)
        mean_row = mean_rows.reshape(B, 1, Rb)

    dec_t = pallas_fused_model(x_rows, mask, std_row, mean_row, params)

    # (nblk, P, Rb) with columns ordered (b, v, l) -> (B, V, P, L)
    if fold:
        out = dec_t.reshape(P, B, V, L).transpose(1, 2, 0, 3)
    else:
        out = dec_t.reshape(B, P, V, L).transpose(0, 2, 1, 3)
    return out.reshape(B, V, P, H, W)


# --------------------------------- driver ---------------------------------- #

if __name__ == "__main__":
    settings = dict(seq_len=8, pred_len=8, num_vars=4, d_model=32,
                    e_layers=2, norm_flag='sample')
    B, V, S, H, W = 2, settings['num_vars'], settings['seq_len'], 4, 4

    key = jax.random.PRNGKey(0)
    input_arr = jax.random.normal(key, (B, V, S, H, W), dtype=jnp.float32)

    params = init_params(settings, seed=42)
    fwd = jax.jit(lambda p, xin: model_forward(p, xin, settings))
    out = fwd(params, input_arr)
    out = jax.block_until_ready(out)

    assert out.shape == (B, V, settings['pred_len'], H, W), out.shape
    assert bool(jnp.all(jnp.isfinite(out)))
    print("KERNEL_OK")
</pallas_src>

<mosaic_0001>
module attributes {stable_mosaic.version = 11 : i64} {
  func.func @kernel(%arg0: i32, %arg1: memref<128x8xf32, #tpu.memory_space<vmem>>, %arg2: memref<1x128x128xf32, #tpu.memory_space<vmem>>, %arg3: memref<1x1x128xf32, #tpu.memory_space<vmem>>, %arg4: memref<1x1x128xf32, #tpu.memory_space<vmem>>, %arg5: memref<8x32xbf16, #tpu.memory_space<vmem>>, %arg6: memref<2x32x128xbf16, #tpu.memory_space<vmem>>, %arg7: memref<2x128x32xbf16, #tpu.memory_space<vmem>>, %arg8: memref<8x32xbf16, #tpu.memory_space<vmem>>, %arg9: memref<8x1xf32, #tpu.memory_space<vmem>>, %arg10: memref<13x32xf32, #tpu.memory_space<vmem>>, %arg11: memref<2x128xf32, #tpu.memory_space<vmem>>, %arg12: memref<1x8x128xf32, #tpu.memory_space<vmem>>) attributes {dimension_semantics = [#tpu.dimension_semantics<parallel>], iteration_bounds = array<i64: 1>, scalar_prefetch = 0 : i64, scratch_operands = 0 : i64, tpu.core_type = #tpu.core_type<tc>, window_params = [{transform_indices = @transform_0, window_bounds = array<i64: 128, 8>}, {transform_indices = @transform_1, window_bounds = array<i64: 1, 128, 128>}, {transform_indices = @transform_2, window_bounds = array<i64: 1, 1, 128>}, {transform_indices = @transform_3, window_bounds = array<i64: 1, 1, 128>}, {pipeline_mode = #tpu.pipeline_mode<synchronous>, transform_indices = @transform_4, window_bounds = array<i64: 8, 32>}, {pipeline_mode = #tpu.pipeline_mode<synchronous>, transform_indices = @transform_5, window_bounds = array<i64: 2, 32, 128>}, {pipeline_mode = #tpu.pipeline_mode<synchronous>, transform_indices = @transform_6, window_bounds = array<i64: 2, 128, 32>}, {pipeline_mode = #tpu.pipeline_mode<synchronous>, transform_indices = @transform_7, window_bounds = array<i64: 8, 32>}, {pipeline_mode = #tpu.pipeline_mode<synchronous>, transform_indices = @transform_8, window_bounds = array<i64: 8, 1>}, {pipeline_mode = #tpu.pipeline_mode<synchronous>, transform_indices = @transform_9, window_bounds = array<i64: 13, 32>}, {pipeline_mode = #tpu.pipeline_mode<synchronous>, transform_indices = @transform_10, window_bounds = array<i64: 2, 128>}, {transform_indices = @transform_11, window_bounds = array<i64: 1, 8, 128>}]} {
    %c0 = arith.constant 0 : index
    %c0_0 = arith.constant 0 : index
    %0 = vector.load %arg1[%c0, %c0_0] : memref<128x8xf32, #tpu.memory_space<vmem>>, vector<128x8xf32>
    %c0_1 = arith.constant 0 : index
    %c0_2 = arith.constant 0 : index
    %c0_3 = arith.constant 0 : index
    %1 = vector.load %arg2[%c0_1, %c0_2, %c0_3] : memref<1x128x128xf32, #tpu.memory_space<vmem>>, vector<1x128x128xf32>
    %2 = vector.shape_cast %1 : vector<1x128x128xf32> to vector<128x128xf32>
    %c0_4 = arith.constant 0 : index
    %c0_5 = arith.constant 0 : index
    %3 = vector.load %arg10[%c0_4, %c0_5] : memref<13x32xf32, #tpu.memory_space<vmem>>, vector<1x32xf32>
    %4 = arith.truncf %0 : vector<128x8xf32> to vector<128x8xbf16>
    %c0_6 = arith.constant 0 : index
    %c0_7 = arith.constant 0 : index
    %5 = vector.load %arg5[%c0_6, %c0_7] : memref<8x32xbf16, #tpu.memory_space<vmem>>, vector<8x32xbf16>
    %cst = arith.constant dense<0.000000e+00> : vector<128x32xf32>
    %6 = tpu.matmul %4, %5, %cst {dimension_numbers = #tpu.dot_dimension_numbers<[1], [0], [0], [1], [0, 0, 1, 1], [], []>} : vector<128x8xbf16>, vector<8x32xbf16>, vector<128x32xf32> -> vector<128x32xf32>
    %7 = vector.broadcast %3 : vector<1x32xf32> to vector<128x32xf32>
    %8 = arith.addf %6, %7 : vector<128x32xf32>
    %c3 = arith.constant 3 : index
    %c0_8 = arith.constant 0 : index
    %9 = vector.load %arg10[%c3, %c0_8] : memref<13x32xf32, #tpu.memory_space<vmem>>, vector<1x32xf32>
    %c4 = arith.constant 4 : index
    %c0_9 = arith.constant 0 : index
    %10 = vector.load %arg10[%c4, %c0_9] : memref<13x32xf32, #tpu.memory_space<vmem>>, vector<1x32xf32>
    %c5 = arith.constant 5 : index
    %c0_10 = arith.constant 0 : index
    %11 = vector.load %arg10[%c5, %c0_10] : memref<13x32xf32, #tpu.memory_space<vmem>>, vector<1x32xf32>
    %c6 = arith.constant 6 : index
    %c0_11 = arith.constant 0 : index
    %12 = vector.load %arg10[%c6, %c0_11] : memref<13x32xf32, #tpu.memory_space<vmem>>, vector<1x32xf32>
    %c7 = arith.constant 7 : index
    %c0_12 = arith.constant 0 : index
    %13 = vector.load %arg10[%c7, %c0_12] : memref<13x32xf32, #tpu.memory_space<vmem>>, vector<1x32xf32>
    %c0_13 = arith.constant 0 : index
    %c0_14 = arith.constant 0 : index
    %14 = vector.load %arg11[%c0_13, %c0_14] : memref<2x128xf32, #tpu.memory_space<vmem>>, vector<1x128xf32>
    %15 = arith.truncf %8 : vector<128x32xf32> to vector<128x32xbf16>
    %cst_15 = arith.constant dense<0.000000e+00> : vector<128x128xf32>
    %16 = tpu.matmul %15, %15, %cst_15 {dimension_numbers = #tpu.dot_dimension_numbers<[1], [1], [0], [0], [0, 0, 1, 0], [], []>} : vector<128x32xbf16>, vector<128x32xbf16>, vector<128x128xf32> -> vector<128x128xf32>
    %cst_16 = arith.constant 0.176776692 : f32
    %17 = vector.broadcast %cst_16 : f32 to vector<128x128xf32>
    %18 = arith.mulf %16, %17 : vector<128x128xf32>
    %19 = arith.addf %18, %2 : vector<128x128xf32>
    %cst_17 = arith.constant dense<0xFF800000> : vector<128xf32>
    %20 = vector.multi_reduction <maximumf>, %19, %cst_17 [1] : vector<128x128xf32> to vector<128xf32>
    %21 = vector.shape_cast %20 : vector<128xf32> to vector<128x1xf32>
    %22 = vector.broadcast %21 : vector<128x1xf32> to vector<128x128xf32>
    %23 = arith.subf %19, %22 : vector<128x128xf32>
    %24 = math.exp %23 : vector<128x128xf32>
    %cst_18 = arith.constant dense<0.000000e+00> : vector<128xf32>
    %25 = vector.multi_reduction <add>, %24, %cst_18 [1] : vector<128x128xf32> to vector<128xf32>
    %26 = vector.shape_cast %25 : vector<128xf32> to vector<128x1xf32>
    %27 = tpu.reciprocal %26 {approx = true} : vector<128x1xf32> -> vector<128x1xf32>
    %28 = vector.broadcast %27 : vector<128x1xf32> to vector<128x128xf32>
    %29 = arith.mulf %24, %28 : vector<128x128xf32>
    %30 = arith.truncf %29 : vector<128x128xf32> to vector<128x128xbf16>
    %cst_19 = arith.constant dense<0.000000e+00> : vector<128x32xf32>
    %31 = tpu.matmul %30, %15, %cst_19 {dimension_numbers = #tpu.dot_dimension_numbers<[1], [0], [0], [1], [0, 0, 1, 1], [], []>} : vector<128x128xbf16>, vector<128x32xbf16>, vector<128x32xf32> -> vector<128x32xf32>
    %32 = arith.addf %8, %31 : vector<128x32xf32>
    %cst_20 = arith.constant dense<0.000000e+00> : vector<128xf32>
    %33 = vector.multi_reduction <add>, %32, %cst_20 [1] : vector<128x32xf32> to vector<128xf32>
    %34 = vector.shape_cast %33 : vector<128xf32> to vector<128x1xf32>
    %cst_21 = arith.constant 3.200000e+01 : f32
    %35 = vector.broadcast %cst_21 : f32 to vector<128x1xf32>
    %36 = arith.divf %34, %35 : vector<128x1xf32>
    %37 = vector.broadcast %36 : vector<128x1xf32> to vector<128x32xf32>
    %38 = arith.subf %32, %37 : vector<128x32xf32>
    %39 = arith.mulf %38, %38 : vector<128x32xf32>
    %cst_22 = arith.constant dense<0.000000e+00> : vector<128xf32>
    %40 = vector.multi_reduction <add>, %39, %cst_22 [1] : vector<128x32xf32> to vector<128xf32>
    %41 = vector.shape_cast %40 : vector<128xf32> to vector<128x1xf32>
    %cst_23 = arith.constant 3.200000e+01 : f32
    %42 = vector.broadcast %cst_23 : f32 to vector<128x1xf32>
    %43 = arith.divf %41, %42 : vector<128x1xf32>
    %cst_24 = arith.constant 9.99999974E-6 : f32
    %44 = vector.broadcast %cst_24 : f32 to vector<128x1xf32>
    %45 = arith.addf %43, %44 : vector<128x1xf32>
    %46 = math.rsqrt %45 : vector<128x1xf32>
    %47 = vector.broadcast %46 : vector<128x1xf32> to vector<128x32xf32>
    %48 = arith.mulf %38, %47 : vector<128x32xf32>
    %49 = vector.broadcast %9 : vector<1x32xf32> to vector<128x32xf32>
    %50 = arith.mulf %48, %49 : vector<128x32xf32>
    %51 = vector.broadcast %10 : vector<1x32xf32> to vector<128x32xf32>
    %52 = arith.addf %50, %51 : vector<128x32xf32>
    %53 = arith.truncf %52 : vector<128x32xf32> to vector<128x32xbf16>
    %c0_25 = arith.constant 0 : index
    %c0_26 = arith.constant 0 : index
    %c0_27 = arith.constant 0 : index
    %54 = vector.load %arg6[%c0_25, %c0_26, %c0_27] : memref<2x32x128xbf16, #tpu.memory_space<vmem>>, vector<1x32x128xbf16>
    %55 = vector.shape_cast %54 : vector<1x32x128xbf16> to vector<32x128xbf16>
    %cst_28 = arith.constant dense<0.000000e+00> : vector<128x128xf32>
    %56 = tpu.matmul %53, %55, %cst_28 {dimension_numbers = #tpu.dot_dimension_numbers<[1], [0], [0], [1], [0, 0, 1, 1], [], []>} : vector<128x32xbf16>, vector<32x128xbf16>, vector<128x128xf32> -> vector<128x128xf32>
    %57 = vector.broadcast %14 : vector<1x128xf32> to vector<128x128xf32>
    %58 = arith.addf %56, %57 : vector<128x128xf32>
    %cst_29 = arith.constant 0.000000e+00 : f32
    %59 = vector.broadcast %cst_29 : f32 to vector<128x128xf32>
    %60 = arith.maximumf %58, %59 : vector<128x128xf32>
    %61 = arith.truncf %60 : vector<128x128xf32> to vector<128x128xbf16>
    %c0_30 = arith.constant 0 : index
    %c0_31 = arith.constant 0 : index
    %c0_32 = arith.constant 0 : index
    %62 = vector.load %arg7[%c0_30, %c0_31, %c0_32] : memref<2x128x32xbf16, #tpu.memory_space<vmem>>, vector<1x128x32xbf16>
    %63 = vector.shape_cast %62 : vector<1x128x32xbf16> to vector<128x32xbf16>
    %cst_33 = arith.constant dense<0.000000e+00> : vector<128x32xf32>
    %64 = tpu.matmul %61, %63, %cst_33 {dimension_numbers = #tpu.dot_dimension_numbers<[1], [0], [0], [1], [0, 0, 1, 1], [], []>} : vector<128x128xbf16>, vector<128x32xbf16>, vector<128x32xf32> -> vector<128x32xf32>
    %65 = vector.broadcast %13 : vector<1x32xf32> to vector<128x32xf32>
    %66 = arith.addf %64, %65 : vector<128x32xf32>
    %67 = arith.addf %52, %66 : vector<128x32xf32>
    %cst_34 = arith.constant dense<0.000000e+00> : vector<128xf32>
    %68 = vector.multi_reduction <add>, %67, %cst_34 [1] : vector<128x32xf32> to vector<128xf32>
    %69 = vector.shape_cast %68 : vector<128xf32> to vector<128x1xf32>
    %cst_35 = arith.constant 3.200000e+01 : f32
    %70 = vector.broadcast %cst_35 : f32 to vector<128x1xf32>
    %71 = arith.divf %69, %70 : vector<128x1xf32>
    %72 = vector.broadcast %71 : vector<128x1xf32> to vector<128x32xf32>
    %73 = arith.subf %67, %72 : vector<128x32xf32>
    %74 = arith.mulf %73, %73 : vector<128x32xf32>
    %cst_36 = arith.constant dense<0.000000e+00> : vector<128xf32>
    %75 = vector.multi_reduction <add>, %74, %cst_36 [1] : vector<128x32xf32> to vector<128xf32>
    %76 = vector.shape_cast %75 : vector<128xf32> to vector<128x1xf32>
    %cst_37 = arith.constant 3.200000e+01 : f32
    %77 = vector.broadcast %cst_37 : f32 to vector<128x1xf32>
    %78 = arith.divf %76, %77 : vector<128x1xf32>
    %cst_38 = arith.constant 9.99999974E-6 : f32
    %79 = vector.broadcast %cst_38 : f32 to vector<128x1xf32>
    %80 = arith.addf %78, %79 : vector<128x1xf32>
    %81 = math.rsqrt %80 : vector<128x1xf32>
    %82 = vector.broadcast %81 : vector<128x1xf32> to vector<128x32xf32>
    %83 = arith.mulf %73, %82 : vector<128x32xf32>
    %84 = vector.broadcast %11 : vector<1x32xf32> to vector<128x32xf32>
    %85 = arith.mulf %83, %84 : vector<128x32xf32>
    %86 = vector.broadcast %12 : vector<1x32xf32> to vector<128x32xf32>
    %87 = arith.addf %85, %86 : vector<128x32xf32>
    %c8 = arith.constant 8 : index
    %c0_39 = arith.constant 0 : index
    %88 = vector.load %arg10[%c8, %c0_39] : memref<13x32xf32, #tpu.memory_space<vmem>>, vector<1x32xf32>
    %c9 = arith.constant 9 : index
    %c0_40 = arith.constant 0 : index
    %89 = vector.load %arg10[%c9, %c0_40] : memref<13x32xf32, #tpu.memory_space<vmem>>, vector<1x32xf32>
    %c10 = arith.constant 10 : index
    %c0_41 = arith.constant 0 : index
    %90 = vector.load %arg10[%c10, %c0_41] : memref<13x32xf32, #tpu.memory_space<vmem>>, vector<1x32xf32>
    %c11 = arith.constant 11 : index
    %c0_42 = arith.constant 0 : index
    %91 = vector.load %arg10[%c11, %c0_42] : memref<13x32xf32, #tpu.memory_space<vmem>>, vector<1x32xf32>
    %c12 = arith.constant 12 : index
    %c0_43 = arith.constant 0 : index
    %92 = vector.load %arg10[%c12, %c0_43] : memref<13x32xf32, #tpu.memory_space<vmem>>, vector<1x32xf32>
    %c1 = arith.constant 1 : index
    %c0_44 = arith.constant 0 : index
    %93 = vector.load %arg11[%c1, %c0_44] : memref<2x128xf32, #tpu.memory_space<vmem>>, vector<1x128xf32>
    %94 = arith.truncf %87 : vector<128x32xf32> to vector<128x32xbf16>
    %cst_45 = arith.constant dense<0.000000e+00> : vector<128x128xf32>
    %95 = tpu.matmul %94, %94, %cst_45 {dimension_numbers = #tpu.dot_dimension_numbers<[1], [1], [0], [0], [0, 0, 1, 0], [], []>} : vector<128x32xbf16>, vector<128x32xbf16>, vector<128x128xf32> -> vector<128x128xf32>
    %cst_46 = arith.constant 0.176776692 : f32
    %96 = vector.broadcast %cst_46 : f32 to vector<128x128xf32>
    %97 = arith.mulf %95, %96 : vector<128x128xf32>
    %98 = arith.addf %97, %2 : vector<128x128xf32>
    %cst_47 = arith.constant dense<0xFF800000> : vector<128xf32>
    %99 = vector.multi_reduction <maximumf>, %98, %cst_47 [1] : vector<128x128xf32> to vector<128xf32>
    %100 = vector.shape_cast %99 : vector<128xf32> to vector<128x1xf32>
    %101 = vector.broadcast %100 : vector<128x1xf32> to vector<128x128xf32>
    %102 = arith.subf %98, %101 : vector<128x128xf32>
    %103 = math.exp %102 : vector<128x128xf32>
    %cst_48 = arith.constant dense<0.000000e+00> : vector<128xf32>
    %104 = vector.multi_reduction <add>, %103, %cst_48 [1] : vector<128x128xf32> to vector<128xf32>
    %105 = vector.shape_cast %104 : vector<128xf32> to vector<128x1xf32>
    %106 = tpu.reciprocal %105 {approx = true} : vector<128x1xf32> -> vector<128x1xf32>
    %107 = vector.broadcast %106 : vector<128x1xf32> to vector<128x128xf32>
    %108 = arith.mulf %103, %107 : vector<128x128xf32>
    %109 = arith.truncf %108 : vector<128x128xf32> to vector<128x128xbf16>
    %cst_49 = arith.constant dense<0.000000e+00> : vector<128x32xf32>
    %110 = tpu.matmul %109, %94, %cst_49 {dimension_numbers = #tpu.dot_dimension_numbers<[1], [0], [0], [1], [0, 0, 1, 1], [], []>} : vector<128x128xbf16>, vector<128x32xbf16>, vector<128x32xf32> -> vector<128x32xf32>
    %111 = arith.addf %87, %110 : vector<128x32xf32>
    %cst_50 = arith.constant dense<0.000000e+00> : vector<128xf32>
    %112 = vector.multi_reduction <add>, %111, %cst_50 [1] : vector<128x32xf32> to vector<128xf32>
    %113 = vector.shape_cast %112 : vector<128xf32> to vector<128x1xf32>
    %cst_51 = arith.constant 3.200000e+01 : f32
    %114 = vector.broadcast %cst_51 : f32 to vector<128x1xf32>
    %115 = arith.divf %113, %114 : vector<128x1xf32>
    %116 = vector.broadcast %115 : vector<128x1xf32> to vector<128x32xf32>
    %117 = arith.subf %111, %116 : vector<128x32xf32>
    %118 = arith.mulf %117, %117 : vector<128x32xf32>
    %cst_52 = arith.constant dense<0.000000e+00> : vector<128xf32>
    %119 = vector.multi_reduction <add>, %118, %cst_52 [1] : vector<128x32xf32> to vector<128xf32>
    %120 = vector.shape_cast %119 : vector<128xf32> to vector<128x1xf32>
    %cst_53 = arith.constant 3.200000e+01 : f32
    %121 = vector.broadcast %cst_53 : f32 to vector<128x1xf32>
    %122 = arith.divf %120, %121 : vector<128x1xf32>
    %cst_54 = arith.constant 9.99999974E-6 : f32
    %123 = vector.broadcast %cst_54 : f32 to vector<128x1xf32>
    %124 = arith.addf %122, %123 : vector<128x1xf32>
    %125 = math.rsqrt %124 : vector<128x1xf32>
    %126 = vector.broadcast %125 : vector<128x1xf32> to vector<128x32xf32>
    %127 = arith.mulf %117, %126 : vector<128x32xf32>
    %128 = vector.broadcast %88 : vector<1x32xf32> to vector<128x32xf32>
    %129 = arith.mulf %127, %128 : vector<128x32xf32>
    %130 = vector.broadcast %89 : vector<1x32xf32> to vector<128x32xf32>
    %131 = arith.addf %129, %130 : vector<128x32xf32>
    %132 = arith.truncf %131 : vector<128x32xf32> to vector<128x32xbf16>
    %c1_55 = arith.constant 1 : index
    %c0_56 = arith.constant 0 : index
    %c0_57 = arith.constant 0 : index
    %133 = vector.load %arg6[%c1_55, %c0_56, %c0_57] : memref<2x32x128xbf16, #tpu.memory_space<vmem>>, vector<1x32x128xbf16>
    %134 = vector.shape_cast %133 : vector<1x32x128xbf16> to vector<32x128xbf16>
    %cst_58 = arith.constant dense<0.000000e+00> : vector<128x128xf32>
    %135 = tpu.matmul %132, %134, %cst_58 {dimension_numbers = #tpu.dot_dimension_numbers<[1], [0], [0], [1], [0, 0, 1, 1], [], []>} : vector<128x32xbf16>, vector<32x128xbf16>, vector<128x128xf32> -> vector<128x128xf32>
    %136 = vector.broadcast %93 : vector<1x128xf32> to vector<128x128xf32>
    %137 = arith.addf %135, %136 : vector<128x128xf32>
    %cst_59 = arith.constant 0.000000e+00 : f32
    %138 = vector.broadcast %cst_59 : f32 to vector<128x128xf32>
    %139 = arith.maximumf %137, %138 : vector<128x128xf32>
    %140 = arith.truncf %139 : vector<128x128xf32> to vector<128x128xbf16>
    %c1_60 = arith.constant 1 : index
    %c0_61 = arith.constant 0 : index
    %c0_62 = arith.constant 0 : index
    %141 = vector.load %arg7[%c1_60, %c0_61, %c0_62] : memref<2x128x32xbf16, #tpu.memory_space<vmem>>, vector<1x128x32xbf16>
    %142 = vector.shape_cast %141 : vector<1x128x32xbf16> to vector<128x32xbf16>
    %cst_63 = arith.constant dense<0.000000e+00> : vector<128x32xf32>
    %143 = tpu.matmul %140, %142, %cst_63 {dimension_numbers = #tpu.dot_dimension_numbers<[1], [0], [0], [1], [0, 0, 1, 1], [], []>} : vector<128x128xbf16>, vector<128x32xbf16>, vector<128x32xf32> -> vector<128x32xf32>
    %144 = vector.broadcast %92 : vector<1x32xf32> to vector<128x32xf32>
    %145 = arith.addf %143, %144 : vector<128x32xf32>
    %146 = arith.addf %131, %145 : vector<128x32xf32>
    %cst_64 = arith.constant dense<0.000000e+00> : vector<128xf32>
    %147 = vector.multi_reduction <add>, %146, %cst_64 [1] : vector<128x32xf32> to vector<128xf32>
    %148 = vector.shape_cast %147 : vector<128xf32> to vector<128x1xf32>
    %cst_65 = arith.constant 3.200000e+01 : f32
    %149 = vector.broadcast %cst_65 : f32 to vector<128x1xf32>
    %150 = arith.divf %148, %149 : vector<128x1xf32>
    %151 = vector.broadcast %150 : vector<128x1xf32> to vector<128x32xf32>
    %152 = arith.subf %146, %151 : vector<128x32xf32>
    %153 = arith.mulf %152, %152 : vector<128x32xf32>
    %cst_66 = arith.constant dense<0.000000e+00> : vector<128xf32>
    %154 = vector.multi_reduction <add>, %153, %cst_66 [1] : vector<128x32xf32> to vector<128xf32>
    %155 = vector.shape_cast %154 : vector<128xf32> to vector<128x1xf32>
    %cst_67 = arith.constant 3.200000e+01 : f32
    %156 = vector.broadcast %cst_67 : f32 to vector<128x1xf32>
    %157 = arith.divf %155, %156 : vector<128x1xf32>
    %cst_68 = arith.constant 9.99999974E-6 : f32
    %158 = vector.broadcast %cst_68 : f32 to vector<128x1xf32>
    %159 = arith.addf %157, %158 : vector<128x1xf32>
    %160 = math.rsqrt %159 : vector<128x1xf32>
    %161 = vector.broadcast %160 : vector<128x1xf32> to vector<128x32xf32>
    %162 = arith.mulf %152, %161 : vector<128x32xf32>
    %163 = vector.broadcast %90 : vector<1x32xf32> to vector<128x32xf32>
    %164 = arith.mulf %162, %163 : vector<128x32xf32>
    %165 = vector.broadcast %91 : vector<1x32xf32> to vector<128x32xf32>
    %166 = arith.addf %164, %165 : vector<128x32xf32>
    %c1_69 = arith.constant 1 : index
    %c0_70 = arith.constant 0 : index
    %167 = vector.load %arg10[%c1_69, %c0_70] : memref<13x32xf32, #tpu.memory_space<vmem>>, vector<1x32xf32>
    %c2 = arith.constant 2 : index
    %c0_71 = arith.constant 0 : index
    %168 = vector.load %arg10[%c2, %c0_71] : memref<13x32xf32, #tpu.memory_space<vmem>>, vector<1x32xf32>
    %cst_72 = arith.constant dense<0.000000e+00> : vector<128xf32>
    %169 = vector.multi_reduction <add>, %166, %cst_72 [1] : vector<128x32xf32> to vector<128xf32>
    %170 = vector.shape_cast %169 : vector<128xf32> to vector<128x1xf32>
    %cst_73 = arith.constant 3.200000e+01 : f32
    %171 = vector.broadcast %cst_73 : f32 to vector<128x1xf32>
    %172 = arith.divf %170, %171 : vector<128x1xf32>
    %173 = vector.broadcast %172 : vector<128x1xf32> to vector<128x32xf32>
    %174 = arith.subf %166, %173 : vector<128x32xf32>
    %175 = arith.mulf %174, %174 : vector<128x32xf32>
    %cst_74 = arith.constant dense<0.000000e+00> : vector<128xf32>
    %176 = vector.multi_reduction <add>, %175, %cst_74 [1] : vector<128x32xf32> to vector<128xf32>
    %177 = vector.shape_cast %176 : vector<128xf32> to vector<128x1xf32>
    %cst_75 = arith.constant 3.200000e+01 : f32
    %178 = vector.broadcast %cst_75 : f32 to vector<128x1xf32>
    %179 = arith.divf %177, %178 : vector<128x1xf32>
    %cst_76 = arith.constant 9.99999974E-6 : f32
    %180 = vector.broadcast %cst_76 : f32 to vector<128x1xf32>
    %181 = arith.addf %179, %180 : vector<128x1xf32>
    %182 = math.rsqrt %181 : vector<128x1xf32>
    %183 = vector.broadcast %182 : vector<128x1xf32> to vector<128x32xf32>
    %184 = arith.mulf %174, %183 : vector<128x32xf32>
    %185 = vector.broadcast %167 : vector<1x32xf32> to vector<128x32xf32>
    %186 = arith.mulf %184, %185 : vector<128x32xf32>
    %187 = vector.broadcast %168 : vector<1x32xf32> to vector<128x32xf32>
    %188 = arith.addf %186, %187 : vector<128x32xf32>
    %c0_77 = arith.constant 0 : index
    %c0_78 = arith.constant 0 : index
    %189 = vector.load %arg8[%c0_77, %c0_78] : memref<8x32xbf16, #tpu.memory_space<vmem>>, vector<8x32xbf16>
    %190 = arith.truncf %188 : vector<128x32xf32> to vector<128x32xbf16>
    %cst_79 = arith.constant dense<0.000000e+00> : vector<8x128xf32>
    %191 = tpu.matmul %189, %190, %cst_79 {dimension_numbers = #tpu.dot_dimension_numbers<[1], [1], [0], [0], [0, 0, 1, 0], [], []>} : vector<8x32xbf16>, vector<128x32xbf16>, vector<8x128xf32> -> vector<8x128xf32>
    %c0_80 = arith.constant 0 : index
    %c0_81 = arith.constant 0 : index
    %192 = vector.load %arg9[%c0_80, %c0_81] : memref<8x1xf32, #tpu.memory_space<vmem>>, vector<8x1xf32>
    %193 = vector.broadcast %192 : vector<8x1xf32> to vector<8x128xf32>
    %194 = arith.addf %191, %193 : vector<8x128xf32>
    %c0_82 = arith.constant 0 : index
    %c0_83 = arith.constant 0 : index
    %c0_84 = arith.constant 0 : index
    %195 = vector.load %arg3[%c0_82, %c0_83, %c0_84] : memref<1x1x128xf32, #tpu.memory_space<vmem>>, vector<1x1x128xf32>
    %196 = vector.shape_cast %195 : vector<1x1x128xf32> to vector<1x128xf32>
    %197 = vector.broadcast %196 : vector<1x128xf32> to vector<8x128xf32>
    %198 = arith.mulf %194, %197 : vector<8x128xf32>
    %c0_85 = arith.constant 0 : index
    %c0_86 = arith.constant 0 : index
    %c0_87 = arith.constant 0 : index
    %199 = vector.load %arg4[%c0_85, %c0_86, %c0_87] : memref<1x1x128xf32, #tpu.memory_space<vmem>>, vector<1x1x128xf32>
    %200 = vector.shape_cast %199 : vector<1x1x128xf32> to vector<1x128xf32>
    %201 = vector.broadcast %200 : vector<1x128xf32> to vector<8x128xf32>
    %202 = arith.addf %198, %201 : vector<8x128xf32>
    %c0_88 = arith.constant 0 : index
    %c0_89 = arith.constant 0 : index
    %c0_90 = arith.constant 0 : index
    %203 = vector.load %arg12[%c0_88, %c0_89, %c0_90] : memref<1x8x128xf32, #tpu.memory_space<vmem>>, vector<1x8x128xf32>
    %204 = vector.shape_cast %203 : vector<1x8x128xf32> to vector<8x128xf32>
    %205 = vector.shape_cast %202 : vector<8x128xf32> to vector<1x8x128xf32>
    tpu.vector_store %arg12[%c0_88, %c0_89, %c0_90], %205 {strides = array<i32>} : memref<1x8x128xf32, #tpu.memory_space<vmem>>, vector<1x8x128xf32>,
    return
  }
  func.func @transform_0(%arg0: i32) -> (i32, i32) {
    %c0_i32 = arith.constant 0 : i32
    %c0_i32_0 = arith.constant 0 : i32
    return %arg0, %c0_i32 : i32, i32
  }
  func.func @transform_1(%arg0: i32) -> (i32, i32, i32) {
    %c0_i32 = arith.constant 0 : i32
    %c0_i32_0 = arith.constant 0 : i32
    %c0_i32_1 = arith.constant 0 : i32
    return %arg0, %c0_i32, %c0_i32_0 : i32, i32, i32
  }
  func.func @transform_2(%arg0: i32) -> (i32, i32, i32) {
    %c0_i32 = arith.constant 0 : i32
    %c0_i32_0 = arith.constant 0 : i32
    %c0_i32_1 = arith.constant 0 : i32
    return %arg0, %c0_i32, %c0_i32_0 : i32, i32, i32
  }
  func.func @transform_3(%arg0: i32) -> (i32, i32, i32) {
    %c0_i32 = arith.constant 0 : i32
    %c0_i32_0 = arith.constant 0 : i32
    %c0_i32_1 = arith.constant 0 : i32
    return %arg0, %c0_i32, %c0_i32_0 : i32, i32, i32
  }
  func.func @transform_4(%arg0: i32) -> (i32, i32) {
    %c0_i32 = arith.constant 0 : i32
    %c0_i32_0 = arith.constant 0 : i32
    %c0_i32_1 = arith.constant 0 : i32
    return %c0_i32, %c0_i32_0 : i32, i32
  }
  func.func @transform_5(%arg0: i32) -> (i32, i32, i32) {
    %c0_i32 = arith.constant 0 : i32
    %c0_i32_0 = arith.constant 0 : i32
    %c0_i32_1 = arith.constant 0 : i32
    %c0_i32_2 = arith.constant 0 : i32
    return %c0_i32, %c0_i32_0, %c0_i32_1 : i32, i32, i32
  }
  func.func @transform_6(%arg0: i32) -> (i32, i32, i32) {
    %c0_i32 = arith.constant 0 : i32
    %c0_i32_0 = arith.constant 0 : i32
    %c0_i32_1 = arith.constant 0 : i32
    %c0_i32_2 = arith.constant 0 : i32
    return %c0_i32, %c0_i32_0, %c0_i32_1 : i32, i32, i32
  }
  func.func @transform_7(%arg0: i32) -> (i32, i32) {
    %c0_i32 = arith.constant 0 : i32
    %c0_i32_0 = arith.constant 0 : i32
    %c0_i32_1 = arith.constant 0 : i32
    return %c0_i32, %c0_i32_0 : i32, i32
  }
  func.func @transform_8(%arg0: i32) -> (i32, i32) {
    %c0_i32 = arith.constant 0 : i32
    %c0_i32_0 = arith.constant 0 : i32
    %c0_i32_1 = arith.constant 0 : i32
    return %c0_i32, %c0_i32_0 : i32, i32
  }
  func.func @transform_9(%arg0: i32) -> (i32, i32) {
    %c0_i32 = arith.constant 0 : i32
    %c0_i32_0 = arith.constant 0 : i32
    %c0_i32_1 = arith.constant 0 : i32
    return %c0_i32, %c0_i32_0 : i32, i32
  }
  func.func @transform_10(%arg0: i32) -> (i32, i32) {
    %c0_i32 = arith.constant 0 : i32
    %c0_i32_0 = arith.constant 0 : i32
    %c0_i32_1 = arith.constant 0 : i32
    return %c0_i32, %c0_i32_0 : i32, i32
  }
  func.func @transform_11(%arg0: i32) -> (i32, i32, i32) {
    %c0_i32 = arith.constant 0 : i32
    %c0_i32_0 = arith.constant 0 : i32
    %c0_i32_1 = arith.constant 0 : i32
    return %arg0, %c0_i32, %c0_i32_0 : i32, i32, i32
  }
}

</mosaic_0001>

<llo_original>
// kernel: _lambda_.1
$region0: #{_lambda_.1}
  #allocation0 [shape = 'u32[]', space=smem, size = 0x4, offset = 0x4, fixed_abs, tag = 'smem constant byte address 0x4 - core index']
  #allocation1 [shape = 'u32[144,128]{1,0:T(1,128)}', space=vmem, size = 0x12000, scoped, tag = 'internal scratch']
  %s0 = inlined_call_operand.vmem [shape: f32[128,8], index: 0, kind: input, shape index: {}]
  %s1 = inlined_call_operand.vmem [shape: f32[1,128,128], index: 1, kind: input, shape index: {}]
  %s2 = inlined_call_operand.vmem [shape: f32[1,1,128], index: 2, kind: input, shape index: {}]
  %s3 = inlined_call_operand.vmem [shape: f32[1,1,128], index: 3, kind: input, shape index: {}]
  %s4 = inlined_call_operand.vmem [shape: bf16[8,32], index: 4, kind: input, shape index: {}]
  %s5 = inlined_call_operand.vmem [shape: bf16[2,32,128], index: 5, kind: input, shape index: {}]
  %s6 = inlined_call_operand.vmem [shape: bf16[2,128,32], index: 6, kind: input, shape index: {}]
  %s7 = inlined_call_operand.vmem [shape: bf16[8,32], index: 7, kind: input, shape index: {}]
  %s8 = inlined_call_operand.vmem [shape: f32[8,1], index: 8, kind: input, shape index: {}]
  %s9 = inlined_call_operand.vmem [shape: f32[13,32], index: 9, kind: input, shape index: {}]
  %s10 = inlined_call_operand.vmem [shape: f32[2,128], index: 10, kind: input, shape index: {}]
  %s11 = inlined_call_operand.vmem [shape: f32[1,8,128], index: 11, kind: output, shape index: {}]
  %s12 = sld [smem:[#allocation0]]
  $region54: #{_lambda_.1} parent=0
    _
  %s14 = ssub.s32 1, %s12
  %s15 = scalar_select 0, %s14, %s12
  // Predicated region
  $region2: #{_lambda_.1} parent=0 // pred_check
    _
  $region3: #{_lambda_.1} parent=0 // pred_check_branch
    %17 = sbr.rel (0) target = $region5
  $region4: #{_lambda_.1} parent=0 // pred_region
    _
  $region5: #{_lambda_.1} parent=0 // pred_fallthru
    _
  // Predicated region
  $region6: #{_lambda_.1} parent=0 // pred_check
    _
  $region7: #{_lambda_.1} parent=0 // pred_check_branch
    %19 = sbr.rel (0) target = $region9
  $region8: #{_lambda_.1} parent=0 // pred_region
    _
  $region9: #{_lambda_.1} parent=0 // pred_fallthru
    _
  // Predicated region
  $region10: #{_lambda_.1} parent=0 // pred_check
    _
  $region11: #{_lambda_.1} parent=0 // pred_check_branch
    %21 = sbr.rel (0) target = $region13
  $region12: #{_lambda_.1} parent=0 // pred_region
    _
  $region13: #{_lambda_.1} parent=0 // pred_fallthru
    _
  // Predicated region
  $region14: #{_lambda_.1} parent=0 // pred_check
    _
  $region15: #{_lambda_.1} parent=0 // pred_check_branch
    %23 = sbr.rel (0) target = $region17
  $region16: #{_lambda_.1} parent=0 // pred_region
    _
  $region17: #{_lambda_.1} parent=0 // pred_fallthru
    _
  // Predicated region
  $region18: #{_lambda_.1} parent=0 // pred_check
    _
  $region19: #{_lambda_.1} parent=0 // pred_check_branch
    %25 = sbr.rel (0) target = $region21
  $region20: #{_lambda_.1} parent=0 // pred_region
    _
  $region21: #{_lambda_.1} parent=0 // pred_fallthru
    _
  // Predicated region
  $region22: #{_lambda_.1} parent=0 // pred_check
    _
  $region23: #{_lambda_.1} parent=0 // pred_check_branch
    %27 = sbr.rel (0) target = $region25
  $region24: #{_lambda_.1} parent=0 // pred_region
    _
  $region25: #{_lambda_.1} parent=0 // pred_fallthru
    _
  // Predicated region
  $region26: #{_lambda_.1} parent=0 // pred_check
    _
  $region27: #{_lambda_.1} parent=0 // pred_check_branch
    %29 = sbr.rel (0) target = $region29
  $region28: #{_lambda_.1} parent=0 // pred_region
    _
  $region29: #{_lambda_.1} parent=0 // pred_fallthru
    _
  // Predicated region
  $region30: #{_lambda_.1} parent=0 // pred_check
    _
  $region31: #{_lambda_.1} parent=0 // pred_check_branch
    %31 = sbr.rel (0) target = $region33
  $region32: #{_lambda_.1} parent=0 // pred_region
    _
  $region33: #{_lambda_.1} parent=0 // pred_fallthru
    _
  // Predicated region
  $region34: #{_lambda_.1} parent=0 // pred_check
    _
  $region35: #{_lambda_.1} parent=0 // pred_check_branch
    %33 = sbr.rel (0) target = $region37
  $region36: #{_lambda_.1} parent=0 // pred_region
    _
  $region37: #{_lambda_.1} parent=0 // pred_fallthru
    _
  // Predicated region
  $region38: #{_lambda_.1} parent=0 // pred_check
    _
  $region39: #{_lambda_.1} parent=0 // pred_check_branch
    %35 = sbr.rel (0) target = $region41
  $region40: #{_lambda_.1} parent=0 // pred_region
    _
  $region41: #{_lambda_.1} parent=0 // pred_fallthru
    _
  // Predicated region
  $region42: #{_lambda_.1} parent=0 // pred_check
    _
  $region43: #{_lambda_.1} parent=0 // pred_check_branch
    %37 = sbr.rel (0) target = $region45
  $region44: #{_lambda_.1} parent=0 // pred_region
    _
  $region45: #{_lambda_.1} parent=0 // pred_fallthru
    _
  %v39 = vld [vmem:[%s0] sm:$0xff]
  %v40 = vld [vmem:[%s0 + $0x8] sm:$0xff]
  %v41 = vld [vmem:[%s0 + $0x10] sm:$0xff]
  %v42 = vld [vmem:[%s0 + $0x18] sm:$0xff]
  %v43 = vld [vmem:[%s0 + $0x20] sm:$0xff]
  %v44 = vld [vmem:[%s0 + $0x28] sm:$0xff]
  %v45 = vld [vmem:[%s0 + $0x30] sm:$0xff]
  %v46 = vld [vmem:[%s0 + $0x38] sm:$0xff]
  %v47 = vld [vmem:[%s0 + $0x40] sm:$0xff]
  %v48 = vld [vmem:[%s0 + $0x48] sm:$0xff]
  %v49 = vld [vmem:[%s0 + $0x50] sm:$0xff]
  %v50 = vld [vmem:[%s0 + $0x58] sm:$0xff]
  %v51 = vld [vmem:[%s0 + $0x60] sm:$0xff]
  %v52 = vld [vmem:[%s0 + $0x68] sm:$0xff]
  %v53 = vld [vmem:[%s0 + $0x70] sm:$0xff]
  %v54 = vld [vmem:[%s0 + $0x78] sm:$0xff]
  %v55 = vld [vmem:[%s1] sm:$0xff]
  %v56 = vld [vmem:[%s1 + $0x8] sm:$0xff]
  %v57 = vld [vmem:[%s1 + $0x10] sm:$0xff]
  %v58 = vld [vmem:[%s1 + $0x18] sm:$0xff]
  %v59 = vld [vmem:[%s1 + $0x20] sm:$0xff]
  %v60 = vld [vmem:[%s1 + $0x28] sm:$0xff]
  %v61 = vld [vmem:[%s1 + $0x30] sm:$0xff]
  %v62 = vld [vmem:[%s1 + $0x38] sm:$0xff]
  %v63 = vld [vmem:[%s1 + $0x40] sm:$0xff]
  %v64 = vld [vmem:[%s1 + $0x48] sm:$0xff]
  %v65 = vld [vmem:[%s1 + $0x50] sm:$0xff]
  %v66 = vld [vmem:[%s1 + $0x58] sm:$0xff]
  %v67 = vld [vmem:[%s1 + $0x60] sm:$0xff]
  %v68 = vld [vmem:[%s1 + $0x68] sm:$0xff]
  %v69 = vld [vmem:[%s1 + $0x70] sm:$0xff]
  %v70 = vld [vmem:[%s1 + $0x78] sm:$0xff]
  %v71 = vld [vmem:[%s9] sm:$0x1]
  %v72 = vpack.c.bf16 %v40, %v39
  %v73 = vpack.c.bf16 %v42, %v41
  %v74 = vpack.c.bf16 %v44, %v43
  %v75 = vpack.c.bf16 %v46, %v45
  %v76 = vpack.c.bf16 %v48, %v47
  %v77 = vpack.c.bf16 %v50, %v49
  %v78 = vpack.c.bf16 %v52, %v51
  %v79 = vpack.c.bf16 %v54, %v53
  %v80 = vld [vmem:[%s4] sm:$0xf]
  %v81 = vlaneseq
  %v82 = vshrl.u32 %v81, 7
  %v83 = vsub.s32 0, %v82
  %v84 = vrot.slane %v71, %v83
  %vm85 = vcmask 64512
  %v87 = vsel %vm85, %v72, 0
  %v90 = vsel %vm85, %v73, 0
  %v93 = vsel %vm85, %v74, 0
  %v96 = vsel %vm85, %v75, 0
  %v99 = vsel %vm85, %v76, 0
  %v102 = vsel %vm85, %v77, 0
  %v105 = vsel %vm85, %v78, 0
  %v108 = vsel %vm85, %v79, 0
  %vm110 = vcmask 1043456
  %v112 = vsel %vm110, %v80, 0
  %114 = vmatprep.subr.bf16.mxu0 0
  %115 = vmatpush1.bf16.msra.mxu0 %v112
  %116 = vmatprep.subr.bf16.mxu0 0
  %117 = vmatpush1.bf16.msra.mxu0 0
  %118 = vmatprep.subr.bf16.mxu0 0
  %119 = vmatpush1.bf16.msra.mxu0 0
  %120 = vmatprep.subr.bf16.mxu0 0
  %121 = vmatpush1.bf16.msra.mxu0 0
  %122 = vmatprep.subr.bf16.mxu0 0
  %123 = vmatpush1.bf16.msra.mxu0 0
  %124 = vmatprep.subr.bf16.mxu0 0
  %125 = vmatpush1.bf16.msra.mxu0 0
  %126 = vmatprep.subr.bf16.mxu0 0
  %127 = vmatpush1.bf16.msra.mxu0 0
  %128 = vmatprep.subr.bf16.mxu0 0
  %129 = vmatpush1.bf16.msra.mxu0 0
  %130 = vmatprep.subr.bf16.mxu0 0
  %131 = vmatpush1.bf16.msra.mxu0 0
  %132 = vmatprep.subr.bf16.mxu0 0
  %133 = vmatpush1.bf16.msra.mxu0 0
  %134 = vmatprep.subr.bf16.mxu0 0
  %135 = vmatpush1.bf16.msra.mxu0 0
  %136 = vmatprep.subr.bf16.mxu0 0
  %137 = vmatpush1.bf16.msra.mxu0 0
  %138 = vmatprep.subr.bf16.mxu0 0
  %139 = vmatpush1.bf16.msra.mxu0 0
  %140 = vmatprep.subr.bf16.mxu0 0
  %141 = vmatpush1.bf16.msra.mxu0 0
  %142 = vmatprep.subr.bf16.mxu0 0
  %143 = vmatpush1.bf16.msra.mxu0 0
  %144 = vmatprep.subr.bf16.mxu0 0
  %145 = vmatpush1.bf16.msra.mxu0 0
  %146 = vmatprep.mubr.bf16.mxu0 0
  %147 = vmatmul.mubr.bf16.gmra.mrb[0].mxu0 %v87
  %v148 = vpop.f32.mrb[0].mxu0
  %v149 = vadd.f32 %v84, %v148
  %v150 = vpop.f32.mrb[0].mxu0
  %v151 = vpop.f32.mrb[0].mxu0
  %v152 = vadd.f32 %v84, %v151
  %v153 = vpop.f32.mrb[0].mxu0
  %154 = vmatprep.mubr.bf16.mxu0 0
  %155 = vmatmul.mubr.bf16.gmra.mrb[0].mxu0 %v90
  %v156 = vpop.f32.mrb[0].mxu0
  %v157 = vadd.f32 %v84, %v156
  %v158 = vpop.f32.mrb[0].mxu0
  %v159 = vpop.f32.mrb[0].mxu0
  %v160 = vadd.f32 %v84, %v159
  %v161 = vpop.f32.mrb[0].mxu0
  %162 = vmatprep.mubr.bf16.mxu0 0
  %163 = vmatmul.mubr.bf16.gmra.mrb[0].mxu0 %v93
  %v164 = vpop.f32.mrb[0].mxu0
  %v165 = vadd.f32 %v84, %v164
  %v166 = vpop.f32.mrb[0].mxu0
  %v167 = vpop.f32.mrb[0].mxu0
  %v168 = vadd.f32 %v84, %v167
  %v169 = vpop.f32.mrb[0].mxu0
  %170 = vmatprep.mubr.bf16.mxu0 0
  %171 = vmatmul.mubr.bf16.gmra.mrb[0].mxu0 %v96
  %v172 = vpop.f32.mrb[0].mxu0
  %v173 = vadd.f32 %v84, %v172
  %v174 = vpop.f32.mrb[0].mxu0
  %v175 = vpop.f32.mrb[0].mxu0
  %v176 = vadd.f32 %v84, %v175
  %v177 = vpop.f32.mrb[0].mxu0
  %178 = vmatprep.mubr.bf16.mxu0 0
  %179 = vmatmul.mubr.bf16.gmra.mrb[0].mxu0 %v99
  %v180 = vpop.f32.mrb[0].mxu0
  %v181 = vadd.f32 %v84, %v180
  %v182 = vpop.f32.mrb[0].mxu0
  %v183 = vpop.f32.mrb[0].mxu0
  %v184 = vadd.f32 %v84, %v183
  %v185 = vpop.f32.mrb[0].mxu0
  %186 = vmatprep.mubr.bf16.mxu0 0
  %187 = vmatmul.mubr.bf16.gmra.mrb[0].mxu0 %v102
  %v188 = vpop.f32.mrb[0].mxu0
  %v189 = vadd.f32 %v84, %v188
  %v190 = vpop.f32.mrb[0].mxu0
  %v191 = vpop.f32.mrb[0].mxu0
  %v192 = vadd.f32 %v84, %v191
  %v193 = vpop.f32.mrb[0].mxu0
  %194 = vmatprep.mubr.bf16.mxu0 0
  %195 = vmatmul.mubr.bf16.gmra.mrb[0].mxu0 %v105
  %v196 = vpop.f32.mrb[0].mxu0
  %v197 = vadd.f32 %v84, %v196
  %v198 = vpop.f32.mrb[0].mxu0
  %v199 = vpop.f32.mrb[0].mxu0
  %v200 = vadd.f32 %v84, %v199
  %v201 = vpop.f32.mrb[0].mxu0
  %202 = vmatprep.mubr.bf16.mxu0 0
  %203 = vmatmul.mubr.bf16.gmra.mrb[0].mxu0 %v108
  %v204 = vpop.f32.mrb[0].mxu0
  %v205 = vadd.f32 %v84, %v204
  %v206 = vpop.f32.mrb[0].mxu0
  %v207 = vpop.f32.mrb[0].mxu0
  %v208 = vadd.f32 %v84, %v207
  %v209 = vpop.f32.mrb[0].mxu0
  %210 = vdwg.mxu0
  %v211 = vld [vmem:[%s9 + $0x3] sm:$0x1]
  %v212 = vld [vmem:[%s9 + $0x4] sm:$0x1]
  %v213 = vld [vmem:[%s9 + $0x5] sm:$0x1]
  %v214 = vld [vmem:[%s9 + $0x6] sm:$0x1]
  %v215 = vld [vmem:[%s9 + $0x7] sm:$0x1]
  %v216 = vld [vmem:[%s10] sm:$0x1]
  %v217 = vpack.c.bf16 %v152, %v149
  %v218 = vpack.c.bf16 %v160, %v157
  %v219 = vpack.c.bf16 %v168, %v165
  %v220 = vpack.c.bf16 %v176, %v173
  %v221 = vpack.c.bf16 %v184, %v181
  %v222 = vpack.c.bf16 %v192, %v189
  %v223 = vpack.c.bf16 %v200, %v197
  %v224 = vpack.c.bf16 %v208, %v205
  %vm225 = vcmask 261120
  %v227 = vsel %vm225, %v217, 0
  %v230 = vsel %vm225, %v218, 0
  %v233 = vsel %vm225, %v219, 0
  %v236 = vsel %vm225, %v220, 0
  %v239 = vsel %vm225, %v221, 0
  %v242 = vsel %vm225, %v222, 0
  %v245 = vsel %vm225, %v223, 0
  %v248 = vsel %vm225, %v224, 0
  %250 = vmatprep.subr.bf16.mxu0 0
  %251 = vmatpush1.bf16.xpose.msra.mxu0 %v227
  %252 = vmatprep.subr.bf16.mxu0 0
  %253 = vmatpush1.bf16.xpose.msra.mxu0 %v230
  %254 = vmatprep.subr.bf16.mxu0 0
  %255 = vmatpush1.bf16.xpose.msra.mxu0 %v233
  %256 = vmatprep.subr.bf16.mxu0 0
  %257 = vmatpush1.bf16.xpose.msra.mxu0 %v236
  %258 = vmatprep.subr.bf16.mxu0 0
  %259 = vmatpush1.bf16.xpose.msra.mxu0 %v239
  %260 = vmatprep.subr.bf16.mxu0 0
  %261 = vmatpush1.bf16.xpose.msra.mxu0 %v242
  %262 = vmatprep.subr.bf16.mxu0 0
  %263 = vmatpush1.bf16.xpose.msra.mxu0 %v245
  %264 = vmatprep.subr.bf16.mxu0 0
  %265 = vmatpush1.bf16.xpose.msra.mxu0 %v248
  %266 = vmatprep.subr.bf16.mxu0 0
  %267 = vmatpush1.bf16.xpose.msra.mxu0 0
  %268 = vmatprep.subr.bf16.mxu0 0
  %269 = vmatpush1.bf16.xpose.msra.mxu0 0
  %270 = vmatprep.subr.bf16.mxu0 0
  %271 = vmatpush1.bf16.xpose.msra.mxu0 0
  %272 = vmatprep.subr.bf16.mxu0 0
  %273 = vmatpush1.bf16.xpose.msra.mxu0 0
  %274 = vmatprep.subr.bf16.mxu0 0
  %275 = vmatpush1.bf16.xpose.msra.mxu0 0
  %276 = vmatprep.subr.bf16.mxu0 0
  %277 = vmatpush1.bf16.xpose.msra.mxu0 0
  %278 = vmatprep.subr.bf16.mxu0 0
  %279 = vmatpush1.bf16.xpose.msra.mxu0 0
  %280 = vmatprep.subr.bf16.mxu0 0
  %281 = vmatpush1.bf16.xpose.msra.mxu0 0
  %282 = vmatprep.mubr.bf16.mxu0 0
  %283 = vmatmul.mubr.bf16.gmra.mrb[0].mxu0 %v227
  %v284 = vpop.f32.mrb[0].mxu0
  %v285 = vadd.f32 0.0, %v284
  %v286 = vpop.f32.mrb[0].mxu0
  %v287 = vpop.f32.mrb[0].mxu0
  %v288 = vadd.f32 0.0, %v287
  %v289 = vpop.f32.mrb[0].mxu0
  %290 = vmatprep.mubr.bf16.mxu0 0
  %291 = vmatmul.mubr.bf16.gmra.mrb[0].mxu0 %v230
  %v292 = vpop.f32.mrb[0].mxu0
  %v293 = vadd.f32 0.0, %v292
  %v294 = vpop.f32.mrb[0].mxu0
  %v295 = vpop.f32.mrb[0].mxu0
  %v296 = vadd.f32 0.0, %v295
  %v297 = vpop.f32.mrb[0].mxu0
  %298 = vmatprep.mubr.bf16.mxu0 0
  %299 = vmatmul.mubr.bf16.gmra.mrb[0].mxu0 %v233
  %v300 = vpop.f32.mrb[0].mxu0
  %v301 = vadd.f32 0.0, %v300
  %v302 = vpop.f32.mrb[0].mxu0
  %v303 = vpop.f32.mrb[0].mxu0
  %v304 = vadd.f32 0.0, %v303
  %v305 = vpop.f32.mrb[0].mxu0
  %306 = vmatprep.mubr.bf16.mxu0 0
  %307 = vmatmul.mubr.bf16.gmra.mrb[0].mxu0 %v236
  %v308 = vpop.f32.mrb[0].mxu0
  %v309 = vadd.f32 0.0, %v308
  %v310 = vpop.f32.mrb[0].mxu0
  %v311 = vpop.f32.mrb[0].mxu0
  %v312 = vadd.f32 0.0, %v311
  %v313 = vpop.f32.mrb[0].mxu0
  %314 = vmatprep.mubr.bf16.mxu0 0
  %315 = vmatmul.mubr.bf16.gmra.mrb[0].mxu0 %v239
  %v316 = vpop.f32.mrb[0].mxu0
  %v317 = vadd.f32 0.0, %v316
  %v318 = vpop.f32.mrb[0].mxu0
  %v319 = vpop.f32.mrb[0].mxu0
  %v320 = vadd.f32 0.0, %v319
  %v321 = vpop.f32.mrb[0].mxu0
  %322 = vmatprep.mubr.bf16.mxu0 0
  %323 = vmatmul.mubr.bf16.gmra.mrb[0].mxu0 %v242
  %v324 = vpop.f32.mrb[0].mxu0
  %v325 = vadd.f32 0.0, %v324
  %v326 = vpop.f32.mrb[0].mxu0
  %v327 = vpop.f32.mrb[0].mxu0
  %v328 = vadd.f32 0.0, %v327
  %v329 = vpop.f32.mrb[0].mxu0
  %330 = vmatprep.mubr.bf16.mxu0 0
  %331 = vmatmul.mubr.bf16.gmra.mrb[0].mxu0 %v245
  %v332 = vpop.f32.mrb[0].mxu0
  %v333 = vadd.f32 0.0, %v332
  %v334 = vpop.f32.mrb[0].mxu0
  %v335 = vpop.f32.mrb[0].mxu0
  %v336 = vadd.f32 0.0, %v335
  %v337 = vpop.f32.mrb[0].mxu0
  %338 = vmatprep.mubr.bf16.mxu0 0
  %339 = vmatmul.mubr.bf16.gmra.mrb[0].mxu0 %v248
  %v340 = vpop.f32.mrb[0].mxu0
  %v341 = vadd.f32 0.0, %v340
  %v342 = vpop.f32.mrb[0].mxu0
  %v343 = vpop.f32.mrb[0].mxu0
  %v344 = vadd.f32 0.0, %v343
  %v345 = vpop.f32.mrb[0].mxu0
  %346 = vdwg.mxu0
  %v347 = vmul.f32 %v285, 0.17677669
  %v348 = vmul.f32 %v288, 0.17677669
  %v349 = vmul.f32 %v293, 0.17677669
  %v350 = vmul.f32 %v296, 0.17677669
  %v351 = vmul.f32 %v301, 0.17677669
  %v352 = vmul.f32 %v304, 0.17677669
  %v353 = vmul.f32 %v309, 0.17677669
  %v354 = vmul.f32 %v312, 0.17677669
  %v355 = vmul.f32 %v317, 0.17677669
  %v356 = vmul.f32 %v320, 0.17677669
  %v357 = vmul.f32 %v325, 0.17677669
  %v358 = vmul.f32 %v328, 0.17677669
  %v359 = vmul.f32 %v333, 0.17677669
  %v360 = vmul.f32 %v336, 0.17677669
  %v361 = vmul.f32 %v341, 0.17677669
  %v362 = vmul.f32 %v344, 0.17677669
  %v363 = vadd.f32 %v347, %v55
  %v364 = vadd.f32 %v348, %v56
  %v365 = vadd.f32 %v349, %v57
  %v366 = vadd.f32 %v350, %v58
  %v367 = vadd.f32 %v351, %v59
  %v368 = vadd.f32 %v352, %v60
  %v369 = vadd.f32 %v353, %v61
  %v370 = vadd.f32 %v354, %v62
  %v371 = vadd.f32 %v355, %v63
  %v372 = vadd.f32 %v356, %v64
  %v373 = vadd.f32 %v357, %v65
  %v374 = vadd.f32 %v358, %v66
  %v375 = vadd.f32 %v359, %v67
  %v376 = vadd.f32 %v360, %v68
  %v377 = vadd.f32 %v361, %v69
  %v378 = vadd.f32 %v362, %v70
  %379 = vmax.xlane.f32.xlu0 %v363
  %v380 = vpop.xlane.xlu0 %379
  %381 = vmax.xlane.f32.xlu0 %v364
  %v382 = vpop.xlane.xlu0 %381
  %383 = vmax.xlane.f32.xlu0 %v365
  %v384 = vpop.xlane.xlu0 %383
  %385 = vmax.xlane.f32.xlu0 %v366
  %v386 = vpop.xlane.xlu0 %385
  %387 = vmax.xlane.f32.xlu0 %v367
  %v388 = vpop.xlane.xlu0 %387
  %389 = vmax.xlane.f32.xlu0 %v368
  %v390 = vpop.xlane.xlu0 %389
  %391 = vmax.xlane.f32.xlu0 %v369
  %v392 = vpop.xlane.xlu0 %391
  %393 = vmax.xlane.f32.xlu0 %v370
  %v394 = vpop.xlane.xlu0 %393
  %395 = vmax.xlane.f32.xlu0 %v371
  %v396 = vpop.xlane.xlu0 %395
  %397 = vmax.xlane.f32.xlu0 %v372
  %v398 = vpop.xlane.xlu0 %397
  %399 = vmax.xlane.f32.xlu0 %v373
  %v400 = vpop.xlane.xlu0 %399
  %401 = vmax.xlane.f32.xlu0 %v374
  %v402 = vpop.xlane.xlu0 %401
  %403 = vmax.xlane.f32.xlu0 %v375
  %v404 = vpop.xlane.xlu0 %403
  %405 = vmax.xlane.f32.xlu0 %v376
  %v406 = vpop.xlane.xlu0 %405
  %407 = vmax.xlane.f32.xlu0 %v377
  %v408 = vpop.xlane.xlu0 %407
  %409 = vmax.xlane.f32.xlu0 %v378
  %v410 = vpop.xlane.xlu0 %409
  %v411 = vsub.f32 %v363, %v380
  %v412 = vsub.f32 %v364, %v382
  %v413 = vsub.f32 %v365, %v384
  %v414 = vsub.f32 %v366, %v386
  %v415 = vsub.f32 %v367, %v388
  %v416 = vsub.f32 %v368, %v390
  %v417 = vsub.f32 %v369, %v392
  %v418 = vsub.f32 %v370, %v394
  %v419 = vsub.f32 %v371, %v396
  %v420 = vsub.f32 %v372, %v398
  %v421 = vsub.f32 %v373, %v400
  %v422 = vsub.f32 %v374, %v402
  %v423 = vsub.f32 %v375, %v404
  %v424 = vsub.f32 %v376, %v406
  %v425 = vsub.f32 %v377, %v408
  %v426 = vsub.f32 %v378, %v410
  %v427 = vmul.f32 %v411, 1.442695
  %v428 = vpow.pop %v427
  %v429 = vmul.f32 %v412, 1.442695
  %v430 = vpow.pop %v429
  %v431 = vmul.f32 %v413, 1.442695
  %v432 = vpow.pop %v431
  %v433 = vmul.f32 %v414, 1.442695
  %v434 = vpow.pop %v433
  %v435 = vmul.f32 %v415, 1.442695
  %v436 = vpow.pop %v435
  %v437 = vmul.f32 %v416, 1.442695
  %v438 = vpow.pop %v437
  %v439 = vmul.f32 %v417, 1.442695
  %v440 = vpow.pop %v439
  %v441 = vmul.f32 %v418, 1.442695
  %v442 = vpow.pop %v441
  %v443 = vmul.f32 %v419, 1.442695
  %v444 = vpow.pop %v443
  %v445 = vmul.f32 %v420, 1.442695
  %v446 = vpow.pop %v445
  %v447 = vmul.f32 %v421, 1.442695
  %v448 = vpow.pop %v447
  %v449 = vmul.f32 %v422, 1.442695
  %v450 = vpow.pop %v449
  %v451 = vmul.f32 %v423, 1.442695
  %v452 = vpow.pop %v451
  %v453 = vmul.f32 %v424, 1.442695
  %v454 = vpow.pop %v453
  %v455 = vmul.f32 %v425, 1.442695
  %v456 = vpow.pop %v455
  %v457 = vmul.f32 %v426, 1.442695
  %v458 = vpow.pop %v457
  %459 = vadd.xlane.f32.xlu0 %v428
  %v460 = vpop.xlane.xlu0 %459
  %461 = vadd.xlane.f32.xlu0 %v430
  %v462 = vpop.xlane.xlu0 %461
  %463 = vadd.xlane.f32.xlu0 %v432
  %v464 = vpop.xlane.xlu0 %463
  %465 = vadd.xlane.f32.xlu0 %v434
  %v466 = vpop.xlane.xlu0 %465
  %467 = vadd.xlane.f32.xlu0 %v436
  %v468 = vpop.xlane.xlu0 %467
  %469 = vadd.xlane.f32.xlu0 %v438
  %v470 = vpop.xlane.xlu0 %469
  %471 = vadd.xlane.f32.xlu0 %v440
  %v472 = vpop.xlane.xlu0 %471
  %473 = vadd.xlane.f32.xlu0 %v442
  %v474 = vpop.xlane.xlu0 %473
  %475 = vadd.xlane.f32.xlu0 %v444
  %v476 = vpop.xlane.xlu0 %475
  %477 = vadd.xlane.f32.xlu0 %v446
  %v478 = vpop.xlane.xlu0 %477
  %479 = vadd.xlane.f32.xlu0 %v448
  %v480 = vpop.xlane.xlu0 %479
  %481 = vadd.xlane.f32.xlu0 %v450
  %v482 = vpop.xlane.xlu0 %481
  %483 = vadd.xlane.f32.xlu0 %v452
  %v484 = vpop.xlane.xlu0 %483
  %485 = vadd.xlane.f32.xlu0 %v454
  %v486 = vpop.xlane.xlu0 %485
  %487 = vadd.xlane.f32.xlu0 %v456
  %v488 = vpop.xlane.xlu0 %487
  %489 = vadd.xlane.f32.xlu0 %v458
  %v490 = vpop.xlane.xlu0 %489
  %v491 = vrcp.pop %v460
  %v492 = vrcp.pop %v462
  %v493 = vrcp.pop %v464
  %v494 = vrcp.pop %v466
  %v495 = vrcp.pop %v468
  %v496 = vrcp.pop %v470
  %v497 = vrcp.pop %v472
  %v498 = vrcp.pop %v474
  %v499 = vrcp.pop %v476
  %v500 = vrcp.pop %v478
  %v501 = vrcp.pop %v480
  %v502 = vrcp.pop %v482
  %v503 = vrcp.pop %v484
  %v504 = vrcp.pop %v486
  %v505 = vrcp.pop %v488
  %v506 = vrcp.pop %v490
  %v507 = vmul.f32 %v428, %v491
  %v508 = vmul.f32 %v430, %v492
  %v509 = vmul.f32 %v432, %v493
  %v510 = vmul.f32 %v434, %v494
  %v511 = vmul.f32 %v436, %v495
  %v512 = vmul.f32 %v438, %v496
  %v513 = vmul.f32 %v440, %v497
  %v514 = vmul.f32 %v442, %v498
  %v515 = vmul.f32 %v444, %v499
  %v516 = vmul.f32 %v446, %v500
  %v517 = vmul.f32 %v448, %v501
  %v518 = vmul.f32 %v450, %v502
  %v519 = vmul.f32 %v452, %v503
  %v520 = vmul.f32 %v454, %v504
  %v521 = vmul.f32 %v456, %v505
  %v522 = vmul.f32 %v458, %v506
  %v523 = vpack.c.bf16 %v508, %v507
  %v524 = vpack.c.bf16 %v510, %v509
  %v525 = vpack.c.bf16 %v512, %v511
  %v526 = vpack.c.bf16 %v514, %v513
  %v527 = vpack.c.bf16 %v516, %v515
  %v528 = vpack.c.bf16 %v518, %v517
  %v529 = vpack.c.bf16 %v520, %v519
  %v530 = vpack.c.bf16 %v522, %v521
  %531 = vmatprep.subr.bf16.mxu0 0
  %532 = vmatpush1.bf16.msra.mxu0 %v217
  %533 = vmatprep.subr.bf16.mxu0 0
  %534 = vmatpush1.bf16.msra.mxu0 %v218
  %535 = vmatprep.subr.bf16.mxu0 0
  %536 = vmatpush1.bf16.msra.mxu0 %v219
  %537 = vmatprep.subr.bf16.mxu0 0
  %538 = vmatpush1.bf16.msra.mxu0 %v220
  %539 = vmatprep.subr.bf16.mxu0 0
  %540 = vmatpush1.bf16.msra.mxu0 %v221
  %541 = vmatprep.subr.bf16.mxu0 0
  %542 = vmatpush1.bf16.msra.mxu0 %v222
  %543 = vmatprep.subr.bf16.mxu0 0
  %544 = vmatpush1.bf16.msra.mxu0 %v223
  %545 = vmatprep.subr.bf16.mxu0 0
  %546 = vmatpush1.bf16.msra.mxu0 %v224
  %547 = vmatprep.subr.bf16.mxu0 0
  %548 = vmatpush1.bf16.msra.mxu0 0
  %549 = vmatprep.subr.bf16.mxu0 0
  %550 = vmatpush1.bf16.msra.mxu0 0
  %551 = vmatprep.subr.bf16.mxu0 0
  %552 = vmatpush1.bf16.msra.mxu0 0
  %553 = vmatprep.subr.bf16.mxu0 0
  %554 = vmatpush1.bf16.msra.mxu0 0
  %555 = vmatprep.subr.bf16.mxu0 0
  %556 = vmatpush1.bf16.msra.mxu0 0
  %557 = vmatprep.subr.bf16.mxu0 0
  %558 = vmatpush1.bf16.msra.mxu0 0
  %559 = vmatprep.subr.bf16.mxu0 0
  %560 = vmatpush1.bf16.msra.mxu0 0
  %561 = vmatprep.subr.bf16.mxu0 0
  %562 = vmatpush1.bf16.msra.mxu0 0
  %563 = vmatprep.mubr.bf16.mxu0 0
  %564 = vmatmul.mubr.bf16.gmra.mrb[0].mxu0 %v523
  %v565 = vpop.f32.mrb[0].mxu0
  %v566 = vadd.f32 0.0, %v565
  %v567 = vpop.f32.mrb[0].mxu0
  %v568 = vpop.f32.mrb[0].mxu0
  %v569 = vadd.f32 0.0, %v568
  %v570 = vpop.f32.mrb[0].mxu0
  %571 = vmatprep.mubr.bf16.mxu0 0
  %572 = vmatmul.mubr.bf16.gmra.mrb[0].mxu0 %v524
  %v573 = vpop.f32.mrb[0].mxu0
  %v574 = vadd.f32 0.0, %v573
  %v575 = vpop.f32.mrb[0].mxu0
  %v576 = vpop.f32.mrb[0].mxu0
  %v577 = vadd.f32 0.0, %v576
  %v578 = vpop.f32.mrb[0].mxu0
  %579 = vmatprep.mubr.bf16.mxu0 0
  %580 = vmatmul.mubr.bf16.gmra.mrb[0].mxu0 %v525
  %v581 = vpop.f32.mrb[0].mxu0
  %v582 = vadd.f32 0.0, %v581
  %v583 = vpop.f32.mrb[0].mxu0
  %v584 = vpop.f32.mrb[0].mxu0
  %v585 = vadd.f32 0.0, %v584
  %v586 = vpop.f32.mrb[0].mxu0
  %587 = vmatprep.mubr.bf16.mxu0 0
  %588 = vmatmul.mubr.bf16.gmra.mrb[0].mxu0 %v526
  %v589 = vpop.f32.mrb[0].mxu0
  %v590 = vadd.f32 0.0, %v589
  %v591 = vpop.f32.mrb[0].mxu0
  %v592 = vpop.f32.mrb[0].mxu0
  %v593 = vadd.f32 0.0, %v592
  %v594 = vpop.f32.mrb[0].mxu0
  %595 = vmatprep.mubr.bf16.mxu0 0
  %596 = vmatmul.mubr.bf16.gmra.mrb[0].mxu0 %v527
  %v597 = vpop.f32.mrb[0].mxu0
  %v598 = vadd.f32 0.0, %v597
  %v599 = vpop.f32.mrb[0].mxu0
  %v600 = vpop.f32.mrb[0].mxu0
  %v601 = vadd.f32 0.0, %v600
  %v602 = vpop.f32.mrb[0].mxu0
  %603 = vmatprep.mubr.bf16.mxu0 0
  %604 = vmatmul.mubr.bf16.gmra.mrb[0].mxu0 %v528
  %v605 = vpop.f32.mrb[0].mxu0
  %v606 = vadd.f32 0.0, %v605
  %v607 = vpop.f32.mrb[0].mxu0
  %v608 = vpop.f32.mrb[0].mxu0
  %v609 = vadd.f32 0.0, %v608
  %v610 = vpop.f32.mrb[0].mxu0
  %611 = vmatprep.mubr.bf16.mxu0 0
  %612 = vmatmul.mubr.bf16.gmra.mrb[0].mxu0 %v529
  %v613 = vpop.f32.mrb[0].mxu0
  %v614 = vadd.f32 0.0, %v613
  %v615 = vpop.f32.mrb[0].mxu0
  %v616 = vpop.f32.mrb[0].mxu0
  %v617 = vadd.f32 0.0, %v616
  %v618 = vpop.f32.mrb[0].mxu0
  %619 = vmatprep.mubr.bf16.mxu0 0
  %620 = vmatmul.mubr.bf16.gmra.mrb[0].mxu0 %v530
  %v621 = vpop.f32.mrb[0].mxu0
  %v622 = vadd.f32 0.0, %v621
  %v623 = vpop.f32.mrb[0].mxu0
  %v624 = vpop.f32.mrb[0].mxu0
  %v625 = vadd.f32 0.0, %v624
  %v626 = vpop.f32.mrb[0].mxu0
  %627 = vdwg.mxu0
  %v628 = vadd.f32 %v149, %v566
  %v629 = vadd.f32 %v152, %v569
  %v630 = vadd.f32 %v157, %v574
  %v631 = vadd.f32 %v160, %v577
  %v632 = vadd.f32 %v165, %v582
  %v633 = vadd.f32 %v168, %v585
  %v634 = vadd.f32 %v173, %v590
  %v635 = vadd.f32 %v176, %v593
  %v636 = vadd.f32 %v181, %v598
  %v637 = vadd.f32 %v184, %v601
  %v638 = vadd.f32 %v189, %v606
  %v639 = vadd.f32 %v192, %v609
  %v640 = vadd.f32 %v197, %v614
  %v641 = vadd.f32 %v200, %v617
  %v642 = vadd.f32 %v205, %v622
  %v643 = vadd.f32 %v208, %v625
  %v644 = vsel %vm225, %v628, 0.0
  %645 = vadd.xlane.f32.xlu0 %v644
  %v646 = vpop.xlane.xlu0 %645
  %v647 = vsel %vm225, %v629, 0.0
  %648 = vadd.xlane.f32.xlu0 %v647
  %v649 = vpop.xlane.xlu0 %648
  %v650 = vsel %vm225, %v630, 0.0
  %651 = vadd.xlane.f32.xlu0 %v650
  %v652 = vpop.xlane.xlu0 %651
  %v653 = vsel %vm225, %v631, 0.0
  %654 = vadd.xlane.f32.xlu0 %v653
  %v655 = vpop.xlane.xlu0 %654
  %v656 = vsel %vm225, %v632, 0.0
  %657 = vadd.xlane.f32.xlu0 %v656
  %v658 = vpop.xlane.xlu0 %657
  %v659 = vsel %vm225, %v633, 0.0
  %660 = vadd.xlane.f32.xlu0 %v659
  %v661 = vpop.xlane.xlu0 %660
  %v662 = vsel %vm225, %v634, 0.0
  %663 = vadd.xlane.f32.xlu0 %v662
  %v664 = vpop.xlane.xlu0 %663
  %v665 = vsel %vm225, %v635, 0.0
  %666 = vadd.xlane.f32.xlu0 %v665
  %v667 = vpop.xlane.xlu0 %666
  %v668 = vsel %vm225, %v636, 0.0
  %669 = vadd.xlane.f32.xlu0 %v668
  %v670 = vpop.xlane.xlu0 %669
  %v671 = vsel %vm225, %v637, 0.0
  %672 = vadd.xlane.f32.xlu0 %v671
  %v673 = vpop.xlane.xlu0 %672
  %v674 = vsel %vm225, %v638, 0.0
  %675 = vadd.xlane.f32.xlu0 %v674
  %v676 = vpop.xlane.xlu0 %675
  %v677 = vsel %vm225, %v639, 0.0
  %678 = vadd.xlane.f32.xlu0 %v677
  %v679 = vpop.xlane.xlu0 %678
  %v680 = vsel %vm225, %v640, 0.0
  %681 = vadd.xlane.f32.xlu0 %v680
  %v682 = vpop.xlane.xlu0 %681
  %v683 = vsel %vm225, %v641, 0.0
  %684 = vadd.xlane.f32.xlu0 %v683
  %v685 = vpop.xlane.xlu0 %684
  %v686 = vsel %vm225, %v642, 0.0
  %687 = vadd.xlane.f32.xlu0 %v686
  %v688 = vpop.xlane.xlu0 %687
  %v689 = vsel %vm225, %v643, 0.0
  %690 = vadd.xlane.f32.xlu0 %v689
  %v691 = vpop.xlane.xlu0 %690
  %v692 = vrcp.pop 32.0
  %v693 = vmul.f32 %v646, %v692
  %v694 = vmul.f32 %v649, %v692
  %v695 = vmul.f32 %v652, %v692
  %v696 = vmul.f32 %v655, %v692
  %v697 = vmul.f32 %v658, %v692
  %v698 = vmul.f32 %v661, %v692
  %v699 = vmul.f32 %v664, %v692
  %v700 = vmul.f32 %v667, %v692
  %v701 = vmul.f32 %v670, %v692
  %v702 = vmul.f32 %v673, %v692
  %v703 = vmul.f32 %v676, %v692
  %v704 = vmul.f32 %v679, %v692
  %v705 = vmul.f32 %v682, %v692
  %v706 = vmul.f32 %v685, %v692
  %v707 = vmul.f32 %v688, %v692
  %v708 = vmul.f32 %v691, %v692
  %v709 = vsub.f32 %v628, %v693
  %v710 = vsub.f32 %v629, %v694
  %v711 = vsub.f32 %v630, %v695
  %v712 = vsub.f32 %v631, %v696
  %v713 = vsub.f32 %v632, %v697
  %v714 = vsub.f32 %v633, %v698
  %v715 = vsub.f32 %v634, %v699
  %v716 = vsub.f32 %v635, %v700
  %v717 = vsub.f32 %v636, %v701
  %v718 = vsub.f32 %v637, %v702
  %v719 = vsub.f32 %v638, %v703
  %v720 = vsub.f32 %v639, %v704
  %v721 = vsub.f32 %v640, %v705
  %v722 = vsub.f32 %v641, %v706
  %v723 = vsub.f32 %v642, %v707
  %v724 = vsub.f32 %v643, %v708
  %v725 = vmul.f32 %v709, %v709
  %v726 = vmul.f32 %v710, %v710
  %v727 = vmul.f32 %v711, %v711
  %v728 = vmul.f32 %v712, %v712
  %v729 = vmul.f32 %v713, %v713
  %v730 = vmul.f32 %v714, %v714
  %v731 = vmul.f32 %v715, %v715
  %v732 = vmul.f32 %v716, %v716
  %v733 = vmul.f32 %v717, %v717
  %v734 = vmul.f32 %v718, %v718
  %v735 = vmul.f32 %v719, %v719
  %v736 = vmul.f32 %v720, %v720
  %v737 = vmul.f32 %v721, %v721
  %v738 = vmul.f32 %v722, %v722
  %v739 = vmul.f32 %v723, %v723
  %v740 = vmul.f32 %v724, %v724
  %v741 = vsel %vm225, %v725, 0.0
  %742 = vadd.xlane.f32.xlu0 %v741
  %v743 = vpop.xlane.xlu0 %742
  %v744 = vsel %vm225, %v726, 0.0
  %745 = vadd.xlane.f32.xlu0 %v744
  %v746 = vpop.xlane.xlu0 %745
  %v747 = vsel %vm225, %v727, 0.0
  %748 = vadd.xlane.f32.xlu0 %v747
  %v749 = vpop.xlane.xlu0 %748
  %v750 = vsel %vm225, %v728, 0.0
  %751 = vadd.xlane.f32.xlu0 %v750
  %v752 = vpop.xlane.xlu0 %751
  %v753 = vsel %vm225, %v729, 0.0
  %754 = vadd.xlane.f32.xlu0 %v753
  %v755 = vpop.xlane.xlu0 %754
  %v756 = vsel %vm225, %v730, 0.0
  %757 = vadd.xlane.f32.xlu0 %v756
  %v758 = vpop.xlane.xlu0 %757
  %v759 = vsel %vm225, %v731, 0.0
  %760 = vadd.xlane.f32.xlu0 %v759
  %v761 = vpop.xlane.xlu0 %760
  %v762 = vsel %vm225, %v732, 0.0
  %763 = vadd.xlane.f32.xlu0 %v762
  %v764 = vpop.xlane.xlu0 %763
  %v765 = vsel %vm225, %v733, 0.0
  %766 = vadd.xlane.f32.xlu0 %v765
  %v767 = vpop.xlane.xlu0 %766
  %v768 = vsel %vm225, %v734, 0.0
  %769 = vadd.xlane.f32.xlu0 %v768
  %v770 = vpop.xlane.xlu0 %769
  %v771 = vsel %vm225, %v735, 0.0
  %772 = vadd.xlane.f32.xlu0 %v771
  %v773 = vpop.xlane.xlu0 %772
  %v774 = vsel %vm225, %v736, 0.0
  %775 = vadd.xlane.f32.xlu0 %v774
  %v776 = vpop.xlane.xlu0 %775
  %v777 = vsel %vm225, %v737, 0.0
  %778 = vadd.xlane.f32.xlu0 %v777
  %v779 = vpop.xlane.xlu0 %778
  %v780 = vsel %vm225, %v738, 0.0
  %781 = vadd.xlane.f32.xlu0 %v780
  %v782 = vpop.xlane.xlu0 %781
  %v783 = vsel %vm225, %v739, 0.0
  %784 = vadd.xlane.f32.xlu0 %v783
  %v785 = vpop.xlane.xlu0 %784
  %v786 = vsel %vm225, %v740, 0.0
  %787 = vadd.xlane.f32.xlu0 %v786
  %v788 = vpop.xlane.xlu0 %787
  %v789 = vmul.f32 %v743, %v692
  %v790 = vmul.f32 %v746, %v692
  %v791 = vmul.f32 %v749, %v692
  %v792 = vmul.f32 %v752, %v692
  %v793 = vmul.f32 %v755, %v692
  %v794 = vmul.f32 %v758, %v692
  %v795 = vmul.f32 %v761, %v692
  %v796 = vmul.f32 %v764, %v692
  %v797 = vmul.f32 %v767, %v692
  %v798 = vmul.f32 %v770, %v692
  %v799 = vmul.f32 %v773, %v692
  %v800 = vmul.f32 %v776, %v692
  %v801 = vmul.f32 %v779, %v692
  %v802 = vmul.f32 %v782, %v692
  %v803 = vmul.f32 %v785, %v692
  %v804 = vmul.f32 %v788, %v692
  %v805 = vadd.f32 %v789, 1e-05
  %v806 = vadd.f32 %v790, 1e-05
  %v807 = vadd.f32 %v791, 1e-05
  %v808 = vadd.f32 %v792, 1e-05
  %v809 = vadd.f32 %v793, 1e-05
  %v810 = vadd.f32 %v794, 1e-05
  %v811 = vadd.f32 %v795, 1e-05
  %v812 = vadd.f32 %v796, 1e-05
  %v813 = vadd.f32 %v797, 1e-05
  %v814 = vadd.f32 %v798, 1e-05
  %v815 = vadd.f32 %v799, 1e-05
  %v816 = vadd.f32 %v800, 1e-05
  %v817 = vadd.f32 %v801, 1e-05
  %v818 = vadd.f32 %v802, 1e-05
  %v819 = vadd.f32 %v803, 1e-05
  %v820 = vadd.f32 %v804, 1e-05
  %v821 = vrsqrt.pop %v805
  %v822 = vrsqrt.pop %v806
  %v823 = vrsqrt.pop %v807
  %v824 = vrsqrt.pop %v808
  %v825 = vrsqrt.pop %v809
  %v826 = vrsqrt.pop %v810
  %v827 = vrsqrt.pop %v811
  %v828 = vrsqrt.pop %v812
  %v829 = vrsqrt.pop %v813
  %v830 = vrsqrt.pop %v814
  %v831 = vrsqrt.pop %v815
  %v832 = vrsqrt.pop %v816
  %v833 = vrsqrt.pop %v817
  %v834 = vrsqrt.pop %v818
  %v835 = vrsqrt.pop %v819
  %v836 = vrsqrt.pop %v820
  %v837 = vmul.f32 %v709, %v821
  %v838 = vmul.f32 %v710, %v822
  %v839 = vmul.f32 %v711, %v823
  %v840 = vmul.f32 %v712, %v824
  %v841 = vmul.f32 %v713, %v825
  %v842 = vmul.f32 %v714, %v826
  %v843 = vmul.f32 %v715, %v827
  %v844 = vmul.f32 %v716, %v828
  %v845 = vmul.f32 %v717, %v829
  %v846 = vmul.f32 %v718, %v830
  %v847 = vmul.f32 %v719, %v831
  %v848 = vmul.f32 %v720, %v832
  %v849 = vmul.f32 %v721, %v833
  %v850 = vmul.f32 %v722, %v834
  %v851 = vmul.f32 %v723, %v835
  %v852 = vmul.f32 %v724, %v836
  %v853 = vlaneseq
  %v854 = vshrl.u32 %v853, 7
  %v855 = vsub.s32 0, %v854
  %v856 = vrot.slane %v211, %v855
  %v857 = vmul.f32 %v837, %v856
  %v858 = vmul.f32 %v838, %v856
  %v859 = vmul.f32 %v839, %v856
  %v860 = vmul.f32 %v840, %v856
  %v861 = vmul.f32 %v841, %v856
  %v862 = vmul.f32 %v842, %v856
  %v863 = vmul.f32 %v843, %v856
  %v864 = vmul.f32 %v844, %v856
  %v865 = vmul.f32 %v845, %v856
  %v866 = vmul.f32 %v846, %v856
  %v867 = vmul.f32 %v847, %v856
  %v868 = vmul.f32 %v848, %v856
  %v869 = vmul.f32 %v849, %v856
  %v870 = vmul.f32 %v850, %v856
  %v871 = vmul.f32 %v851, %v856
  %v872 = vmul.f32 %v852, %v856
  %v873 = vlaneseq
  %v874 = vshrl.u32 %v873, 7
  %v875 = vsub.s32 0, %v874
  %v876 = vrot.slane %v212, %v875
  %v877 = vadd.f32 %v857, %v876
  %v878 = vadd.f32 %v858, %v876
  %v879 = vadd.f32 %v859, %v876
  %v880 = vadd.f32 %v860, %v876
  %v881 = vadd.f32 %v861, %v876
  %v882 = vadd.f32 %v862, %v876
  %v883 = vadd.f32 %v863, %v876
  %v884 = vadd.f32 %v864, %v876
  %v885 = vadd.f32 %v865, %v876
  %v886 = vadd.f32 %v866, %v876
  %v887 = vadd.f32 %v867, %v876
  %v888 = vadd.f32 %v868, %v876
  %v889 = vadd.f32 %v869, %v876
  %v890 = vadd.f32 %v870, %v876
  %v891 = vadd.f32 %v871, %v876
  %v892 = vadd.f32 %v872, %v876
  %v893 = vpack.c.bf16 %v878, %v877
  %v894 = vpack.c.bf16 %v880, %v879
  %v895 = vpack.c.bf16 %v882, %v881
  %v896 = vpack.c.bf16 %v884, %v883
  %v897 = vpack.c.bf16 %v886, %v885
  %v898 = vpack.c.bf16 %v888, %v887
  %v899 = vpack.c.bf16 %v890, %v889
  %v900 = vpack.c.bf16 %v892, %v891
  %v901 = vld [vmem:[%s5] sm:$0xf]
  %v902 = vld [vmem:[%s5 + $0x4] sm:$0xf]
  %v903 = vld [vmem:[%s5 + $0x8] sm:$0xf]
  %v904 = vld [vmem:[%s5 + $0xc] sm:$0xf]
  %v905 = vlaneseq
  %v906 = vshrl.u32 %v905, 7
  %v907 = vsub.s32 0, %v906
  %v908 = vrot.slane %v216, %v907
  %v913 = vunpack.c.l.b16 %v901
  %v914 = vunpack.c.l.b16 %v902
  %v915 = vunpack.c.l.b16 %v903
  %v916 = vunpack.c.l.b16 %v904
  %v917 = vpack.c.b16 %v914, %v913
  %v918 = vpack.c.b16 %v916, %v915
  %v922 = vsel %vm225, %v893, 0
  %v925 = vsel %vm225, %v894, 0
  %v928 = vsel %vm225, %v895, 0
  %v931 = vsel %vm225, %v896, 0
  %v934 = vsel %vm225, %v897, 0
  %v937 = vsel %vm225, %v898, 0
  %v940 = vsel %vm225, %v899, 0
  %v943 = vsel %vm225, %v900, 0
  %945 = vmatprep.subr.bf16.mxu0 0
  %946 = vmatpush1.bf16.msra.mxu0 %v917
  %947 = vmatprep.subr.bf16.mxu0 0
  %948 = vmatpush1.bf16.msra.mxu0 %v918
  %949 = vmatprep.subr.bf16.mxu0 0
  %950 = vmatpush1.bf16.msra.mxu0 0
  %951 = vmatprep.subr.bf16.mxu0 0
  %952 = vmatpush1.bf16.msra.mxu0 0
  %953 = vmatprep.subr.bf16.mxu0 0
  %954 = vmatpush1.bf16.msra.mxu0 0
  %955 = vmatprep.subr.bf16.mxu0 0
  %956 = vmatpush1.bf16.msra.mxu0 0
  %957 = vmatprep.subr.bf16.mxu0 0
  %958 = vmatpush1.bf16.msra.mxu0 0
  %959 = vmatprep.subr.bf16.mxu0 0
  %960 = vmatpush1.bf16.msra.mxu0 0
  %961 = vmatprep.subr.bf16.mxu0 0
  %962 = vmatpush1.bf16.msra.mxu0 0
  %963 = vmatprep.subr.bf16.mxu0 0
  %964 = vmatpush1.bf16.msra.mxu0 0
  %965 = vmatprep.subr.bf16.mxu0 0
  %966 = vmatpush1.bf16.msra.mxu0 0
  %967 = vmatprep.subr.bf16.mxu0 0
  %968 = vmatpush1.bf16.msra.mxu0 0
  %969 = vmatprep.subr.bf16.mxu0 0
  %970 = vmatpush1.bf16.msra.mxu0 0
  %971 = vmatprep.subr.bf16.mxu0 0
  %972 = vmatpush1.bf16.msra.mxu0 0
  %973 = vmatprep.subr.bf16.mxu0 0
  %974 = vmatpush1.bf16.msra.mxu0 0
  %975 = vmatprep.subr.bf16.mxu0 0
  %976 = vmatpush1.bf16.msra.mxu0 0
  %977 = vmatprep.mubr.bf16.mxu0 0
  %978 = vmatmul.mubr.bf16.gmra.mrb[0].mxu0 %v922
  %v979 = vpop.f32.mrb[0].mxu0
  %v980 = vadd.f32 %v908, %v979
  %v981 = vpop.f32.mrb[0].mxu0
  %v982 = vpop.f32.mrb[0].mxu0
  %v983 = vadd.f32 %v908, %v982
  %v984 = vpop.f32.mrb[0].mxu0
  %985 = vmatprep.mubr.bf16.mxu0 0
  %986 = vmatmul.mubr.bf16.gmra.mrb[0].mxu0 %v925
  %v987 = vpop.f32.mrb[0].mxu0
  %v988 = vadd.f32 %v908, %v987
  %v989 = vpop.f32.mrb[0].mxu0
  %v990 = vpop.f32.mrb[0].mxu0
  %v991 = vadd.f32 %v908, %v990
  %v992 = vpop.f32.mrb[0].mxu0
  %993 = vmatprep.mubr.bf16.mxu0 0
  %994 = vmatmul.mubr.bf16.gmra.mrb[0].mxu0 %v928
  %v995 = vpop.f32.mrb[0].mxu0
  %v996 = vadd.f32 %v908, %v995
  %v997 = vpop.f32.mrb[0].mxu0
  %v998 = vpop.f32.mrb[0].mxu0
  %v999 = vadd.f32 %v908, %v998
  %v1000 = vpop.f32.mrb[0].mxu0
  %1001 = vmatprep.mubr.bf16.mxu0 0
  %1002 = vmatmul.mubr.bf16.gmra.mrb[0].mxu0 %v931
  %v1003 = vpop.f32.mrb[0].mxu0
  %v1004 = vadd.f32 %v908, %v1003
  %v1005 = vpop.f32.mrb[0].mxu0
  %v1006 = vpop.f32.mrb[0].mxu0
  %v1007 = vadd.f32 %v908, %v1006
  %v1008 = vpop.f32.mrb[0].mxu0
  %1009 = vmatprep.mubr.bf16.mxu0 0
  %1010 = vmatmul.mubr.bf16.gmra.mrb[0].mxu0 %v934
  %v1011 = vpop.f32.mrb[0].mxu0
  %v1012 = vadd.f32 %v908, %v1011
  %v1013 = vpop.f32.mrb[0].mxu0
  %v1014 = vpop.f32.mrb[0].mxu0
  %v1015 = vadd.f32 %v908, %v1014
  %v1016 = vpop.f32.mrb[0].mxu0
  %1017 = vmatprep.mubr.bf16.mxu0 0
  %1018 = vmatmul.mubr.bf16.gmra.mrb[0].mxu0 %v937
  %v1019 = vpop.f32.mrb[0].mxu0
  %v1020 = vadd.f32 %v908, %v1019
  %v1021 = vpop.f32.mrb[0].mxu0
  %v1022 = vpop.f32.mrb[0].mxu0
  %v1023 = vadd.f32 %v908, %v1022
  %v1024 = vpop.f32.mrb[0].mxu0
  %1025 = vmatprep.mubr.bf16.mxu0 0
  %1026 = vmatmul.mubr.bf16.gmra.mrb[0].mxu0 %v940
  %v1027 = vpop.f32.mrb[0].mxu0
  %v1028 = vadd.f32 %v908, %v1027
  %v1029 = vpop.f32.mrb[0].mxu0
  %v1030 = vpop.f32.mrb[0].mxu0
  %v1031 = vadd.f32 %v908, %v1030
  %v1032 = vpop.f32.mrb[0].mxu0
  %1033 = vmatprep.mubr.bf16.mxu0 0
  %1034 = vmatmul.mubr.bf16.gmra.mrb[0].mxu0 %v943
  %v1035 = vpop.f32.mrb[0].mxu0
  %v1036 = vadd.f32 %v908, %v1035
  %v1037 = vpop.f32.mrb[0].mxu0
  %v1038 = vpop.f32.mrb[0].mxu0
  %v1039 = vadd.f32 %v908, %v1038
  %v1040 = vpop.f32.mrb[0].mxu0
  %1041 = vdwg.mxu0
  %v1042 = vmax.f32 %v980, 0.0
  %v1043 = vmax.f32 %v983, 0.0
  %v1044 = vmax.f32 %v988, 0.0
  %v1045 = vmax.f32 %v991, 0.0
  %v1046 = vmax.f32 %v996, 0.0
  %v1047 = vmax.f32 %v999, 0.0
  %v1048 = vmax.f32 %v1004, 0.0
  %v1049 = vmax.f32 %v1007, 0.0
  %v1050 = vmax.f32 %v1012, 0.0
  %v1051 = vmax.f32 %v1015, 0.0
  %v1052 = vmax.f32 %v1020, 0.0
  %v1053 = vmax.f32 %v1023, 0.0
  %v1054 = vmax.f32 %v1028, 0.0
  %v1055 = vmax.f32 %v1031, 0.0
  %v1056 = vmax.f32 %v1036, 0.0
  %v1057 = vmax.f32 %v1039, 0.0
  %v1058 = vpack.c.bf16 %v1043, %v1042
  %v1059 = vpack.c.bf16 %v1045, %v1044
  %v1060 = vpack.c.bf16 %v1047, %v1046
  %v1061 = vpack.c.bf16 %v1049, %v1048
  %v1062 = vpack.c.bf16 %v1051, %v1050
  %v1063 = vpack.c.bf16 %v1053, %v1052
  %v1064 = vpack.c.bf16 %v1055, %v1054
  %v1065 = vpack.c.bf16 %v1057, %v1056
  %v1066 = vld [vmem:[%s6] sm:$0xf]
  %v1067 = vld [vmem:[%s6 + $0x4] sm:$0xf]
  %v1068 = vld [vmem:[%s6 + $0x8] sm:$0xf]
  %v1069 = vld [vmem:[%s6 + $0xc] sm:$0xf]
  %v1070 = vld [vmem:[%s6 + $0x10] sm:$0xf]
  %v1071 = vld [vmem:[%s6 + $0x14] sm:$0xf]
  %v1072 = vld [vmem:[%s6 + $0x18] sm:$0xf]
  %v1073 = vld [vmem:[%s6 + $0x1c] sm:$0xf]
  %v1074 = vld [vmem:[%s6 + $0x20] sm:$0xf]
  %v1075 = vld [vmem:[%s6 + $0x24] sm:$0xf]
  %v1076 = vld [vmem:[%s6 + $0x28] sm:$0xf]
  %v1077 = vld [vmem:[%s6 + $0x2c] sm:$0xf]
  %v1078 = vld [vmem:[%s6 + $0x30] sm:$0xf]
  %v1079 = vld [vmem:[%s6 + $0x34] sm:$0xf]
  %v1080 = vld [vmem:[%s6 + $0x38] sm:$0xf]
  %v1081 = vld [vmem:[%s6 + $0x3c] sm:$0xf]
  %v1082 = vlaneseq
  %v1083 = vshrl.u32 %v1082, 7
  %v1084 = vsub.s32 0, %v1083
  %v1085 = vrot.slane %v215, %v1084
  %v1102 = vunpack.c.l.b16 %v1066
  %v1103 = vunpack.c.l.b16 %v1067
  %v1104 = vunpack.c.l.b16 %v1068
  %v1105 = vunpack.c.l.b16 %v1069
  %v1106 = vunpack.c.l.b16 %v1070
  %v1107 = vunpack.c.l.b16 %v1071
  %v1108 = vunpack.c.l.b16 %v1072
  %v1109 = vunpack.c.l.b16 %v1073
  %v1110 = vunpack.c.l.b16 %v1074
  %v1111 = vunpack.c.l.b16 %v1075
  %v1112 = vunpack.c.l.b16 %v1076
  %v1113 = vunpack.c.l.b16 %v1077
  %v1114 = vunpack.c.l.b16 %v1078
  %v1115 = vunpack.c.l.b16 %v1079
  %v1116 = vunpack.c.l.b16 %v1080
  %v1117 = vunpack.c.l.b16 %v1081
  %v1118 = vpack.c.b16 %v1103, %v1102
  %v1119 = vpack.c.b16 %v1105, %v1104
  %v1120 = vpack.c.b16 %v1107, %v1106
  %v1121 = vpack.c.b16 %v1109, %v1108
  %v1122 = vpack.c.b16 %v1111, %v1110
  %v1123 = vpack.c.b16 %v1113, %v1112
  %v1124 = vpack.c.b16 %v1115, %v1114
  %v1125 = vpack.c.b16 %v1117, %v1116
  %1134 = vmatprep.subr.bf16.mxu0 0
  %1135 = vmatpush1.bf16.msra.mxu0 %v1118
  %1136 = vmatprep.subr.bf16.mxu0 0
  %1137 = vmatpush1.bf16.msra.mxu0 %v1119
  %1138 = vmatprep.subr.bf16.mxu0 0
  %1139 = vmatpush1.bf16.msra.mxu0 %v1120
  %1140 = vmatprep.subr.bf16.mxu0 0
  %1141 = vmatpush1.bf16.msra.mxu0 %v1121
  %1142 = vmatprep.subr.bf16.mxu0 0
  %1143 = vmatpush1.bf16.msra.mxu0 %v1122
  %1144 = vmatprep.subr.bf16.mxu0 0
  %1145 = vmatpush1.bf16.msra.mxu0 %v1123
  %1146 = vmatprep.subr.bf16.mxu0 0
  %1147 = vmatpush1.bf16.msra.mxu0 %v1124
  %1148 = vmatprep.subr.bf16.mxu0 0
  %1149 = vmatpush1.bf16.msra.mxu0 %v1125
  %1150 = vmatprep.subr.bf16.mxu0 0
  %1151 = vmatpush1.bf16.msra.mxu0 0
  %1152 = vmatprep.subr.bf16.mxu0 0
  %1153 = vmatpush1.bf16.msra.mxu0 0
  %1154 = vmatprep.subr.bf16.mxu0 0
  %1155 = vmatpush1.bf16.msra.mxu0 0
  %1156 = vmatprep.subr.bf16.mxu0 0
  %1157 = vmatpush1.bf16.msra.mxu0 0
  %1158 = vmatprep.subr.bf16.mxu0 0
  %1159 = vmatpush1.bf16.msra.mxu0 0
  %1160 = vmatprep.subr.bf16.mxu0 0
  %1161 = vmatpush1.bf16.msra.mxu0 0
  %1162 = vmatprep.subr.bf16.mxu0 0
  %1163 = vmatpush1.bf16.msra.mxu0 0
  %1164 = vmatprep.subr.bf16.mxu0 0
  %1165 = vmatpush1.bf16.msra.mxu0 0
  %1166 = vmatprep.mubr.bf16.mxu0 0
  %1167 = vmatmul.mubr.bf16.gmra.mrb[0].mxu0 %v1058
  %v1168 = vpop.f32.mrb[0].mxu0
  %v1169 = vadd.f32 %v1085, %v1168
  %v1170 = vpop.f32.mrb[0].mxu0
  %v1171 = vpop.f32.mrb[0].mxu0
  %v1172 = vadd.f32 %v1085, %v1171
  %v1173 = vpop.f32.mrb[0].mxu0
  %1174 = vmatprep.mubr.bf16.mxu0 0
  %1175 = vmatmul.mubr.bf16.gmra.mrb[0].mxu0 %v1059
  %v1176 = vpop.f32.mrb[0].mxu0
  %v1177 = vadd.f32 %v1085, %v1176
  %v1178 = vpop.f32.mrb[0].mxu0
  %v1179 = vpop.f32.mrb[0].mxu0
  %v1180 = vadd.f32 %v1085, %v1179
  %v1181 = vpop.f32.mrb[0].mxu0
  %1182 = vmatprep.mubr.bf16.mxu0 0
  %1183 = vmatmul.mubr.bf16.gmra.mrb[0].mxu0 %v1060
  %v1184 = vpop.f32.mrb[0].mxu0
  %v1185 = vadd.f32 %v1085, %v1184
  %v1186 = vpop.f32.mrb[0].mxu0
  %v1187 = vpop.f32.mrb[0].mxu0
  %v1188 = vadd.f32 %v1085, %v1187
  %v1189 = vpop.f32.mrb[0].mxu0
  %1190 = vmatprep.mubr.bf16.mxu0 0
  %1191 = vmatmul.mubr.bf16.gmra.mrb[0].mxu0 %v1061
  %v1192 = vpop.f32.mrb[0].mxu0
  %v1193 = vadd.f32 %v1085, %v1192
  %v1194 = vpop.f32.mrb[0].mxu0
  %v1195 = vpop.f32.mrb[0].mxu0
  %v1196 = vadd.f32 %v1085, %v1195
  %v1197 = vpop.f32.mrb[0].mxu0
  %1198 = vmatprep.mubr.bf16.mxu0 0
  %1199 = vmatmul.mubr.bf16.gmra.mrb[0].mxu0 %v1062
  %v1200 = vpop.f32.mrb[0].mxu0
  %v1201 = vadd.f32 %v1085, %v1200
  %v1202 = vpop.f32.mrb[0].mxu0
  %v1203 = vpop.f32.mrb[0].mxu0
  %v1204 = vadd.f32 %v1085, %v1203
  %v1205 = vpop.f32.mrb[0].mxu0
  %1206 = vmatprep.mubr.bf16.mxu0 0
  %1207 = vmatmul.mubr.bf16.gmra.mrb[0].mxu0 %v1063
  %v1208 = vpop.f32.mrb[0].mxu0
  %v1209 = vadd.f32 %v1085, %v1208
  %v1210 = vpop.f32.mrb[0].mxu0
  %v1211 = vpop.f32.mrb[0].mxu0
  %v1212 = vadd.f32 %v1085, %v1211
  %v1213 = vpop.f32.mrb[0].mxu0
  %1214 = vmatprep.mubr.bf16.mxu0 0
  %1215 = vmatmul.mubr.bf16.gmra.mrb[0].mxu0 %v1064
  %v1216 = vpop.f32.mrb[0].mxu0
  %v1217 = vadd.f32 %v1085, %v1216
  %v1218 = vpop.f32.mrb[0].mxu0
  %v1219 = vpop.f32.mrb[0].mxu0
  %v1220 = vadd.f32 %v1085, %v1219
  %v1221 = vpop.f32.mrb[0].mxu0
  %1222 = vmatprep.mubr.bf16.mxu0 0
  %1223 = vmatmul.mubr.bf16.gmra.mrb[0].mxu0 %v1065
  %v1224 = vpop.f32.mrb[0].mxu0
  %v1225 = vadd.f32 %v1085, %v1224
  %v1226 = vpop.f32.mrb[0].mxu0
  %v1227 = vpop.f32.mrb[0].mxu0
  %v1228 = vadd.f32 %v1085, %v1227
  %v1229 = vpop.f32.mrb[0].mxu0
  %1230 = vdwg.mxu0
  %v1231 = vadd.f32 %v877, %v1169
  %v1232 = vadd.f32 %v878, %v1172
  %v1233 = vadd.f32 %v879, %v1177
  %v1234 = vadd.f32 %v880, %v1180
  %v1235 = vadd.f32 %v881, %v1185
  %v1236 = vadd.f32 %v882, %v1188
  %v1237 = vadd.f32 %v883, %v1193
  %v1238 = vadd.f32 %v884, %v1196
  %v1239 = vadd.f32 %v885, %v1201
  %v1240 = vadd.f32 %v886, %v1204
  %v1241 = vadd.f32 %v887, %v1209
  %v1242 = vadd.f32 %v888, %v1212
  %v1243 = vadd.f32 %v889, %v1217
  %v1244 = vadd.f32 %v890, %v1220
  %v1245 = vadd.f32 %v891, %v1225
  %v1246 = vadd.f32 %v892, %v1228
  %v1247 = vsel %vm225, %v1231, 0.0
  %1248 = vadd.xlane.f32.xlu0 %v1247
  %v1249 = vpop.xlane.xlu0 %1248
  %v1250 = vsel %vm225, %v1232, 0.0
  %1251 = vadd.xlane.f32.xlu0 %v1250
  %v1252 = vpop.xlane.xlu0 %1251
  %v1253 = vsel %vm225, %v1233, 0.0
  %1254 = vadd.xlane.f32.xlu0 %v1253
  %v1255 = vpop.xlane.xlu0 %1254
  %v1256 = vsel %vm225, %v1234, 0.0
  %1257 = vadd.xlane.f32.xlu0 %v1256
  %v1258 = vpop.xlane.xlu0 %1257
  %v1259 = vsel %vm225, %v1235, 0.0
  %1260 = vadd.xlane.f32.xlu0 %v1259
  %v1261 = vpop.xlane.xlu0 %1260
  %v1262 = vsel %vm225, %v1236, 0.0
  %1263 = vadd.xlane.f32.xlu0 %v1262
  %v1264 = vpop.xlane.xlu0 %1263
  %v1265 = vsel %vm225, %v1237, 0.0
  %1266 = vadd.xlane.f32.xlu0 %v1265
  %v1267 = vpop.xlane.xlu0 %1266
  %v1268 = vsel %vm225, %v1238, 0.0
  %1269 = vadd.xlane.f32.xlu0 %v1268
  %v1270 = vpop.xlane.xlu0 %1269
  %v1271 = vsel %vm225, %v1239, 0.0
  %1272 = vadd.xlane.f32.xlu0 %v1271
  %v1273 = vpop.xlane.xlu0 %1272
  %v1274 = vsel %vm225, %v1240, 0.0
  %1275 = vadd.xlane.f32.xlu0 %v1274
  %v1276 = vpop.xlane.xlu0 %1275
  %v1277 = vsel %vm225, %v1241, 0.0
  %1278 = vadd.xlane.f32.xlu0 %v1277
  %v1279 = vpop.xlane.xlu0 %1278
  %v1280 = vsel %vm225, %v1242, 0.0
  %1281 = vadd.xlane.f32.xlu0 %v1280
  %v1282 = vpop.xlane.xlu0 %1281
  %v1283 = vsel %vm225, %v1243, 0.0
  %1284 = vadd.xlane.f32.xlu0 %v1283
  %v1285 = vpop.xlane.xlu0 %1284
  %v1286 = vsel %vm225, %v1244, 0.0
  %1287 = vadd.xlane.f32.xlu0 %v1286
  %v1288 = vpop.xlane.xlu0 %1287
  %v1289 = vsel %vm225, %v1245, 0.0
  %1290 = vadd.xlane.f32.xlu0 %v1289
  %v1291 = vpop.xlane.xlu0 %1290
  %v1292 = vsel %vm225, %v1246, 0.0
  %1293 = vadd.xlane.f32.xlu0 %v1292
  %v1294 = vpop.xlane.xlu0 %1293
  %v1295 = vmul.f32 %v1249, %v692
  %v1296 = vmul.f32 %v1252, %v692
  %v1297 = vmul.f32 %v1255, %v692
  %v1298 = vmul.f32 %v1258, %v692
  %v1299 = vmul.f32 %v1261, %v692
  %v1300 = vmul.f32 %v1264, %v692
  %v1301 = vmul.f32 %v1267, %v692
  %v1302 = vmul.f32 %v1270, %v692
  %v1303 = vmul.f32 %v1273, %v692
  %v1304 = vmul.f32 %v1276, %v692
  %v1305 = vmul.f32 %v1279, %v692
  %v1306 = vmul.f32 %v1282, %v692
  %v1307 = vmul.f32 %v1285, %v692
  %v1308 = vmul.f32 %v1288, %v692
  %v1309 = vmul.f32 %v1291, %v692
  %v1310 = vmul.f32 %v1294, %v692
  %v1311 = vsub.f32 %v1231, %v1295
  %v1312 = vsub.f32 %v1232, %v1296
  %v1313 = vsub.f32 %v1233, %v1297
  %v1314 = vsub.f32 %v1234, %v1298
  %v1315 = vsub.f32 %v1235, %v1299
  %v1316 = vsub.f32 %v1236, %v1300
  %v1317 = vsub.f32 %v1237, %v1301
  %v1318 = vsub.f32 %v1238, %v1302
  %v1319 = vsub.f32 %v1239, %v1303
  %v1320 = vsub.f32 %v1240, %v1304
  %v1321 = vsub.f32 %v1241, %v1305
  %v1322 = vsub.f32 %v1242, %v1306
  %v1323 = vsub.f32 %v1243, %v1307
  %v1324 = vsub.f32 %v1244, %v1308
  %v1325 = vsub.f32 %v1245, %v1309
  %v1326 = vsub.f32 %v1246, %v1310
  %v1327 = vmul.f32 %v1311, %v1311
  %v1328 = vmul.f32 %v1312, %v1312
  %v1329 = vmul.f32 %v1313, %v1313
  %v1330 = vmul.f32 %v1314, %v1314
  %v1331 = vmul.f32 %v1315, %v1315
  %v1332 = vmul.f32 %v1316, %v1316
  %v1333 = vmul.f32 %v1317, %v1317
  %v1334 = vmul.f32 %v1318, %v1318
  %v1335 = vmul.f32 %v1319, %v1319
  %v1336 = vmul.f32 %v1320, %v1320
  %v1337 = vmul.f32 %v1321, %v1321
  %v1338 = vmul.f32 %v1322, %v1322
  %v1339 = vmul.f32 %v1323, %v1323
  %v1340 = vmul.f32 %v1324, %v1324
  %v1341 = vmul.f32 %v1325, %v1325
  %v1342 = vmul.f32 %v1326, %v1326
  %v1343 = vsel %vm225, %v1327, 0.0
  %1344 = vadd.xlane.f32.xlu0 %v1343
  %v1345 = vpop.xlane.xlu0 %1344
  %v1346 = vsel %vm225, %v1328, 0.0
  %1347 = vadd.xlane.f32.xlu0 %v1346
  %v1348 = vpop.xlane.xlu0 %1347
  %v1349 = vsel %vm225, %v1329, 0.0
  %1350 = vadd.xlane.f32.xlu0 %v1349
  %v1351 = vpop.xlane.xlu0 %1350
  %v1352 = vsel %vm225, %v1330, 0.0
  %1353 = vadd.xlane.f32.xlu0 %v1352
  %v1354 = vpop.xlane.xlu0 %1353
  %v1355 = vsel %vm225, %v1331, 0.0
  %1356 = vadd.xlane.f32.xlu0 %v1355
  %v1357 = vpop.xlane.xlu0 %1356
  %v1358 = vsel %vm225, %v1332, 0.0
  %1359 = vadd.xlane.f32.xlu0 %v1358
  %v1360 = vpop.xlane.xlu0 %1359
  %v1361 = vsel %vm225, %v1333, 0.0
  %1362 = vadd.xlane.f32.xlu0 %v1361
  %v1363 = vpop.xlane.xlu0 %1362
  %v1364 = vsel %vm225, %v1334, 0.0
  %1365 = vadd.xlane.f32.xlu0 %v1364
  %v1366 = vpop.xlane.xlu0 %1365
  %v1367 = vsel %vm225, %v1335, 0.0
  %1368 = vadd.xlane.f32.xlu0 %v1367
  %v1369 = vpop.xlane.xlu0 %1368
  %v1370 = vsel %vm225, %v1336, 0.0
  %1371 = vadd.xlane.f32.xlu0 %v1370
  %v1372 = vpop.xlane.xlu0 %1371
  %v1373 = vsel %vm225, %v1337, 0.0
  %1374 = vadd.xlane.f32.xlu0 %v1373
  %v1375 = vpop.xlane.xlu0 %1374
  %v1376 = vsel %vm225, %v1338, 0.0
  %1377 = vadd.xlane.f32.xlu0 %v1376
  %v1378 = vpop.xlane.xlu0 %1377
  %v1379 = vsel %vm225, %v1339, 0.0
  %1380 = vadd.xlane.f32.xlu0 %v1379
  %v1381 = vpop.xlane.xlu0 %1380
  %v1382 = vsel %vm225, %v1340, 0.0
  %1383 = vadd.xlane.f32.xlu0 %v1382
  %v1384 = vpop.xlane.xlu0 %1383
  %v1385 = vsel %vm225, %v1341, 0.0
  %1386 = vadd.xlane.f32.xlu0 %v1385
  %v1387 = vpop.xlane.xlu0 %1386
  %v1388 = vsel %vm225, %v1342, 0.0
  %1389 = vadd.xlane.f32.xlu0 %v1388
  %v1390 = vpop.xlane.xlu0 %1389
  %v1391 = vmul.f32 %v1345, %v692
  %v1392 = vmul.f32 %v1348, %v692
  %v1393 = vmul.f32 %v1351, %v692
  %v1394 = vmul.f32 %v1354, %v692
  %v1395 = vmul.f32 %v1357, %v692
  %v1396 = vmul.f32 %v1360, %v692
  %v1397 = vmul.f32 %v1363, %v692
  %v1398 = vmul.f32 %v1366, %v692
  %v1399 = vmul.f32 %v1369, %v692
  %v1400 = vmul.f32 %v1372, %v692
  %v1401 = vmul.f32 %v1375, %v692
  %v1402 = vmul.f32 %v1378, %v692
  %v1403 = vmul.f32 %v1381, %v692
  %v1404 = vmul.f32 %v1384, %v692
  %v1405 = vmul.f32 %v1387, %v692
  %v1406 = vmul.f32 %v1390, %v692
  %v1407 = vadd.f32 %v1391, 1e-05
  %v1408 = vadd.f32 %v1392, 1e-05
  %v1409 = vadd.f32 %v1393, 1e-05
  %v1410 = vadd.f32 %v1394, 1e-05
  %v1411 = vadd.f32 %v1395, 1e-05
  %v1412 = vadd.f32 %v1396, 1e-05
  %v1413 = vadd.f32 %v1397, 1e-05
  %v1414 = vadd.f32 %v1398, 1e-05
  %v1415 = vadd.f32 %v1399, 1e-05
  %v1416 = vadd.f32 %v1400, 1e-05
  %v1417 = vadd.f32 %v1401, 1e-05
  %v1418 = vadd.f32 %v1402, 1e-05
  %v1419 = vadd.f32 %v1403, 1e-05
  %v1420 = vadd.f32 %v1404, 1e-05
  %v1421 = vadd.f32 %v1405, 1e-05
  %v1422 = vadd.f32 %v1406, 1e-05
  %v1423 = vrsqrt.pop %v1407
  %v1424 = vrsqrt.pop %v1408
  %v1425 = vrsqrt.pop %v1409
  %v1426 = vrsqrt.pop %v1410
  %v1427 = vrsqrt.pop %v1411
  %v1428 = vrsqrt.pop %v1412
  %v1429 = vrsqrt.pop %v1413
  %v1430 = vrsqrt.pop %v1414
  %v1431 = vrsqrt.pop %v1415
  %v1432 = vrsqrt.pop %v1416
  %v1433 = vrsqrt.pop %v1417
  %v1434 = vrsqrt.pop %v1418
  %v1435 = vrsqrt.pop %v1419
  %v1436 = vrsqrt.pop %v1420
  %v1437 = vrsqrt.pop %v1421
  %v1438 = vrsqrt.pop %v1422
  %v1439 = vmul.f32 %v1311, %v1423
  %v1440 = vmul.f32 %v1312, %v1424
  %v1441 = vmul.f32 %v1313, %v1425
  %v1442 = vmul.f32 %v1314, %v1426
  %v1443 = vmul.f32 %v1315, %v1427
  %v1444 = vmul.f32 %v1316, %v1428
  %v1445 = vmul.f32 %v1317, %v1429
  %v1446 = vmul.f32 %v1318, %v1430
  %v1447 = vmul.f32 %v1319, %v1431
  %v1448 = vmul.f32 %v1320, %v1432
  %v1449 = vmul.f32 %v1321, %v1433
  %v1450 = vmul.f32 %v1322, %v1434
  %v1451 = vmul.f32 %v1323, %v1435
  %v1452 = vmul.f32 %v1324, %v1436
  %v1453 = vmul.f32 %v1325, %v1437
  %v1454 = vmul.f32 %v1326, %v1438
  %v1455 = vlaneseq
  %v1456 = vshrl.u32 %v1455, 7
  %v1457 = vsub.s32 0, %v1456
  %v1458 = vrot.slane %v213, %v1457
  %v1459 = vmul.f32 %v1439, %v1458
  %v1460 = vmul.f32 %v1440, %v1458
  %v1461 = vmul.f32 %v1441, %v1458
  %v1462 = vmul.f32 %v1442, %v1458
  %v1463 = vmul.f32 %v1443, %v1458
  %v1464 = vmul.f32 %v1444, %v1458
  %v1465 = vmul.f32 %v1445, %v1458
  %v1466 = vmul.f32 %v1446, %v1458
  %v1467 = vmul.f32 %v1447, %v1458
  %v1468 = vmul.f32 %v1448, %v1458
  %v1469 = vmul.f32 %v1449, %v1458
  %v1470 = vmul.f32 %v1450, %v1458
  %v1471 = vmul.f32 %v1451, %v1458
  %v1472 = vmul.f32 %v1452, %v1458
  %v1473 = vmul.f32 %v1453, %v1458
  %v1474 = vmul.f32 %v1454, %v1458
  %v1475 = vlaneseq
  %v1476 = vshrl.u32 %v1475, 7
  %v1477 = vsub.s32 0, %v1476
  %v1478 = vrot.slane %v214, %v1477
  %v1479 = vadd.f32 %v1459, %v1478
  %v1480 = vadd.f32 %v1460, %v1478
  %v1481 = vadd.f32 %v1461, %v1478
  %v1482 = vadd.f32 %v1462, %v1478
  %v1483 = vadd.f32 %v1463, %v1478
  %v1484 = vadd.f32 %v1464, %v1478
  %v1485 = vadd.f32 %v1465, %v1478
  %v1486 = vadd.f32 %v1466, %v1478
  %v1487 = vadd.f32 %v1467, %v1478
  %v1488 = vadd.f32 %v1468, %v1478
  %v1489 = vadd.f32 %v1469, %v1478
  %v1490 = vadd.f32 %v1470, %v1478
  %v1491 = vadd.f32 %v1471, %v1478
  %v1492 = vadd.f32 %v1472, %v1478
  %v1493 = vadd.f32 %v1473, %v1478
  %v1494 = vadd.f32 %v1474, %v1478
  %v1495 = vld [vmem:[%s9 + $0x8] sm:$0x1]
  %v1496 = vld [vmem:[%s9 + $0x9] sm:$0x1]
  %v1497 = vld [vmem:[%s9 + $0xa] sm:$0x1]
  %v1498 = vld [vmem:[%s9 + $0xb] sm:$0x1]
  %v1499 = vld [vmem:[%s9 + $0xc] sm:$0x1]
  %v1500 = vld [vmem:[%s10 + $0x1] sm:$0x1]
  %v1501 = vpack.c.bf16 %v1480, %v1479
  %v1502 = vpack.c.bf16 %v1482, %v1481
  %v1503 = vpack.c.bf16 %v1484, %v1483
  %v1504 = vpack.c.bf16 %v1486, %v1485
  %v1505 = vpack.c.bf16 %v1488, %v1487
  %v1506 = vpack.c.bf16 %v1490, %v1489
  %v1507 = vpack.c.bf16 %v1492, %v1491
  %v1508 = vpack.c.bf16 %v1494, %v1493
  %v1510 = vsel %vm225, %v1501, 0
  %v1513 = vsel %vm225, %v1502, 0
  %v1516 = vsel %vm225, %v1503, 0
  %v1519 = vsel %vm225, %v1504, 0
  %v1522 = vsel %vm225, %v1505, 0
  %v1525 = vsel %vm225, %v1506, 0
  %v1528 = vsel %vm225, %v1507, 0
  %v1531 = vsel %vm225, %v1508, 0
  %1533 = vmatprep.subr.bf16.mxu0 0
  %1534 = vmatpush1.bf16.xpose.msra.mxu0 %v1510
  %1535 = vmatprep.subr.bf16.mxu0 0
  %1536 = vmatpush1.bf16.xpose.msra.mxu0 %v1513
  %1537 = vmatprep.subr.bf16.mxu0 0
  %1538 = vmatpush1.bf16.xpose.msra.mxu0 %v1516
  %1539 = vmatprep.subr.bf16.mxu0 0
  %1540 = vmatpush1.bf16.xpose.msra.mxu0 %v1519
  %1541 = vmatprep.subr.bf16.mxu0 0
  %1542 = vmatpush1.bf16.xpose.msra.mxu0 %v1522
  %1543 = vmatprep.subr.bf16.mxu0 0
  %1544 = vmatpush1.bf16.xpose.msra.mxu0 %v1525
  %1545 = vmatprep.subr.bf16.mxu0 0
  %1546 = vmatpush1.bf16.xpose.msra.mxu0 %v1528
  %1547 = vmatprep.subr.bf16.mxu0 0
  %1548 = vmatpush1.bf16.xpose.msra.mxu0 %v1531
  %1549 = vmatprep.subr.bf16.mxu0 0
  %1550 = vmatpush1.bf16.xpose.msra.mxu0 0
  %1551 = vmatprep.subr.bf16.mxu0 0
  %1552 = vmatpush1.bf16.xpose.msra.mxu0 0
  %1553 = vmatprep.subr.bf16.mxu0 0
  %1554 = vmatpush1.bf16.xpose.msra.mxu0 0
  %1555 = vmatprep.subr.bf16.mxu0 0
  %1556 = vmatpush1.bf16.xpose.msra.mxu0 0
  %1557 = vmatprep.subr.bf16.mxu0 0
  %1558 = vmatpush1.bf16.xpose.msra.mxu0 0
  %1559 = vmatprep.subr.bf16.mxu0 0
  %1560 = vmatpush1.bf16.xpose.msra.mxu0 0
  %1561 = vmatprep.subr.bf16.mxu0 0
  %1562 = vmatpush1.bf16.xpose.msra.mxu0 0
  %1563 = vmatprep.subr.bf16.mxu0 0
  %1564 = vmatpush1.bf16.xpose.msra.mxu0 0
  %1565 = vmatprep.mubr.bf16.mxu0 0
  %1566 = vmatmul.mubr.bf16.gmra.mrb[0].mxu0 %v1510
  %v1567 = vpop.f32.mrb[0].mxu0
  %v1568 = vadd.f32 0.0, %v1567
  %v1569 = vpop.f32.mrb[0].mxu0
  %v1570 = vpop.f32.mrb[0].mxu0
  %v1571 = vadd.f32 0.0, %v1570
  %v1572 = vpop.f32.mrb[0].mxu0
  %1573 = vmatprep.mubr.bf16.mxu0 0
  %1574 = vmatmul.mubr.bf16.gmra.mrb[0].mxu0 %v1513
  %v1575 = vpop.f32.mrb[0].mxu0
  %v1576 = vadd.f32 0.0, %v1575
  %v1577 = vpop.f32.mrb[0].mxu0
  %v1578 = vpop.f32.mrb[0].mxu0
  %v1579 = vadd.f32 0.0, %v1578
  %v1580 = vpop.f32.mrb[0].mxu0
  %1581 = vmatprep.mubr.bf16.mxu0 0
  %1582 = vmatmul.mubr.bf16.gmra.mrb[0].mxu0 %v1516
  %v1583 = vpop.f32.mrb[0].mxu0
  %v1584 = vadd.f32 0.0, %v1583
  %v1585 = vpop.f32.mrb[0].mxu0
  %v1586 = vpop.f32.mrb[0].mxu0
  %v1587 = vadd.f32 0.0, %v1586
  %v1588 = vpop.f32.mrb[0].mxu0
  %1589 = vmatprep.mubr.bf16.mxu0 0
  %1590 = vmatmul.mubr.bf16.gmra.mrb[0].mxu0 %v1519
  %v1591 = vpop.f32.mrb[0].mxu0
  %v1592 = vadd.f32 0.0, %v1591
  %v1593 = vpop.f32.mrb[0].mxu0
  %v1594 = vpop.f32.mrb[0].mxu0
  %v1595 = vadd.f32 0.0, %v1594
  %v1596 = vpop.f32.mrb[0].mxu0
  %1597 = vmatprep.mubr.bf16.mxu0 0
  %1598 = vmatmul.mubr.bf16.gmra.mrb[0].mxu0 %v1522
  %v1599 = vpop.f32.mrb[0].mxu0
  %v1600 = vadd.f32 0.0, %v1599
  %v1601 = vpop.f32.mrb[0].mxu0
  %v1602 = vpop.f32.mrb[0].mxu0
  %v1603 = vadd.f32 0.0, %v1602
  %v1604 = vpop.f32.mrb[0].mxu0
  %1605 = vmatprep.mubr.bf16.mxu0 0
  %1606 = vmatmul.mubr.bf16.gmra.mrb[0].mxu0 %v1525
  %v1607 = vpop.f32.mrb[0].mxu0
  %v1608 = vadd.f32 0.0, %v1607
  %v1609 = vpop.f32.mrb[0].mxu0
  %v1610 = vpop.f32.mrb[0].mxu0
  %v1611 = vadd.f32 0.0, %v1610
  %v1612 = vpop.f32.mrb[0].mxu0
  %1613 = vmatprep.mubr.bf16.mxu0 0
  %1614 = vmatmul.mubr.bf16.gmra.mrb[0].mxu0 %v1528
  %v1615 = vpop.f32.mrb[0].mxu0
  %v1616 = vadd.f32 0.0, %v1615
  %v1617 = vpop.f32.mrb[0].mxu0
  %v1618 = vpop.f32.mrb[0].mxu0
  %v1619 = vadd.f32 0.0, %v1618
  %v1620 = vpop.f32.mrb[0].mxu0
  %1621 = vmatprep.mubr.bf16.mxu0 0
  %1622 = vmatmul.mubr.bf16.gmra.mrb[0].mxu0 %v1531
  %v1623 = vpop.f32.mrb[0].mxu0
  %v1624 = vadd.f32 0.0, %v1623
  %v1625 = vpop.f32.mrb[0].mxu0
  %v1626 = vpop.f32.mrb[0].mxu0
  %v1627 = vadd.f32 0.0, %v1626
  %v1628 = vpop.f32.mrb[0].mxu0
  %1629 = vdwg.mxu0
  %v1630 = vmul.f32 %v1568, 0.17677669
  %v1631 = vmul.f32 %v1571, 0.17677669
  %v1632 = vmul.f32 %v1576, 0.17677669
  %v1633 = vmul.f32 %v1579, 0.17677669
  %v1634 = vmul.f32 %v1584, 0.17677669
  %v1635 = vmul.f32 %v1587, 0.17677669
  %v1636 = vmul.f32 %v1592, 0.17677669
  %v1637 = vmul.f32 %v1595, 0.17677669
  %v1638 = vmul.f32 %v1600, 0.17677669
  %v1639 = vmul.f32 %v1603, 0.17677669
  %v1640 = vmul.f32 %v1608, 0.17677669
  %v1641 = vmul.f32 %v1611, 0.17677669
  %v1642 = vmul.f32 %v1616, 0.17677669
  %v1643 = vmul.f32 %v1619, 0.17677669
  %v1644 = vmul.f32 %v1624, 0.17677669
  %v1645 = vmul.f32 %v1627, 0.17677669
  %v1646 = vadd.f32 %v1630, %v55
  %v1647 = vadd.f32 %v1631, %v56
  %v1648 = vadd.f32 %v1632, %v57
  %v1649 = vadd.f32 %v1633, %v58
  %v1650 = vadd.f32 %v1634, %v59
  %v1651 = vadd.f32 %v1635, %v60
  %v1652 = vadd.f32 %v1636, %v61
  %v1653 = vadd.f32 %v1637, %v62
  %v1654 = vadd.f32 %v1638, %v63
  %v1655 = vadd.f32 %v1639, %v64
  %v1656 = vadd.f32 %v1640, %v65
  %v1657 = vadd.f32 %v1641, %v66
  %v1658 = vadd.f32 %v1642, %v67
  %v1659 = vadd.f32 %v1643, %v68
  %v1660 = vadd.f32 %v1644, %v69
  %v1661 = vadd.f32 %v1645, %v70
  %1662 = vmax.xlane.f32.xlu0 %v1646
  %v1663 = vpop.xlane.xlu0 %1662
  %1664 = vmax.xlane.f32.xlu0 %v1647
  %v1665 = vpop.xlane.xlu0 %1664
  %1666 = vmax.xlane.f32.xlu0 %v1648
  %v1667 = vpop.xlane.xlu0 %1666
  %1668 = vmax.xlane.f32.xlu0 %v1649
  %v1669 = vpop.xlane.xlu0 %1668
  %1670 = vmax.xlane.f32.xlu0 %v1650
  %v1671 = vpop.xlane.xlu0 %1670
  %1672 = vmax.xlane.f32.xlu0 %v1651
  %v1673 = vpop.xlane.xlu0 %1672
  %1674 = vmax.xlane.f32.xlu0 %v1652
  %v1675 = vpop.xlane.xlu0 %1674
  %1676 = vmax.xlane.f32.xlu0 %v1653
  %v1677 = vpop.xlane.xlu0 %1676
  %1678 = vmax.xlane.f32.xlu0 %v1654
  %v1679 = vpop.xlane.xlu0 %1678
  %1680 = vmax.xlane.f32.xlu0 %v1655
  %v1681 = vpop.xlane.xlu0 %1680
  %1682 = vmax.xlane.f32.xlu0 %v1656
  %v1683 = vpop.xlane.xlu0 %1682
  %1684 = vmax.xlane.f32.xlu0 %v1657
  %v1685 = vpop.xlane.xlu0 %1684
  %1686 = vmax.xlane.f32.xlu0 %v1658
  %v1687 = vpop.xlane.xlu0 %1686
  %1688 = vmax.xlane.f32.xlu0 %v1659
  %v1689 = vpop.xlane.xlu0 %1688
  %1690 = vmax.xlane.f32.xlu0 %v1660
  %v1691 = vpop.xlane.xlu0 %1690
  %1692 = vmax.xlane.f32.xlu0 %v1661
  %v1693 = vpop.xlane.xlu0 %1692
  %v1694 = vsub.f32 %v1646, %v1663
  %v1695 = vsub.f32 %v1647, %v1665
  %v1696 = vsub.f32 %v1648, %v1667
  %v1697 = vsub.f32 %v1649, %v1669
  %v1698 = vsub.f32 %v1650, %v1671
  %v1699 = vsub.f32 %v1651, %v1673
  %v1700 = vsub.f32 %v1652, %v1675
  %v1701 = vsub.f32 %v1653, %v1677
  %v1702 = vsub.f32 %v1654, %v1679
  %v1703 = vsub.f32 %v1655, %v1681
  %v1704 = vsub.f32 %v1656, %v1683
  %v1705 = vsub.f32 %v1657, %v1685
  %v1706 = vsub.f32 %v1658, %v1687
  %v1707 = vsub.f32 %v1659, %v1689
  %v1708 = vsub.f32 %v1660, %v1691
  %v1709 = vsub.f32 %v1661, %v1693
  %v1710 = vmul.f32 %v1694, 1.442695
  %v1711 = vpow.pop %v1710
  %v1712 = vmul.f32 %v1695, 1.442695
  %v1713 = vpow.pop %v1712
  %v1714 = vmul.f32 %v1696, 1.442695
  %v1715 = vpow.pop %v1714
  %v1716 = vmul.f32 %v1697, 1.442695
  %v1717 = vpow.pop %v1716
  %v1718 = vmul.f32 %v1698, 1.442695
  %v1719 = vpow.pop %v1718
  %v1720 = vmul.f32 %v1699, 1.442695
  %v1721 = vpow.pop %v1720
  %v1722 = vmul.f32 %v1700, 1.442695
  %v1723 = vpow.pop %v1722
  %v1724 = vmul.f32 %v1701, 1.442695
  %v1725 = vpow.pop %v1724
  %v1726 = vmul.f32 %v1702, 1.442695
  %v1727 = vpow.pop %v1726
  %v1728 = vmul.f32 %v1703, 1.442695
  %v1729 = vpow.pop %v1728
  %v1730 = vmul.f32 %v1704, 1.442695
  %v1731 = vpow.pop %v1730
  %v1732 = vmul.f32 %v1705, 1.442695
  %v1733 = vpow.pop %v1732
  %v1734 = vmul.f32 %v1706, 1.442695
  %v1735 = vpow.pop %v1734
  %v1736 = vmul.f32 %v1707, 1.442695
  %v1737 = vpow.pop %v1736
  %v1738 = vmul.f32 %v1708, 1.442695
  %v1739 = vpow.pop %v1738
  %v1740 = vmul.f32 %v1709, 1.442695
  %v1741 = vpow.pop %v1740
  %1742 = vadd.xlane.f32.xlu0 %v1711
  %v1743 = vpop.xlane.xlu0 %1742
  %1744 = vadd.xlane.f32.xlu0 %v1713
  %v1745 = vpop.xlane.xlu0 %1744
  %1746 = vadd.xlane.f32.xlu0 %v1715
  %v1747 = vpop.xlane.xlu0 %1746
  %1748 = vadd.xlane.f32.xlu0 %v1717
  %v1749 = vpop.xlane.xlu0 %1748
  %1750 = vadd.xlane.f32.xlu0 %v1719
  %v1751 = vpop.xlane.xlu0 %1750
  %1752 = vadd.xlane.f32.xlu0 %v1721
  %v1753 = vpop.xlane.xlu0 %1752
  %1754 = vadd.xlane.f32.xlu0 %v1723
  %v1755 = vpop.xlane.xlu0 %1754
  %1756 = vadd.xlane.f32.xlu0 %v1725
  %v1757 = vpop.xlane.xlu0 %1756
  %1758 = vadd.xlane.f32.xlu0 %v1727
  %v1759 = vpop.xlane.xlu0 %1758
  %1760 = vadd.xlane.f32.xlu0 %v1729
  %v1761 = vpop.xlane.xlu0 %1760
  %1762 = vadd.xlane.f32.xlu0 %v1731
  %v1763 = vpop.xlane.xlu0 %1762
  %1764 = vadd.xlane.f32.xlu0 %v1733
  %v1765 = vpop.xlane.xlu0 %1764
  %1766 = vadd.xlane.f32.xlu0 %v1735
  %v1767 = vpop.xlane.xlu0 %1766
  %1768 = vadd.xlane.f32.xlu0 %v1737
  %v1769 = vpop.xlane.xlu0 %1768
  %1770 = vadd.xlane.f32.xlu0 %v1739
  %v1771 = vpop.xlane.xlu0 %1770
  %1772 = vadd.xlane.f32.xlu0 %v1741
  %v1773 = vpop.xlane.xlu0 %1772
  %v1774 = vrcp.pop %v1743
  %v1775 = vrcp.pop %v1745
  %v1776 = vrcp.pop %v1747
  %v1777 = vrcp.pop %v1749
  %v1778 = vrcp.pop %v1751
  %v1779 = vrcp.pop %v1753
  %v1780 = vrcp.pop %v1755
  %v1781 = vrcp.pop %v1757
  %v1782 = vrcp.pop %v1759
  %v1783 = vrcp.pop %v1761
  %v1784 = vrcp.pop %v1763
  %v1785 = vrcp.pop %v1765
  %v1786 = vrcp.pop %v1767
  %v1787 = vrcp.pop %v1769
  %v1788 = vrcp.pop %v1771
  %v1789 = vrcp.pop %v1773
  %v1790 = vmul.f32 %v1711, %v1774
  %v1791 = vmul.f32 %v1713, %v1775
  %v1792 = vmul.f32 %v1715, %v1776
  %v1793 = vmul.f32 %v1717, %v1777
  %v1794 = vmul.f32 %v1719, %v1778
  %v1795 = vmul.f32 %v1721, %v1779
  %v1796 = vmul.f32 %v1723, %v1780
  %v1797 = vmul.f32 %v1725, %v1781
  %v1798 = vmul.f32 %v1727, %v1782
  %v1799 = vmul.f32 %v1729, %v1783
  %v1800 = vmul.f32 %v1731, %v1784
  %v1801 = vmul.f32 %v1733, %v1785
  %v1802 = vmul.f32 %v1735, %v1786
  %v1803 = vmul.f32 %v1737, %v1787
  %v1804 = vmul.f32 %v1739, %v1788
  %v1805 = vmul.f32 %v1741, %v1789
  %v1806 = vpack.c.bf16 %v1791, %v1790
  %v1807 = vpack.c.bf16 %v1793, %v1792
  %v1808 = vpack.c.bf16 %v1795, %v1794
  %v1809 = vpack.c.bf16 %v1797, %v1796
  %v1810 = vpack.c.bf16 %v1799, %v1798
  %v1811 = vpack.c.bf16 %v1801, %v1800
  %v1812 = vpack.c.bf16 %v1803, %v1802
  %v1813 = vpack.c.bf16 %v1805, %v1804
  %1814 = vmatprep.subr.bf16.mxu0 0
  %1815 = vmatpush1.bf16.msra.mxu0 %v1501
  %1816 = vmatprep.subr.bf16.mxu0 0
  %1817 = vmatpush1.bf16.msra.mxu0 %v1502
  %1818 = vmatprep.subr.bf16.mxu0 0
  %1819 = vmatpush1.bf16.msra.mxu0 %v1503
  %1820 = vmatprep.subr.bf16.mxu0 0
  %1821 = vmatpush1.bf16.msra.mxu0 %v1504
  %1822 = vmatprep.subr.bf16.mxu0 0
  %1823 = vmatpush1.bf16.msra.mxu0 %v1505
  %1824 = vmatprep.subr.bf16.mxu0 0
  %1825 = vmatpush1.bf16.msra.mxu0 %v1506
  %1826 = vmatprep.subr.bf16.mxu0 0
  %1827 = vmatpush1.bf16.msra.mxu0 %v1507
  %1828 = vmatprep.subr.bf16.mxu0 0
  %1829 = vmatpush1.bf16.msra.mxu0 %v1508
  %1830 = vmatprep.subr.bf16.mxu0 0
  %1831 = vmatpush1.bf16.msra.mxu0 0
  %1832 = vmatprep.subr.bf16.mxu0 0
  %1833 = vmatpush1.bf16.msra.mxu0 0
  %1834 = vmatprep.subr.bf16.mxu0 0
  %1835 = vmatpush1.bf16.msra.mxu0 0
  %1836 = vmatprep.subr.bf16.mxu0 0
  %1837 = vmatpush1.bf16.msra.mxu0 0
  %1838 = vmatprep.subr.bf16.mxu0 0
  %1839 = vmatpush1.bf16.msra.mxu0 0
  %1840 = vmatprep.subr.bf16.mxu0 0
  %1841 = vmatpush1.bf16.msra.mxu0 0
  %1842 = vmatprep.subr.bf16.mxu0 0
  %1843 = vmatpush1.bf16.msra.mxu0 0
  %1844 = vmatprep.subr.bf16.mxu0 0
  %1845 = vmatpush1.bf16.msra.mxu0 0
  %1846 = vmatprep.mubr.bf16.mxu0 0
  %1847 = vmatmul.mubr.bf16.gmra.mrb[0].mxu0 %v1806
  %v1848 = vpop.f32.mrb[0].mxu0
  %v1849 = vadd.f32 0.0, %v1848
  %v1850 = vpop.f32.mrb[0].mxu0
  %v1851 = vpop.f32.mrb[0].mxu0
  %v1852 = vadd.f32 0.0, %v1851
  %v1853 = vpop.f32.mrb[0].mxu0
  %1854 = vmatprep.mubr.bf16.mxu0 0
  %1855 = vmatmul.mubr.bf16.gmra.mrb[0].mxu0 %v1807
  %v1856 = vpop.f32.mrb[0].mxu0
  %v1857 = vadd.f32 0.0, %v1856
  %v1858 = vpop.f32.mrb[0].mxu0
  %v1859 = vpop.f32.mrb[0].mxu0
  %v1860 = vadd.f32 0.0, %v1859
  %v1861 = vpop.f32.mrb[0].mxu0
  %1862 = vmatprep.mubr.bf16.mxu0 0
  %1863 = vmatmul.mubr.bf16.gmra.mrb[0].mxu0 %v1808
  %v1864 = vpop.f32.mrb[0].mxu0
  %v1865 = vadd.f32 0.0, %v1864
  %v1866 = vpop.f32.mrb[0].mxu0
  %v1867 = vpop.f32.mrb[0].mxu0
  %v1868 = vadd.f32 0.0, %v1867
  %v1869 = vpop.f32.mrb[0].mxu0
  %1870 = vmatprep.mubr.bf16.mxu0 0
  %1871 = vmatmul.mubr.bf16.gmra.mrb[0].mxu0 %v1809
  %v1872 = vpop.f32.mrb[0].mxu0
  %v1873 = vadd.f32 0.0, %v1872
  %v1874 = vpop.f32.mrb[0].mxu0
  %v1875 = vpop.f32.mrb[0].mxu0
  %v1876 = vadd.f32 0.0, %v1875
  %v1877 = vpop.f32.mrb[0].mxu0
  %1878 = vmatprep.mubr.bf16.mxu0 0
  %1879 = vmatmul.mubr.bf16.gmra.mrb[0].mxu0 %v1810
  %v1880 = vpop.f32.mrb[0].mxu0
  %v1881 = vadd.f32 0.0, %v1880
  %v1882 = vpop.f32.mrb[0].mxu0
  %v1883 = vpop.f32.mrb[0].mxu0
  %v1884 = vadd.f32 0.0, %v1883
  %v1885 = vpop.f32.mrb[0].mxu0
  %1886 = vmatprep.mubr.bf16.mxu0 0
  %1887 = vmatmul.mubr.bf16.gmra.mrb[0].mxu0 %v1811
  %v1888 = vpop.f32.mrb[0].mxu0
  %v1889 = vadd.f32 0.0, %v1888
  %v1890 = vpop.f32.mrb[0].mxu0
  %v1891 = vpop.f32.mrb[0].mxu0
  %v1892 = vadd.f32 0.0, %v1891
  %v1893 = vpop.f32.mrb[0].mxu0
  %1894 = vmatprep.mubr.bf16.mxu0 0
  %1895 = vmatmul.mubr.bf16.gmra.mrb[0].mxu0 %v1812
  %v1896 = vpop.f32.mrb[0].mxu0
  %v1897 = vadd.f32 0.0, %v1896
  %v1898 = vpop.f32.mrb[0].mxu0
  %v1899 = vpop.f32.mrb[0].mxu0
  %v1900 = vadd.f32 0.0, %v1899
  %v1901 = vpop.f32.mrb[0].mxu0
  %1902 = vmatprep.mubr.bf16.mxu0 0
  %1903 = vmatmul.mubr.bf16.gmra.mrb[0].mxu0 %v1813
  %v1904 = vpop.f32.mrb[0].mxu0
  %v1905 = vadd.f32 0.0, %v1904
  %v1906 = vpop.f32.mrb[0].mxu0
  %v1907 = vpop.f32.mrb[0].mxu0
  %v1908 = vadd.f32 0.0, %v1907
  %v1909 = vpop.f32.mrb[0].mxu0
  %1910 = vdwg.mxu0
  %v1911 = vadd.f32 %v1479, %v1849
  %v1912 = vadd.f32 %v1480, %v1852
  %v1913 = vadd.f32 %v1481, %v1857
  %v1914 = vadd.f32 %v1482, %v1860
  %v1915 = vadd.f32 %v1483, %v1865
  %v1916 = vadd.f32 %v1484, %v1868
  %v1917 = vadd.f32 %v1485, %v1873
  %v1918 = vadd.f32 %v1486, %v1876
  %v1919 = vadd.f32 %v1487, %v1881
  %v1920 = vadd.f32 %v1488, %v1884
  %v1921 = vadd.f32 %v1489, %v1889
  %v1922 = vadd.f32 %v1490, %v1892
  %v1923 = vadd.f32 %v1491, %v1897
  %v1924 = vadd.f32 %v1492, %v1900
  %v1925 = vadd.f32 %v1493, %v1905
  %v1926 = vadd.f32 %v1494, %v1908
  %v1927 = vsel %vm225, %v1911, 0.0
  %1928 = vadd.xlane.f32.xlu0 %v1927
  %v1929 = vpop.xlane.xlu0 %1928
  %v1930 = vsel %vm225, %v1912, 0.0
  %1931 = vadd.xlane.f32.xlu0 %v1930
  %v1932 = vpop.xlane.xlu0 %1931
  %v1933 = vsel %vm225, %v1913, 0.0
  %1934 = vadd.xlane.f32.xlu0 %v1933
  %v1935 = vpop.xlane.xlu0 %1934
  %v1936 = vsel %vm225, %v1914, 0.0
  %1937 = vadd.xlane.f32.xlu0 %v1936
  %v1938 = vpop.xlane.xlu0 %1937
  %v1939 = vsel %vm225, %v1915, 0.0
  %1940 = vadd.xlane.f32.xlu0 %v1939
  %v1941 = vpop.xlane.xlu0 %1940
  %v1942 = vsel %vm225, %v1916, 0.0
  %1943 = vadd.xlane.f32.xlu0 %v1942
  %v1944 = vpop.xlane.xlu0 %1943
  %v1945 = vsel %vm225, %v1917, 0.0
  %1946 = vadd.xlane.f32.xlu0 %v1945
  %v1947 = vpop.xlane.xlu0 %1946
  %v1948 = vsel %vm225, %v1918, 0.0
  %1949 = vadd.xlane.f32.xlu0 %v1948
  %v1950 = vpop.xlane.xlu0 %1949
  %v1951 = vsel %vm225, %v1919, 0.0
  %1952 = vadd.xlane.f32.xlu0 %v1951
  %v1953 = vpop.xlane.xlu0 %1952
  %v1954 = vsel %vm225, %v1920, 0.0
  %1955 = vadd.xlane.f32.xlu0 %v1954
  %v1956 = vpop.xlane.xlu0 %1955
  %v1957 = vsel %vm225, %v1921, 0.0
  %1958 = vadd.xlane.f32.xlu0 %v1957
  %v1959 = vpop.xlane.xlu0 %1958
  %v1960 = vsel %vm225, %v1922, 0.0
  %1961 = vadd.xlane.f32.xlu0 %v1960
  %v1962 = vpop.xlane.xlu0 %1961
  %v1963 = vsel %vm225, %v1923, 0.0
  %1964 = vadd.xlane.f32.xlu0 %v1963
  %v1965 = vpop.xlane.xlu0 %1964
  %v1966 = vsel %vm225, %v1924, 0.0
  %1967 = vadd.xlane.f32.xlu0 %v1966
  %v1968 = vpop.xlane.xlu0 %1967
  %v1969 = vsel %vm225, %v1925, 0.0
  %1970 = vadd.xlane.f32.xlu0 %v1969
  %v1971 = vpop.xlane.xlu0 %1970
  %v1972 = vsel %vm225, %v1926, 0.0
  %1973 = vadd.xlane.f32.xlu0 %v1972
  %v1974 = vpop.xlane.xlu0 %1973
  %v1975 = vmul.f32 %v1929, %v692
  %v1976 = vmul.f32 %v1932, %v692
  %v1977 = vmul.f32 %v1935, %v692
  %v1978 = vmul.f32 %v1938, %v692
  %v1979 = vmul.f32 %v1941, %v692
  %v1980 = vmul.f32 %v1944, %v692
  %v1981 = vmul.f32 %v1947, %v692
  %v1982 = vmul.f32 %v1950, %v692
  %v1983 = vmul.f32 %v1953, %v692
  %v1984 = vmul.f32 %v1956, %v692
  %v1985 = vmul.f32 %v1959, %v692
  %v1986 = vmul.f32 %v1962, %v692
  %v1987 = vmul.f32 %v1965, %v692
  %v1988 = vmul.f32 %v1968, %v692
  %v1989 = vmul.f32 %v1971, %v692
  %v1990 = vmul.f32 %v1974, %v692
  %v1991 = vsub.f32 %v1911, %v1975
  %v1992 = vsub.f32 %v1912, %v1976
  %v1993 = vsub.f32 %v1913, %v1977
  %v1994 = vsub.f32 %v1914, %v1978
  %v1995 = vsub.f32 %v1915, %v1979
  %v1996 = vsub.f32 %v1916, %v1980
  %v1997 = vsub.f32 %v1917, %v1981
  %v1998 = vsub.f32 %v1918, %v1982
  %v1999 = vsub.f32 %v1919, %v1983
  %v2000 = vsub.f32 %v1920, %v1984
  %v2001 = vsub.f32 %v1921, %v1985
  %v2002 = vsub.f32 %v1922, %v1986
  %v2003 = vsub.f32 %v1923, %v1987
  %v2004 = vsub.f32 %v1924, %v1988
  %v2005 = vsub.f32 %v1925, %v1989
  %v2006 = vsub.f32 %v1926, %v1990
  %v2007 = vmul.f32 %v1991, %v1991
  %v2008 = vmul.f32 %v1992, %v1992
  %v2009 = vmul.f32 %v1993, %v1993
  %v2010 = vmul.f32 %v1994, %v1994
  %v2011 = vmul.f32 %v1995, %v1995
  %v2012 = vmul.f32 %v1996, %v1996
  %v2013 = vmul.f32 %v1997, %v1997
  %v2014 = vmul.f32 %v1998, %v1998
  %v2015 = vmul.f32 %v1999, %v1999
  %v2016 = vmul.f32 %v2000, %v2000
  %v2017 = vmul.f32 %v2001, %v2001
  %v2018 = vmul.f32 %v2002, %v2002
  %v2019 = vmul.f32 %v2003, %v2003
  %v2020 = vmul.f32 %v2004, %v2004
  %v2021 = vmul.f32 %v2005, %v2005
  %v2022 = vmul.f32 %v2006, %v2006
  %v2023 = vsel %vm225, %v2007, 0.0
  %2024 = vadd.xlane.f32.xlu0 %v2023
  %v2025 = vpop.xlane.xlu0 %2024
  %v2026 = vsel %vm225, %v2008, 0.0
  %2027 = vadd.xlane.f32.xlu0 %v2026
  %v2028 = vpop.xlane.xlu0 %2027
  %v2029 = vsel %vm225, %v2009, 0.0
  %2030 = vadd.xlane.f32.xlu0 %v2029
  %v2031 = vpop.xlane.xlu0 %2030
  %v2032 = vsel %vm225, %v2010, 0.0
  %2033 = vadd.xlane.f32.xlu0 %v2032
  %v2034 = vpop.xlane.xlu0 %2033
  %v2035 = vsel %vm225, %v2011, 0.0
  %2036 = vadd.xlane.f32.xlu0 %v2035
  %v2037 = vpop.xlane.xlu0 %2036
  %v2038 = vsel %vm225, %v2012, 0.0
  %2039 = vadd.xlane.f32.xlu0 %v2038
  %v2040 = vpop.xlane.xlu0 %2039
  %v2041 = vsel %vm225, %v2013, 0.0
  %2042 = vadd.xlane.f32.xlu0 %v2041
  %v2043 = vpop.xlane.xlu0 %2042
  %v2044 = vsel %vm225, %v2014, 0.0
  %2045 = vadd.xlane.f32.xlu0 %v2044
  %v2046 = vpop.xlane.xlu0 %2045
  %v2047 = vsel %vm225, %v2015, 0.0
  %2048 = vadd.xlane.f32.xlu0 %v2047
  %v2049 = vpop.xlane.xlu0 %2048
  %v2050 = vsel %vm225, %v2016, 0.0
  %2051 = vadd.xlane.f32.xlu0 %v2050
  %v2052 = vpop.xlane.xlu0 %2051
  %v2053 = vsel %vm225, %v2017, 0.0
  %2054 = vadd.xlane.f32.xlu0 %v2053
  %v2055 = vpop.xlane.xlu0 %2054
  %v2056 = vsel %vm225, %v2018, 0.0
  %2057 = vadd.xlane.f32.xlu0 %v2056
  %v2058 = vpop.xlane.xlu0 %2057
  %v2059 = vsel %vm225, %v2019, 0.0
  %2060 = vadd.xlane.f32.xlu0 %v2059
  %v2061 = vpop.xlane.xlu0 %2060
  %v2062 = vsel %vm225, %v2020, 0.0
  %2063 = vadd.xlane.f32.xlu0 %v2062
  %v2064 = vpop.xlane.xlu0 %2063
  %v2065 = vsel %vm225, %v2021, 0.0
  %2066 = vadd.xlane.f32.xlu0 %v2065
  %v2067 = vpop.xlane.xlu0 %2066
  %v2068 = vsel %vm225, %v2022, 0.0
  %2069 = vadd.xlane.f32.xlu0 %v2068
  %v2070 = vpop.xlane.xlu0 %2069
  %v2071 = vmul.f32 %v2025, %v692
  %v2072 = vmul.f32 %v2028, %v692
  %v2073 = vmul.f32 %v2031, %v692
  %v2074 = vmul.f32 %v2034, %v692
  %v2075 = vmul.f32 %v2037, %v692
  %v2076 = vmul.f32 %v2040, %v692
  %v2077 = vmul.f32 %v2043, %v692
  %v2078 = vmul.f32 %v2046, %v692
  %v2079 = vmul.f32 %v2049, %v692
  %v2080 = vmul.f32 %v2052, %v692
  %v2081 = vmul.f32 %v2055, %v692
  %v2082 = vmul.f32 %v2058, %v692
  %v2083 = vmul.f32 %v2061, %v692
  %v2084 = vmul.f32 %v2064, %v692
  %v2085 = vmul.f32 %v2067, %v692
  %v2086 = vmul.f32 %v2070, %v692
  %v2087 = vadd.f32 %v2071, 1e-05
  %v2088 = vadd.f32 %v2072, 1e-05
  %v2089 = vadd.f32 %v2073, 1e-05
  %v2090 = vadd.f32 %v2074, 1e-05
  %v2091 = vadd.f32 %v2075, 1e-05
  %v2092 = vadd.f32 %v2076, 1e-05
  %v2093 = vadd.f32 %v2077, 1e-05
  %v2094 = vadd.f32 %v2078, 1e-05
  %v2095 = vadd.f32 %v2079, 1e-05
  %v2096 = vadd.f32 %v2080, 1e-05
  %v2097 = vadd.f32 %v2081, 1e-05
  %v2098 = vadd.f32 %v2082, 1e-05
  %v2099 = vadd.f32 %v2083, 1e-05
  %v2100 = vadd.f32 %v2084, 1e-05
  %v2101 = vadd.f32 %v2085, 1e-05
  %v2102 = vadd.f32 %v2086, 1e-05
  %v2103 = vrsqrt.pop %v2087
  %v2104 = vrsqrt.pop %v2088
  %v2105 = vrsqrt.pop %v2089
  %v2106 = vrsqrt.pop %v2090
  %v2107 = vrsqrt.pop %v2091
  %v2108 = vrsqrt.pop %v2092
  %v2109 = vrsqrt.pop %v2093
  %v2110 = vrsqrt.pop %v2094
  %v2111 = vrsqrt.pop %v2095
  %v2112 = vrsqrt.pop %v2096
  %v2113 = vrsqrt.pop %v2097
  %v2114 = vrsqrt.pop %v2098
  %v2115 = vrsqrt.pop %v2099
  %v2116 = vrsqrt.pop %v2100
  %v2117 = vrsqrt.pop %v2101
  %v2118 = vrsqrt.pop %v2102
  %v2119 = vmul.f32 %v1991, %v2103
  %v2120 = vmul.f32 %v1992, %v2104
  %v2121 = vmul.f32 %v1993, %v2105
  %v2122 = vmul.f32 %v1994, %v2106
  %v2123 = vmul.f32 %v1995, %v2107
  %v2124 = vmul.f32 %v1996, %v2108
  %v2125 = vmul.f32 %v1997, %v2109
  %v2126 = vmul.f32 %v1998, %v2110
  %v2127 = vmul.f32 %v1999, %v2111
  %v2128 = vmul.f32 %v2000, %v2112
  %v2129 = vmul.f32 %v2001, %v2113
  %v2130 = vmul.f32 %v2002, %v2114
  %v2131 = vmul.f32 %v2003, %v2115
  %v2132 = vmul.f32 %v2004, %v2116
  %v2133 = vmul.f32 %v2005, %v2117
  %v2134 = vmul.f32 %v2006, %v2118
  %v2135 = vlaneseq
  %v2136 = vshrl.u32 %v2135, 7
  %v2137 = vsub.s32 0, %v2136
  %v2138 = vrot.slane %v1495, %v2137
  %v2139 = vmul.f32 %v2119, %v2138
  %v2140 = vmul.f32 %v2120, %v2138
  %v2141 = vmul.f32 %v2121, %v2138
  %v2142 = vmul.f32 %v2122, %v2138
  %v2143 = vmul.f32 %v2123, %v2138
  %v2144 = vmul.f32 %v2124, %v2138
  %v2145 = vmul.f32 %v2125, %v2138
  %v2146 = vmul.f32 %v2126, %v2138
  %v2147 = vmul.f32 %v2127, %v2138
  %v2148 = vmul.f32 %v2128, %v2138
  %v2149 = vmul.f32 %v2129, %v2138
  %v2150 = vmul.f32 %v2130, %v2138
  %v2151 = vmul.f32 %v2131, %v2138
  %v2152 = vmul.f32 %v2132, %v2138
  %v2153 = vmul.f32 %v2133, %v2138
  %v2154 = vmul.f32 %v2134, %v2138
  %v2155 = vlaneseq
  %v2156 = vshrl.u32 %v2155, 7
  %v2157 = vsub.s32 0, %v2156
  %v2158 = vrot.slane %v1496, %v2157
  %v2159 = vadd.f32 %v2139, %v2158
  %v2160 = vadd.f32 %v2140, %v2158
  %v2161 = vadd.f32 %v2141, %v2158
  %v2162 = vadd.f32 %v2142, %v2158
  %v2163 = vadd.f32 %v2143, %v2158
  %v2164 = vadd.f32 %v2144, %v2158
  %v2165 = vadd.f32 %v2145, %v2158
  %v2166 = vadd.f32 %v2146, %v2158
  %v2167 = vadd.f32 %v2147, %v2158
  %v2168 = vadd.f32 %v2148, %v2158
  %v2169 = vadd.f32 %v2149, %v2158
  %v2170 = vadd.f32 %v2150, %v2158
  %v2171 = vadd.f32 %v2151, %v2158
  %v2172 = vadd.f32 %v2152, %v2158
  %v2173 = vadd.f32 %v2153, %v2158
  %v2174 = vadd.f32 %v2154, %v2158
  %v2175 = vpack.c.bf16 %v2160, %v2159
  %v2176 = vpack.c.bf16 %v2162, %v2161
  %v2177 = vpack.c.bf16 %v2164, %v2163
  %v2178 = vpack.c.bf16 %v2166, %v2165
  %v2179 = vpack.c.bf16 %v2168, %v2167
  %v2180 = vpack.c.bf16 %v2170, %v2169
  %v2181 = vpack.c.bf16 %v2172, %v2171
  %v2182 = vpack.c.bf16 %v2174, %v2173
  %s2183 = scalar_lea.vmem %s5, 16
  %v2184 = vld [vmem:[%s2183] sm:$0xf]
  %v2185 = vld [vmem:[%s2183 + $0x4] sm:$0xf]
  %v2186 = vld [vmem:[%s2183 + $0x8] sm:$0xf]
  %v2187 = vld [vmem:[%s2183 + $0xc] sm:$0xf]
  %v2188 = vlaneseq
  %v2189 = vshrl.u32 %v2188, 7
  %v2190 = vsub.s32 0, %v2189
  %v2191 = vrot.slane %v1500, %v2190
  %v2196 = vunpack.c.l.b16 %v2184
  %v2197 = vunpack.c.l.b16 %v2185
  %v2198 = vunpack.c.l.b16 %v2186
  %v2199 = vunpack.c.l.b16 %v2187
  %v2200 = vpack.c.b16 %v2197, %v2196
  %v2201 = vpack.c.b16 %v2199, %v2198
  %v2205 = vsel %vm225, %v2175, 0
  %v2208 = vsel %vm225, %v2176, 0
  %v2211 = vsel %vm225, %v2177, 0
  %v2214 = vsel %vm225, %v2178, 0
  %v2217 = vsel %vm225, %v2179, 0
  %v2220 = vsel %vm225, %v2180, 0
  %v2223 = vsel %vm225, %v2181, 0
  %v2226 = vsel %vm225, %v2182, 0
  %2228 = vmatprep.subr.bf16.mxu0 0
  %2229 = vmatpush1.bf16.msra.mxu0 %v2200
  %2230 = vmatprep.subr.bf16.mxu0 0
  %2231 = vmatpush1.bf16.msra.mxu0 %v2201
  %2232 = vmatprep.subr.bf16.mxu0 0
  %2233 = vmatpush1.bf16.msra.mxu0 0
  %2234 = vmatprep.subr.bf16.mxu0 0
  %2235 = vmatpush1.bf16.msra.mxu0 0
  %2236 = vmatprep.subr.bf16.mxu0 0
  %2237 = vmatpush1.bf16.msra.mxu0 0
  %2238 = vmatprep.subr.bf16.mxu0 0
  %2239 = vmatpush1.bf16.msra.mxu0 0
  %2240 = vmatprep.subr.bf16.mxu0 0
  %2241 = vmatpush1.bf16.msra.mxu0 0
  %2242 = vmatprep.subr.bf16.mxu0 0
  %2243 = vmatpush1.bf16.msra.mxu0 0
  %2244 = vmatprep.subr.bf16.mxu0 0
  %2245 = vmatpush1.bf16.msra.mxu0 0
  %2246 = vmatprep.subr.bf16.mxu0 0
  %2247 = vmatpush1.bf16.msra.mxu0 0
  %2248 = vmatprep.subr.bf16.mxu0 0
  %2249 = vmatpush1.bf16.msra.mxu0 0
  %2250 = vmatprep.subr.bf16.mxu0 0
  %2251 = vmatpush1.bf16.msra.mxu0 0
  %2252 = vmatprep.subr.bf16.mxu0 0
  %2253 = vmatpush1.bf16.msra.mxu0 0
  %2254 = vmatprep.subr.bf16.mxu0 0
  %2255 = vmatpush1.bf16.msra.mxu0 0
  %2256 = vmatprep.subr.bf16.mxu0 0
  %2257 = vmatpush1.bf16.msra.mxu0 0
  %2258 = vmatprep.subr.bf16.mxu0 0
  %2259 = vmatpush1.bf16.msra.mxu0 0
  %2260 = vmatprep.mubr.bf16.mxu0 0
  %2261 = vmatmul.mubr.bf16.gmra.mrb[0].mxu0 %v2205
  %v2262 = vpop.f32.mrb[0].mxu0
  %v2263 = vadd.f32 %v2191, %v2262
  %v2264 = vpop.f32.mrb[0].mxu0
  %v2265 = vpop.f32.mrb[0].mxu0
  %v2266 = vadd.f32 %v2191, %v2265
  %v2267 = vpop.f32.mrb[0].mxu0
  %2268 = vmatprep.mubr.bf16.mxu0 0
  %2269 = vmatmul.mubr.bf16.gmra.mrb[0].mxu0 %v2208
  %v2270 = vpop.f32.mrb[0].mxu0
  %v2271 = vadd.f32 %v2191, %v2270
  %v2272 = vpop.f32.mrb[0].mxu0
  %v2273 = vpop.f32.mrb[0].mxu0
  %v2274 = vadd.f32 %v2191, %v2273
  %v2275 = vpop.f32.mrb[0].mxu0
  %2276 = vmatprep.mubr.bf16.mxu0 0
  %2277 = vmatmul.mubr.bf16.gmra.mrb[0].mxu0 %v2211
  %v2278 = vpop.f32.mrb[0].mxu0
  %v2279 = vadd.f32 %v2191, %v2278
  %v2280 = vpop.f32.mrb[0].mxu0
  %v2281 = vpop.f32.mrb[0].mxu0
  %v2282 = vadd.f32 %v2191, %v2281
  %v2283 = vpop.f32.mrb[0].mxu0
  %2284 = vmatprep.mubr.bf16.mxu0 0
  %2285 = vmatmul.mubr.bf16.gmra.mrb[0].mxu0 %v2214
  %v2286 = vpop.f32.mrb[0].mxu0
  %v2287 = vadd.f32 %v2191, %v2286
  %v2288 = vpop.f32.mrb[0].mxu0
  %v2289 = vpop.f32.mrb[0].mxu0
  %v2290 = vadd.f32 %v2191, %v2289
  %v2291 = vpop.f32.mrb[0].mxu0
  %2292 = vmatprep.mubr.bf16.mxu0 0
  %2293 = vmatmul.mubr.bf16.gmra.mrb[0].mxu0 %v2217
  %v2294 = vpop.f32.mrb[0].mxu0
  %v2295 = vadd.f32 %v2191, %v2294
  %v2296 = vpop.f32.mrb[0].mxu0
  %v2297 = vpop.f32.mrb[0].mxu0
  %v2298 = vadd.f32 %v2191, %v2297
  %v2299 = vpop.f32.mrb[0].mxu0
  %2300 = vmatprep.mubr.bf16.mxu0 0
  %2301 = vmatmul.mubr.bf16.gmra.mrb[0].mxu0 %v2220
  %v2302 = vpop.f32.mrb[0].mxu0
  %v2303 = vadd.f32 %v2191, %v2302
  %v2304 = vpop.f32.mrb[0].mxu0
  %v2305 = vpop.f32.mrb[0].mxu0
  %v2306 = vadd.f32 %v2191, %v2305
  %v2307 = vpop.f32.mrb[0].mxu0
  %2308 = vmatprep.mubr.bf16.mxu0 0
  %2309 = vmatmul.mubr.bf16.gmra.mrb[0].mxu0 %v2223
  %v2310 = vpop.f32.mrb[0].mxu0
  %v2311 = vadd.f32 %v2191, %v2310
  %v2312 = vpop.f32.mrb[0].mxu0
  %v2313 = vpop.f32.mrb[0].mxu0
  %v2314 = vadd.f32 %v2191, %v2313
  %v2315 = vpop.f32.mrb[0].mxu0
  %2316 = vmatprep.mubr.bf16.mxu0 0
  %2317 = vmatmul.mubr.bf16.gmra.mrb[0].mxu0 %v2226
  %v2318 = vpop.f32.mrb[0].mxu0
  %v2319 = vadd.f32 %v2191, %v2318
  %v2320 = vpop.f32.mrb[0].mxu0
  %v2321 = vpop.f32.mrb[0].mxu0
  %v2322 = vadd.f32 %v2191, %v2321
  %v2323 = vpop.f32.mrb[0].mxu0
  %2324 = vdwg.mxu0
  %v2325 = vmax.f32 %v2263, 0.0
  %v2326 = vmax.f32 %v2266, 0.0
  %v2327 = vmax.f32 %v2271, 0.0
  %v2328 = vmax.f32 %v2274, 0.0
  %v2329 = vmax.f32 %v2279, 0.0
  %v2330 = vmax.f32 %v2282, 0.0
  %v2331 = vmax.f32 %v2287, 0.0
  %v2332 = vmax.f32 %v2290, 0.0
  %v2333 = vmax.f32 %v2295, 0.0
  %v2334 = vmax.f32 %v2298, 0.0
  %v2335 = vmax.f32 %v2303, 0.0
  %v2336 = vmax.f32 %v2306, 0.0
  %v2337 = vmax.f32 %v2311, 0.0
  %v2338 = vmax.f32 %v2314, 0.0
  %v2339 = vmax.f32 %v2319, 0.0
  %v2340 = vmax.f32 %v2322, 0.0
  %v2341 = vpack.c.bf16 %v2326, %v2325
  %v2342 = vpack.c.bf16 %v2328, %v2327
  %v2343 = vpack.c.bf16 %v2330, %v2329
  %v2344 = vpack.c.bf16 %v2332, %v2331
  %v2345 = vpack.c.bf16 %v2334, %v2333
  %v2346 = vpack.c.bf16 %v2336, %v2335
  %v2347 = vpack.c.bf16 %v2338, %v2337
  %v2348 = vpack.c.bf16 %v2340, %v2339
  %s2349 = scalar_lea.vmem %s6, 64
  %v2350 = vld [vmem:[%s2349] sm:$0xf]
  %v2351 = vld [vmem:[%s2349 + $0x4] sm:$0xf]
  %v2352 = vld [vmem:[%s2349 + $0x8] sm:$0xf]
  %v2353 = vld [vmem:[%s2349 + $0xc] sm:$0xf]
  %v2354 = vld [vmem:[%s2349 + $0x10] sm:$0xf]
  %v2355 = vld [vmem:[%s2349 + $0x14] sm:$0xf]
  %v2356 = vld [vmem:[%s2349 + $0x18] sm:$0xf]
  %v2357 = vld [vmem:[%s2349 + $0x1c] sm:$0xf]
  %v2358 = vld [vmem:[%s2349 + $0x20] sm:$0xf]
  %v2359 = vld [vmem:[%s2349 + $0x24] sm:$0xf]
  %v2360 = vld [vmem:[%s2349 + $0x28] sm:$0xf]
  %v2361 = vld [vmem:[%s2349 + $0x2c] sm:$0xf]
  %v2362 = vld [vmem:[%s2349 + $0x30] sm:$0xf]
  %v2363 = vld [vmem:[%s2349 + $0x34] sm:$0xf]
  %v2364 = vld [vmem:[%s2349 + $0x38] sm:$0xf]
  %v2365 = vld [vmem:[%s2349 + $0x3c] sm:$0xf]
  %v2366 = vlaneseq
  %v2367 = vshrl.u32 %v2366, 7
  %v2368 = vsub.s32 0, %v2367
  %v2369 = vrot.slane %v1499, %v2368
  %v2386 = vunpack.c.l.b16 %v2350
  %v2387 = vunpack.c.l.b16 %v2351
  %v2388 = vunpack.c.l.b16 %v2352
  %v2389 = vunpack.c.l.b16 %v2353
  %v2390 = vunpack.c.l.b16 %v2354
  %v2391 = vunpack.c.l.b16 %v2355
  %v2392 = vunpack.c.l.b16 %v2356
  %v2393 = vunpack.c.l.b16 %v2357
  %v2394 = vunpack.c.l.b16 %v2358
  %v2395 = vunpack.c.l.b16 %v2359
  %v2396 = vunpack.c.l.b16 %v2360
  %v2397 = vunpack.c.l.b16 %v2361
  %v2398 = vunpack.c.l.b16 %v2362
  %v2399 = vunpack.c.l.b16 %v2363
  %v2400 = vunpack.c.l.b16 %v2364
  %v2401 = vunpack.c.l.b16 %v2365
  %v2402 = vpack.c.b16 %v2387, %v2386
  %v2403 = vpack.c.b16 %v2389, %v2388
  %v2404 = vpack.c.b16 %v2391, %v2390
  %v2405 = vpack.c.b16 %v2393, %v2392
  %v2406 = vpack.c.b16 %v2395, %v2394
  %v2407 = vpack.c.b16 %v2397, %v2396
  %v2408 = vpack.c.b16 %v2399, %v2398
  %v2409 = vpack.c.b16 %v2401, %v2400
  %2418 = vmatprep.subr.bf16.mxu0 0
  %2419 = vmatpush1.bf16.msra.mxu0 %v2402
  %2420 = vmatprep.subr.bf16.mxu0 0
  %2421 = vmatpush1.bf16.msra.mxu0 %v2403
  %2422 = vmatprep.subr.bf16.mxu0 0
  %2423 = vmatpush1.bf16.msra.mxu0 %v2404
  %2424 = vmatprep.subr.bf16.mxu0 0
  %2425 = vmatpush1.bf16.msra.mxu0 %v2405
  %2426 = vmatprep.subr.bf16.mxu0 0
  %2427 = vmatpush1.bf16.msra.mxu0 %v2406
  %2428 = vmatprep.subr.bf16.mxu0 0
  %2429 = vmatpush1.bf16.msra.mxu0 %v2407
  %2430 = vmatprep.subr.bf16.mxu0 0
  %2431 = vmatpush1.bf16.msra.mxu0 %v2408
  %2432 = vmatprep.subr.bf16.mxu0 0
  %2433 = vmatpush1.bf16.msra.mxu0 %v2409
  %2434 = vmatprep.subr.bf16.mxu0 0
  %2435 = vmatpush1.bf16.msra.mxu0 0
  %2436 = vmatprep.subr.bf16.mxu0 0
  %2437 = vmatpush1.bf16.msra.mxu0 0
  %2438 = vmatprep.subr.bf16.mxu0 0
  %2439 = vmatpush1.bf16.msra.mxu0 0
  %2440 = vmatprep.subr.bf16.mxu0 0
  %2441 = vmatpush1.bf16.msra.mxu0 0
  %2442 = vmatprep.subr.bf16.mxu0 0
  %2443 = vmatpush1.bf16.msra.mxu0 0
  %2444 = vmatprep.subr.bf16.mxu0 0
  %2445 = vmatpush1.bf16.msra.mxu0 0
  %2446 = vmatprep.subr.bf16.mxu0 0
  %2447 = vmatpush1.bf16.msra.mxu0 0
  %2448 = vmatprep.subr.bf16.mxu0 0
  %2449 = vmatpush1.bf16.msra.mxu0 0
  %2450 = vmatprep.mubr.bf16.mxu0 0
  %2451 = vmatmul.mubr.bf16.gmra.mrb[0].mxu0 %v2341
  %v2452 = vpop.f32.mrb[0].mxu0
  %v2453 = vadd.f32 %v2369, %v2452
  %v2454 = vpop.f32.mrb[0].mxu0
  %v2455 = vpop.f32.mrb[0].mxu0
  %v2456 = vadd.f32 %v2369, %v2455
  %v2457 = vpop.f32.mrb[0].mxu0
  %2458 = vmatprep.mubr.bf16.mxu0 0
  %2459 = vmatmul.mubr.bf16.gmra.mrb[0].mxu0 %v2342
  %v2460 = vpop.f32.mrb[0].mxu0
  %v2461 = vadd.f32 %v2369, %v2460
  %v2462 = vpop.f32.mrb[0].mxu0
  %v2463 = vpop.f32.mrb[0].mxu0
  %v2464 = vadd.f32 %v2369, %v2463
  %v2465 = vpop.f32.mrb[0].mxu0
  %2466 = vmatprep.mubr.bf16.mxu0 0
  %2467 = vmatmul.mubr.bf16.gmra.mrb[0].mxu0 %v2343
  %v2468 = vpop.f32.mrb[0].mxu0
  %v2469 = vadd.f32 %v2369, %v2468
  %v2470 = vpop.f32.mrb[0].mxu0
  %v2471 = vpop.f32.mrb[0].mxu0
  %v2472 = vadd.f32 %v2369, %v2471
  %v2473 = vpop.f32.mrb[0].mxu0
  %2474 = vmatprep.mubr.bf16.mxu0 0
  %2475 = vmatmul.mubr.bf16.gmra.mrb[0].mxu0 %v2344
  %v2476 = vpop.f32.mrb[0].mxu0
  %v2477 = vadd.f32 %v2369, %v2476
  %v2478 = vpop.f32.mrb[0].mxu0
  %v2479 = vpop.f32.mrb[0].mxu0
  %v2480 = vadd.f32 %v2369, %v2479
  %v2481 = vpop.f32.mrb[0].mxu0
  %2482 = vmatprep.mubr.bf16.mxu0 0
  %2483 = vmatmul.mubr.bf16.gmra.mrb[0].mxu0 %v2345
  %v2484 = vpop.f32.mrb[0].mxu0
  %v2485 = vadd.f32 %v2369, %v2484
  %v2486 = vpop.f32.mrb[0].mxu0
  %v2487 = vpop.f32.mrb[0].mxu0
  %v2488 = vadd.f32 %v2369, %v2487
  %v2489 = vpop.f32.mrb[0].mxu0
  %2490 = vmatprep.mubr.bf16.mxu0 0
  %2491 = vmatmul.mubr.bf16.gmra.mrb[0].mxu0 %v2346
  %v2492 = vpop.f32.mrb[0].mxu0
  %v2493 = vadd.f32 %v2369, %v2492
  %v2494 = vpop.f32.mrb[0].mxu0
  %v2495 = vpop.f32.mrb[0].mxu0
  %v2496 = vadd.f32 %v2369, %v2495
  %v2497 = vpop.f32.mrb[0].mxu0
  %2498 = vmatprep.mubr.bf16.mxu0 0
  %2499 = vmatmul.mubr.bf16.gmra.mrb[0].mxu0 %v2347
  %v2500 = vpop.f32.mrb[0].mxu0
  %v2501 = vadd.f32 %v2369, %v2500
  %v2502 = vpop.f32.mrb[0].mxu0
  %v2503 = vpop.f32.mrb[0].mxu0
  %v2504 = vadd.f32 %v2369, %v2503
  %v2505 = vpop.f32.mrb[0].mxu0
  %2506 = vmatprep.mubr.bf16.mxu0 0
  %2507 = vmatmul.mubr.bf16.gmra.mrb[0].mxu0 %v2348
  %v2508 = vpop.f32.mrb[0].mxu0
  %v2509 = vadd.f32 %v2369, %v2508
  %v2510 = vpop.f32.mrb[0].mxu0
  %v2511 = vpop.f32.mrb[0].mxu0
  %v2512 = vadd.f32 %v2369, %v2511
  %v2513 = vpop.f32.mrb[0].mxu0
  %2514 = vdwg.mxu0
  %v2515 = vadd.f32 %v2159, %v2453
  %v2516 = vadd.f32 %v2160, %v2456
  %v2517 = vadd.f32 %v2161, %v2461
  %v2518 = vadd.f32 %v2162, %v2464
  %v2519 = vadd.f32 %v2163, %v2469
  %v2520 = vadd.f32 %v2164, %v2472
  %v2521 = vadd.f32 %v2165, %v2477
  %v2522 = vadd.f32 %v2166, %v2480
  %v2523 = vadd.f32 %v2167, %v2485
  %v2524 = vadd.f32 %v2168, %v2488
  %v2525 = vadd.f32 %v2169, %v2493
  %v2526 = vadd.f32 %v2170, %v2496
  %v2527 = vadd.f32 %v2171, %v2501
  %v2528 = vadd.f32 %v2172, %v2504
  %v2529 = vadd.f32 %v2173, %v2509
  %v2530 = vadd.f32 %v2174, %v2512
  %v2531 = vsel %vm225, %v2515, 0.0
  %2532 = vadd.xlane.f32.xlu0 %v2531
  %v2533 = vpop.xlane.xlu0 %2532
  %v2534 = vsel %vm225, %v2516, 0.0
  %2535 = vadd.xlane.f32.xlu0 %v2534
  %v2536 = vpop.xlane.xlu0 %2535
  %v2537 = vsel %vm225, %v2517, 0.0
  %2538 = vadd.xlane.f32.xlu0 %v2537
  %v2539 = vpop.xlane.xlu0 %2538
  %v2540 = vsel %vm225, %v2518, 0.0
  %2541 = vadd.xlane.f32.xlu0 %v2540
  %v2542 = vpop.xlane.xlu0 %2541
  %v2543 = vsel %vm225, %v2519, 0.0
  %2544 = vadd.xlane.f32.xlu0 %v2543
  %v2545 = vpop.xlane.xlu0 %2544
  %v2546 = vsel %vm225, %v2520, 0.0
  %2547 = vadd.xlane.f32.xlu0 %v2546
  %v2548 = vpop.xlane.xlu0 %2547
  %v2549 = vsel %vm225, %v2521, 0.0
  %2550 = vadd.xlane.f32.xlu0 %v2549
  %v2551 = vpop.xlane.xlu0 %2550
  %v2552 = vsel %vm225, %v2522, 0.0
  %2553 = vadd.xlane.f32.xlu0 %v2552
  %v2554 = vpop.xlane.xlu0 %2553
  %v2555 = vsel %vm225, %v2523, 0.0
  %2556 = vadd.xlane.f32.xlu0 %v2555
  %v2557 = vpop.xlane.xlu0 %2556
  %v2558 = vsel %vm225, %v2524, 0.0
  %2559 = vadd.xlane.f32.xlu0 %v2558
  %v2560 = vpop.xlane.xlu0 %2559
  %v2561 = vsel %vm225, %v2525, 0.0
  %2562 = vadd.xlane.f32.xlu0 %v2561
  %v2563 = vpop.xlane.xlu0 %2562
  %v2564 = vsel %vm225, %v2526, 0.0
  %2565 = vadd.xlane.f32.xlu0 %v2564
  %v2566 = vpop.xlane.xlu0 %2565
  %v2567 = vsel %vm225, %v2527, 0.0
  %2568 = vadd.xlane.f32.xlu0 %v2567
  %v2569 = vpop.xlane.xlu0 %2568
  %v2570 = vsel %vm225, %v2528, 0.0
  %2571 = vadd.xlane.f32.xlu0 %v2570
  %v2572 = vpop.xlane.xlu0 %2571
  %v2573 = vsel %vm225, %v2529, 0.0
  %2574 = vadd.xlane.f32.xlu0 %v2573
  %v2575 = vpop.xlane.xlu0 %2574
  %v2576 = vsel %vm225, %v2530, 0.0
  %2577 = vadd.xlane.f32.xlu0 %v2576
  %v2578 = vpop.xlane.xlu0 %2577
  %v2579 = vmul.f32 %v2533, %v692
  %v2580 = vmul.f32 %v2536, %v692
  %v2581 = vmul.f32 %v2539, %v692
  %v2582 = vmul.f32 %v2542, %v692
  %v2583 = vmul.f32 %v2545, %v692
  %v2584 = vmul.f32 %v2548, %v692
  %v2585 = vmul.f32 %v2551, %v692
  %v2586 = vmul.f32 %v2554, %v692
  %v2587 = vmul.f32 %v2557, %v692
  %v2588 = vmul.f32 %v2560, %v692
  %v2589 = vmul.f32 %v2563, %v692
  %v2590 = vmul.f32 %v2566, %v692
  %v2591 = vmul.f32 %v2569, %v692
  %v2592 = vmul.f32 %v2572, %v692
  %v2593 = vmul.f32 %v2575, %v692
  %v2594 = vmul.f32 %v2578, %v692
  %v2595 = vsub.f32 %v2515, %v2579
  %v2596 = vsub.f32 %v2516, %v2580
  %v2597 = vsub.f32 %v2517, %v2581
  %v2598 = vsub.f32 %v2518, %v2582
  %v2599 = vsub.f32 %v2519, %v2583
  %v2600 = vsub.f32 %v2520, %v2584
  %v2601 = vsub.f32 %v2521, %v2585
  %v2602 = vsub.f32 %v2522, %v2586
  %v2603 = vsub.f32 %v2523, %v2587
  %v2604 = vsub.f32 %v2524, %v2588
  %v2605 = vsub.f32 %v2525, %v2589
  %v2606 = vsub.f32 %v2526, %v2590
  %v2607 = vsub.f32 %v2527, %v2591
  %v2608 = vsub.f32 %v2528, %v2592
  %v2609 = vsub.f32 %v2529, %v2593
  %v2610 = vsub.f32 %v2530, %v2594
  %v2611 = vmul.f32 %v2595, %v2595
  %v2612 = vmul.f32 %v2596, %v2596
  %v2613 = vmul.f32 %v2597, %v2597
  %v2614 = vmul.f32 %v2598, %v2598
  %v2615 = vmul.f32 %v2599, %v2599
  %v2616 = vmul.f32 %v2600, %v2600
  %v2617 = vmul.f32 %v2601, %v2601
  %v2618 = vmul.f32 %v2602, %v2602
  %v2619 = vmul.f32 %v2603, %v2603
  %v2620 = vmul.f32 %v2604, %v2604
  %v2621 = vmul.f32 %v2605, %v2605
  %v2622 = vmul.f32 %v2606, %v2606
  %v2623 = vmul.f32 %v2607, %v2607
  %v2624 = vmul.f32 %v2608, %v2608
  %v2625 = vmul.f32 %v2609, %v2609
  %v2626 = vmul.f32 %v2610, %v2610
  %v2627 = vsel %vm225, %v2611, 0.0
  %2628 = vadd.xlane.f32.xlu0 %v2627
  %v2629 = vpop.xlane.xlu0 %2628
  %v2630 = vsel %vm225, %v2612, 0.0
  %2631 = vadd.xlane.f32.xlu0 %v2630
  %v2632 = vpop.xlane.xlu0 %2631
  %v2633 = vsel %vm225, %v2613, 0.0
  %2634 = vadd.xlane.f32.xlu0 %v2633
  %v2635 = vpop.xlane.xlu0 %2634
  %v2636 = vsel %vm225, %v2614, 0.0
  %2637 = vadd.xlane.f32.xlu0 %v2636
  %v2638 = vpop.xlane.xlu0 %2637
  %v2639 = vsel %vm225, %v2615, 0.0
  %2640 = vadd.xlane.f32.xlu0 %v2639
  %v2641 = vpop.xlane.xlu0 %2640
  %v2642 = vsel %vm225, %v2616, 0.0
  %2643 = vadd.xlane.f32.xlu0 %v2642
  %v2644 = vpop.xlane.xlu0 %2643
  %v2645 = vsel %vm225, %v2617, 0.0
  %2646 = vadd.xlane.f32.xlu0 %v2645
  %v2647 = vpop.xlane.xlu0 %2646
  %v2648 = vsel %vm225, %v2618, 0.0
  %2649 = vadd.xlane.f32.xlu0 %v2648
  %v2650 = vpop.xlane.xlu0 %2649
  %v2651 = vsel %vm225, %v2619, 0.0
  %2652 = vadd.xlane.f32.xlu0 %v2651
  %v2653 = vpop.xlane.xlu0 %2652
  %v2654 = vsel %vm225, %v2620, 0.0
  %2655 = vadd.xlane.f32.xlu0 %v2654
  %v2656 = vpop.xlane.xlu0 %2655
  %v2657 = vsel %vm225, %v2621, 0.0
  %2658 = vadd.xlane.f32.xlu0 %v2657
  %v2659 = vpop.xlane.xlu0 %2658
  %v2660 = vsel %vm225, %v2622, 0.0
  %2661 = vadd.xlane.f32.xlu0 %v2660
  %v2662 = vpop.xlane.xlu0 %2661
  %v2663 = vsel %vm225, %v2623, 0.0
  %2664 = vadd.xlane.f32.xlu0 %v2663
  %v2665 = vpop.xlane.xlu0 %2664
  %v2666 = vsel %vm225, %v2624, 0.0
  %2667 = vadd.xlane.f32.xlu0 %v2666
  %v2668 = vpop.xlane.xlu0 %2667
  %v2669 = vsel %vm225, %v2625, 0.0
  %2670 = vadd.xlane.f32.xlu0 %v2669
  %v2671 = vpop.xlane.xlu0 %2670
  %v2672 = vsel %vm225, %v2626, 0.0
  %2673 = vadd.xlane.f32.xlu0 %v2672
  %v2674 = vpop.xlane.xlu0 %2673
  %v2675 = vmul.f32 %v2629, %v692
  %v2676 = vmul.f32 %v2632, %v692
  %v2677 = vmul.f32 %v2635, %v692
  %v2678 = vmul.f32 %v2638, %v692
  %v2679 = vmul.f32 %v2641, %v692
  %v2680 = vmul.f32 %v2644, %v692
  %v2681 = vmul.f32 %v2647, %v692
  %v2682 = vmul.f32 %v2650, %v692
  %v2683 = vmul.f32 %v2653, %v692
  %v2684 = vmul.f32 %v2656, %v692
  %v2685 = vmul.f32 %v2659, %v692
  %v2686 = vmul.f32 %v2662, %v692
  %v2687 = vmul.f32 %v2665, %v692
  %v2688 = vmul.f32 %v2668, %v692
  %v2689 = vmul.f32 %v2671, %v692
  %v2690 = vmul.f32 %v2674, %v692
  %v2691 = vadd.f32 %v2675, 1e-05
  %v2692 = vadd.f32 %v2676, 1e-05
  %v2693 = vadd.f32 %v2677, 1e-05
  %v2694 = vadd.f32 %v2678, 1e-05
  %v2695 = vadd.f32 %v2679, 1e-05
  %v2696 = vadd.f32 %v2680, 1e-05
  %v2697 = vadd.f32 %v2681, 1e-05
  %v2698 = vadd.f32 %v2682, 1e-05
  %v2699 = vadd.f32 %v2683, 1e-05
  %v2700 = vadd.f32 %v2684, 1e-05
  %v2701 = vadd.f32 %v2685, 1e-05
  %v2702 = vadd.f32 %v2686, 1e-05
  %v2703 = vadd.f32 %v2687, 1e-05
  %v2704 = vadd.f32 %v2688, 1e-05
  %v2705 = vadd.f32 %v2689, 1e-05
  %v2706 = vadd.f32 %v2690, 1e-05
  %v2707 = vrsqrt.pop %v2691
  %v2708 = vrsqrt.pop %v2692
  %v2709 = vrsqrt.pop %v2693
  %v2710 = vrsqrt.pop %v2694
  %v2711 = vrsqrt.pop %v2695
  %v2712 = vrsqrt.pop %v2696
  %v2713 = vrsqrt.pop %v2697
  %v2714 = vrsqrt.pop %v2698
  %v2715 = vrsqrt.pop %v2699
  %v2716 = vrsqrt.pop %v2700
  %v2717 = vrsqrt.pop %v2701
  %v2718 = vrsqrt.pop %v2702
  %v2719 = vrsqrt.pop %v2703
  %v2720 = vrsqrt.pop %v2704
  %v2721 = vrsqrt.pop %v2705
  %v2722 = vrsqrt.pop %v2706
  %v2723 = vmul.f32 %v2595, %v2707
  %v2724 = vmul.f32 %v2596, %v2708
  %v2725 = vmul.f32 %v2597, %v2709
  %v2726 = vmul.f32 %v2598, %v2710
  %v2727 = vmul.f32 %v2599, %v2711
  %v2728 = vmul.f32 %v2600, %v2712
  %v2729 = vmul.f32 %v2601, %v2713
  %v2730 = vmul.f32 %v2602, %v2714
  %v2731 = vmul.f32 %v2603, %v2715
  %v2732 = vmul.f32 %v2604, %v2716
  %v2733 = vmul.f32 %v2605, %v2717
  %v2734 = vmul.f32 %v2606, %v2718
  %v2735 = vmul.f32 %v2607, %v2719
  %v2736 = vmul.f32 %v2608, %v2720
  %v2737 = vmul.f32 %v2609, %v2721
  %v2738 = vmul.f32 %v2610, %v2722
  %v2739 = vlaneseq
  %v2740 = vshrl.u32 %v2739, 7
  %v2741 = vsub.s32 0, %v2740
  %v2742 = vrot.slane %v1497, %v2741
  %v2743 = vmul.f32 %v2723, %v2742
  %v2744 = vmul.f32 %v2724, %v2742
  %v2745 = vmul.f32 %v2725, %v2742
  %v2746 = vmul.f32 %v2726, %v2742
  %v2747 = vmul.f32 %v2727, %v2742
  %v2748 = vmul.f32 %v2728, %v2742
  %v2749 = vmul.f32 %v2729, %v2742
  %v2750 = vmul.f32 %v2730, %v2742
  %v2751 = vmul.f32 %v2731, %v2742
  %v2752 = vmul.f32 %v2732, %v2742
  %v2753 = vmul.f32 %v2733, %v2742
  %v2754 = vmul.f32 %v2734, %v2742
  %v2755 = vmul.f32 %v2735, %v2742
  %v2756 = vmul.f32 %v2736, %v2742
  %v2757 = vmul.f32 %v2737, %v2742
  %v2758 = vmul.f32 %v2738, %v2742
  %v2759 = vlaneseq
  %v2760 = vshrl.u32 %v2759, 7
  %v2761 = vsub.s32 0, %v2760
  %v2762 = vrot.slane %v1498, %v2761
  %v2763 = vadd.f32 %v2743, %v2762
  %v2764 = vadd.f32 %v2744, %v2762
  %v2765 = vadd.f32 %v2745, %v2762
  %v2766 = vadd.f32 %v2746, %v2762
  %v2767 = vadd.f32 %v2747, %v2762
  %v2768 = vadd.f32 %v2748, %v2762
  %v2769 = vadd.f32 %v2749, %v2762
  %v2770 = vadd.f32 %v2750, %v2762
  %v2771 = vadd.f32 %v2751, %v2762
  %v2772 = vadd.f32 %v2752, %v2762
  %v2773 = vadd.f32 %v2753, %v2762
  %v2774 = vadd.f32 %v2754, %v2762
  %v2775 = vadd.f32 %v2755, %v2762
  %v2776 = vadd.f32 %v2756, %v2762
  %v2777 = vadd.f32 %v2757, %v2762
  %v2778 = vadd.f32 %v2758, %v2762
  %v2779 = vld [vmem:[%s9 + $0x1] sm:$0x1]
  %v2780 = vld [vmem:[%s9 + $0x2] sm:$0x1]
  %v2781 = vsel %vm225, %v2763, 0.0
  %2782 = vadd.xlane.f32.xlu0 %v2781
  %v2783 = vpop.xlane.xlu0 %2782
  %v2784 = vsel %vm225, %v2764, 0.0
  %2785 = vadd.xlane.f32.xlu0 %v2784
  %v2786 = vpop.xlane.xlu0 %2785
  %v2787 = vsel %vm225, %v2765, 0.0
  %2788 = vadd.xlane.f32.xlu0 %v2787
  %v2789 = vpop.xlane.xlu0 %2788
  %v2790 = vsel %vm225, %v2766, 0.0
  %2791 = vadd.xlane.f32.xlu0 %v2790
  %v2792 = vpop.xlane.xlu0 %2791
  %v2793 = vsel %vm225, %v2767, 0.0
  %2794 = vadd.xlane.f32.xlu0 %v2793
  %v2795 = vpop.xlane.xlu0 %2794
  %v2796 = vsel %vm225, %v2768, 0.0
  %2797 = vadd.xlane.f32.xlu0 %v2796
  %v2798 = vpop.xlane.xlu0 %2797
  %v2799 = vsel %vm225, %v2769, 0.0
  %2800 = vadd.xlane.f32.xlu0 %v2799
  %v2801 = vpop.xlane.xlu0 %2800
  %v2802 = vsel %vm225, %v2770, 0.0
  %2803 = vadd.xlane.f32.xlu0 %v2802
  %v2804 = vpop.xlane.xlu0 %2803
  %v2805 = vsel %vm225, %v2771, 0.0
  %2806 = vadd.xlane.f32.xlu0 %v2805
  %v2807 = vpop.xlane.xlu0 %2806
  %v2808 = vsel %vm225, %v2772, 0.0
  %2809 = vadd.xlane.f32.xlu0 %v2808
  %v2810 = vpop.xlane.xlu0 %2809
  %v2811 = vsel %vm225, %v2773, 0.0
  %2812 = vadd.xlane.f32.xlu0 %v2811
  %v2813 = vpop.xlane.xlu0 %2812
  %v2814 = vsel %vm225, %v2774, 0.0
  %2815 = vadd.xlane.f32.xlu0 %v2814
  %v2816 = vpop.xlane.xlu0 %2815
  %v2817 = vsel %vm225, %v2775, 0.0
  %2818 = vadd.xlane.f32.xlu0 %v2817
  %v2819 = vpop.xlane.xlu0 %2818
  %v2820 = vsel %vm225, %v2776, 0.0
  %2821 = vadd.xlane.f32.xlu0 %v2820
  %v2822 = vpop.xlane.xlu0 %2821
  %v2823 = vsel %vm225, %v2777, 0.0
  %2824 = vadd.xlane.f32.xlu0 %v2823
  %v2825 = vpop.xlane.xlu0 %2824
  %v2826 = vsel %vm225, %v2778, 0.0
  %2827 = vadd.xlane.f32.xlu0 %v2826
  %v2828 = vpop.xlane.xlu0 %2827
  %v2829 = vmul.f32 %v2783, %v692
  %v2830 = vmul.f32 %v2786, %v692
  %v2831 = vmul.f32 %v2789, %v692
  %v2832 = vmul.f32 %v2792, %v692
  %v2833 = vmul.f32 %v2795, %v692
  %v2834 = vmul.f32 %v2798, %v692
  %v2835 = vmul.f32 %v2801, %v692
  %v2836 = vmul.f32 %v2804, %v692
  %v2837 = vmul.f32 %v2807, %v692
  %v2838 = vmul.f32 %v2810, %v692
  %v2839 = vmul.f32 %v2813, %v692
  %v2840 = vmul.f32 %v2816, %v692
  %v2841 = vmul.f32 %v2819, %v692
  %v2842 = vmul.f32 %v2822, %v692
  %v2843 = vmul.f32 %v2825, %v692
  %v2844 = vmul.f32 %v2828, %v692
  %v2845 = vsub.f32 %v2763, %v2829
  %v2846 = vsub.f32 %v2764, %v2830
  %v2847 = vsub.f32 %v2765, %v2831
  %v2848 = vsub.f32 %v2766, %v2832
  %v2849 = vsub.f32 %v2767, %v2833
  %v2850 = vsub.f32 %v2768, %v2834
  %v2851 = vsub.f32 %v2769, %v2835
  %v2852 = vsub.f32 %v2770, %v2836
  %v2853 = vsub.f32 %v2771, %v2837
  %v2854 = vsub.f32 %v2772, %v2838
  %v2855 = vsub.f32 %v2773, %v2839
  %v2856 = vsub.f32 %v2774, %v2840
  %v2857 = vsub.f32 %v2775, %v2841
  %v2858 = vsub.f32 %v2776, %v2842
  %v2859 = vsub.f32 %v2777, %v2843
  %v2860 = vsub.f32 %v2778, %v2844
  %v2861 = vmul.f32 %v2845, %v2845
  %v2862 = vmul.f32 %v2846, %v2846
  %v2863 = vmul.f32 %v2847, %v2847
  %v2864 = vmul.f32 %v2848, %v2848
  %v2865 = vmul.f32 %v2849, %v2849
  %v2866 = vmul.f32 %v2850, %v2850
  %v2867 = vmul.f32 %v2851, %v2851
  %v2868 = vmul.f32 %v2852, %v2852
  %v2869 = vmul.f32 %v2853, %v2853
  %v2870 = vmul.f32 %v2854, %v2854
  %v2871 = vmul.f32 %v2855, %v2855
  %v2872 = vmul.f32 %v2856, %v2856
  %v2873 = vmul.f32 %v2857, %v2857
  %v2874 = vmul.f32 %v2858, %v2858
  %v2875 = vmul.f32 %v2859, %v2859
  %v2876 = vmul.f32 %v2860, %v2860
  %v2877 = vsel %vm225, %v2861, 0.0
  %2878 = vadd.xlane.f32.xlu0 %v2877
  %v2879 = vpop.xlane.xlu0 %2878
  %v2880 = vsel %vm225, %v2862, 0.0
  %2881 = vadd.xlane.f32.xlu0 %v2880
  %v2882 = vpop.xlane.xlu0 %2881
  %v2883 = vsel %vm225, %v2863, 0.0
  %2884 = vadd.xlane.f32.xlu0 %v2883
  %v2885 = vpop.xlane.xlu0 %2884
  %v2886 = vsel %vm225, %v2864, 0.0
  %2887 = vadd.xlane.f32.xlu0 %v2886
  %v2888 = vpop.xlane.xlu0 %2887
  %v2889 = vsel %vm225, %v2865, 0.0
  %2890 = vadd.xlane.f32.xlu0 %v2889
  %v2891 = vpop.xlane.xlu0 %2890
  %v2892 = vsel %vm225, %v2866, 0.0
  %2893 = vadd.xlane.f32.xlu0 %v2892
  %v2894 = vpop.xlane.xlu0 %2893
  %v2895 = vsel %vm225, %v2867, 0.0
  %2896 = vadd.xlane.f32.xlu0 %v2895
  %v2897 = vpop.xlane.xlu0 %2896
  %v2898 = vsel %vm225, %v2868, 0.0
  %2899 = vadd.xlane.f32.xlu0 %v2898
  %v2900 = vpop.xlane.xlu0 %2899
  %v2901 = vsel %vm225, %v2869, 0.0
  %2902 = vadd.xlane.f32.xlu0 %v2901
  %v2903 = vpop.xlane.xlu0 %2902
  %v2904 = vsel %vm225, %v2870, 0.0
  %2905 = vadd.xlane.f32.xlu0 %v2904
  %v2906 = vpop.xlane.xlu0 %2905
  %v2907 = vsel %vm225, %v2871, 0.0
  %2908 = vadd.xlane.f32.xlu0 %v2907
  %v2909 = vpop.xlane.xlu0 %2908
  %v2910 = vsel %vm225, %v2872, 0.0
  %2911 = vadd.xlane.f32.xlu0 %v2910
  %v2912 = vpop.xlane.xlu0 %2911
  %v2913 = vsel %vm225, %v2873, 0.0
  %2914 = vadd.xlane.f32.xlu0 %v2913
  %v2915 = vpop.xlane.xlu0 %2914
  %v2916 = vsel %vm225, %v2874, 0.0
  %2917 = vadd.xlane.f32.xlu0 %v2916
  %v2918 = vpop.xlane.xlu0 %2917
  %v2919 = vsel %vm225, %v2875, 0.0
  %2920 = vadd.xlane.f32.xlu0 %v2919
  %v2921 = vpop.xlane.xlu0 %2920
  %v2922 = vsel %vm225, %v2876, 0.0
  %2923 = vadd.xlane.f32.xlu0 %v2922
  %v2924 = vpop.xlane.xlu0 %2923
  %v2925 = vmul.f32 %v2879, %v692
  %v2926 = vmul.f32 %v2882, %v692
  %v2927 = vmul.f32 %v2885, %v692
  %v2928 = vmul.f32 %v2888, %v692
  %v2929 = vmul.f32 %v2891, %v692
  %v2930 = vmul.f32 %v2894, %v692
  %v2931 = vmul.f32 %v2897, %v692
  %v2932 = vmul.f32 %v2900, %v692
  %v2933 = vmul.f32 %v2903, %v692
  %v2934 = vmul.f32 %v2906, %v692
  %v2935 = vmul.f32 %v2909, %v692
  %v2936 = vmul.f32 %v2912, %v692
  %v2937 = vmul.f32 %v2915, %v692
  %v2938 = vmul.f32 %v2918, %v692
  %v2939 = vmul.f32 %v2921, %v692
  %v2940 = vmul.f32 %v2924, %v692
  %v2941 = vadd.f32 %v2925, 1e-05
  %v2942 = vadd.f32 %v2926, 1e-05
  %v2943 = vadd.f32 %v2927, 1e-05
  %v2944 = vadd.f32 %v2928, 1e-05
  %v2945 = vadd.f32 %v2929, 1e-05
  %v2946 = vadd.f32 %v2930, 1e-05
  %v2947 = vadd.f32 %v2931, 1e-05
  %v2948 = vadd.f32 %v2932, 1e-05
  %v2949 = vadd.f32 %v2933, 1e-05
  %v2950 = vadd.f32 %v2934, 1e-05
  %v2951 = vadd.f32 %v2935, 1e-05
  %v2952 = vadd.f32 %v2936, 1e-05
  %v2953 = vadd.f32 %v2937, 1e-05
  %v2954 = vadd.f32 %v2938, 1e-05
  %v2955 = vadd.f32 %v2939, 1e-05
  %v2956 = vadd.f32 %v2940, 1e-05
  %v2957 = vrsqrt.pop %v2941
  %v2958 = vrsqrt.pop %v2942
  %v2959 = vrsqrt.pop %v2943
  %v2960 = vrsqrt.pop %v2944
  %v2961 = vrsqrt.pop %v2945
  %v2962 = vrsqrt.pop %v2946
  %v2963 = vrsqrt.pop %v2947
  %v2964 = vrsqrt.pop %v2948
  %v2965 = vrsqrt.pop %v2949
  %v2966 = vrsqrt.pop %v2950
  %v2967 = vrsqrt.pop %v2951
  %v2968 = vrsqrt.pop %v2952
  %v2969 = vrsqrt.pop %v2953
  %v2970 = vrsqrt.pop %v2954
  %v2971 = vrsqrt.pop %v2955
  %v2972 = vrsqrt.pop %v2956
  %v2973 = vmul.f32 %v2845, %v2957
  %v2974 = vmul.f32 %v2846, %v2958
  %v2975 = vmul.f32 %v2847, %v2959
  %v2976 = vmul.f32 %v2848, %v2960
  %v2977 = vmul.f32 %v2849, %v2961
  %v2978 = vmul.f32 %v2850, %v2962
  %v2979 = vmul.f32 %v2851, %v2963
  %v2980 = vmul.f32 %v2852, %v2964
  %v2981 = vmul.f32 %v2853, %v2965
  %v2982 = vmul.f32 %v2854, %v2966
  %v2983 = vmul.f32 %v2855, %v2967
  %v2984 = vmul.f32 %v2856, %v2968
  %v2985 = vmul.f32 %v2857, %v2969
  %v2986 = vmul.f32 %v2858, %v2970
  %v2987 = vmul.f32 %v2859, %v2971
  %v2988 = vmul.f32 %v2860, %v2972
  %v2989 = vlaneseq
  %v2990 = vshrl.u32 %v2989, 7
  %v2991 = vsub.s32 0, %v2990
  %v2992 = vrot.slane %v2779, %v2991
  %v2993 = vmul.f32 %v2973, %v2992
  %v2994 = vmul.f32 %v2974, %v2992
  %v2995 = vmul.f32 %v2975, %v2992
  %v2996 = vmul.f32 %v2976, %v2992
  %v2997 = vmul.f32 %v2977, %v2992
  %v2998 = vmul.f32 %v2978, %v2992
  %v2999 = vmul.f32 %v2979, %v2992
  %v3000 = vmul.f32 %v2980, %v2992
  %v3001 = vmul.f32 %v2981, %v2992
  %v3002 = vmul.f32 %v2982, %v2992
  %v3003 = vmul.f32 %v2983, %v2992
  %v3004 = vmul.f32 %v2984, %v2992
  %v3005 = vmul.f32 %v2985, %v2992
  %v3006 = vmul.f32 %v2986, %v2992
  %v3007 = vmul.f32 %v2987, %v2992
  %v3008 = vmul.f32 %v2988, %v2992
  %v3009 = vlaneseq
  %v3010 = vshrl.u32 %v3009, 7
  %v3011 = vsub.s32 0, %v3010
  %v3012 = vrot.slane %v2780, %v3011
  %v3013 = vadd.f32 %v2993, %v3012
  %v3014 = vadd.f32 %v2994, %v3012
  %v3015 = vadd.f32 %v2995, %v3012
  %v3016 = vadd.f32 %v2996, %v3012
  %v3017 = vadd.f32 %v2997, %v3012
  %v3018 = vadd.f32 %v2998, %v3012
  %v3019 = vadd.f32 %v2999, %v3012
  %v3020 = vadd.f32 %v3000, %v3012
  %v3021 = vadd.f32 %v3001, %v3012
  %v3022 = vadd.f32 %v3002, %v3012
  %v3023 = vadd.f32 %v3003, %v3012
  %v3024 = vadd.f32 %v3004, %v3012
  %v3025 = vadd.f32 %v3005, %v3012
  %v3026 = vadd.f32 %v3006, %v3012
  %v3027 = vadd.f32 %v3007, %v3012
  %v3028 = vadd.f32 %v3008, %v3012
  %v3029 = vld [vmem:[%s7] sm:$0xf]
  %v3030 = vpack.c.bf16 %v3014, %v3013
  %v3031 = vpack.c.bf16 %v3016, %v3015
  %v3032 = vpack.c.bf16 %v3018, %v3017
  %v3033 = vpack.c.bf16 %v3020, %v3019
  %v3034 = vpack.c.bf16 %v3022, %v3021
  %v3035 = vpack.c.bf16 %v3024, %v3023
  %v3036 = vpack.c.bf16 %v3026, %v3025
  %v3037 = vpack.c.bf16 %v3028, %v3027
  %v3038 = vld [vmem:[%s8] sm:$0xff]
  %3040 = vset.pattern.permute.xlu0 0
  %3041 = vperm.xlu0 %3040, %v3038
  %v3042 = vpop.permute.xlu0 %3041
  %v3045 = vsel %vm225, %v3029, 0
  %v3048 = vsel %vm225, %v3030, 0
  %v3051 = vsel %vm225, %v3031, 0
  %v3054 = vsel %vm225, %v3032, 0
  %v3057 = vsel %vm225, %v3033, 0
  %v3060 = vsel %vm225, %v3034, 0
  %v3063 = vsel %vm225, %v3035, 0
  %v3066 = vsel %vm225, %v3036, 0
  %v3069 = vsel %vm225, %v3037, 0
  %3071 = vmatprep.subr.bf16.mxu0 0
  %3072 = vmatpush1.bf16.xpose.msra.mxu0 %v3048
  %3073 = vmatprep.subr.bf16.mxu0 0
  %3074 = vmatpush1.bf16.xpose.msra.mxu0 %v3051
  %3075 = vmatprep.subr.bf16.mxu0 0
  %3076 = vmatpush1.bf16.xpose.msra.mxu0 %v3054
  %3077 = vmatprep.subr.bf16.mxu0 0
  %3078 = vmatpush1.bf16.xpose.msra.mxu0 %v3057
  %3079 = vmatprep.subr.bf16.mxu0 0
  %3080 = vmatpush1.bf16.xpose.msra.mxu0 %v3060
  %3081 = vmatprep.subr.bf16.mxu0 0
  %3082 = vmatpush1.bf16.xpose.msra.mxu0 %v3063
  %3083 = vmatprep.subr.bf16.mxu0 0
  %3084 = vmatpush1.bf16.xpose.msra.mxu0 %v3066
  %3085 = vmatprep.subr.bf16.mxu0 0
  %3086 = vmatpush1.bf16.xpose.msra.mxu0 %v3069
  %3087 = vmatprep.subr.bf16.mxu0 0
  %3088 = vmatpush1.bf16.xpose.msra.mxu0 0
  %3089 = vmatprep.subr.bf16.mxu0 0
  %3090 = vmatpush1.bf16.xpose.msra.mxu0 0
  %3091 = vmatprep.subr.bf16.mxu0 0
  %3092 = vmatpush1.bf16.xpose.msra.mxu0 0
  %3093 = vmatprep.subr.bf16.mxu0 0
  %3094 = vmatpush1.bf16.xpose.msra.mxu0 0
  %3095 = vmatprep.subr.bf16.mxu0 0
  %3096 = vmatpush1.bf16.xpose.msra.mxu0 0
  %3097 = vmatprep.subr.bf16.mxu0 0
  %3098 = vmatpush1.bf16.xpose.msra.mxu0 0
  %3099 = vmatprep.subr.bf16.mxu0 0
  %3100 = vmatpush1.bf16.xpose.msra.mxu0 0
  %3101 = vmatprep.subr.bf16.mxu0 0
  %3102 = vmatpush1.bf16.xpose.msra.mxu0 0
  %3103 = vmatprep.mubr.bf16.mxu0 0
  %3104 = vmatmul.mubr.bf16.gmra.mrb[0].mxu0 %v3045
  %v3105 = vpop.f32.mrb[0].mxu0
  %v3106 = vadd.f32 %v3042, %v3105
  %v3107 = vpop.f32.mrb[0].mxu0
  %v3108 = vpop.f32.mrb[0].mxu0
  %v3109 = vpop.f32.mrb[0].mxu0
  %3110 = vdwg.mxu0
  %v3111 = vld [vmem:[%s2] sm:$0x1]
  %v3113 = vlaneseq
  %v3114 = vshrl.u32 %v3113, 7
  %v3115 = vsub.s32 0, %v3114
  %v3116 = vrot.slane %v3111, %v3115
  %v3118 = vmul.f32 %v3106, %v3116
  %v3119 = vld [vmem:[%s3] sm:$0x1]
  %v3121 = vlaneseq
  %v3122 = vshrl.u32 %v3121, 7
  %v3123 = vsub.s32 0, %v3122
  %v3124 = vrot.slane %v3119, %v3123
  %v3126 = vadd.f32 %v3118, %v3124
  %3127 = vst [vmem:[%s11] sm:$0xff] %v3126
  // Predicated region
  $region46: #{_lambda_.1} parent=0 // pred_check
    _
  $region47: #{_lambda_.1} parent=0 // pred_check_branch
    %3129 = sbr.rel (0) target = $region49
  $region48: #{_lambda_.1} parent=0 // pred_region
    _
  $region49: #{_lambda_.1} parent=0 // pred_fallthru
    _
  // Predicated region
  $region50: #{_lambda_.1} parent=0 // pred_check
    _
  $region51: #{_lambda_.1} parent=0 // pred_check_branch
    %3131 = sbr.rel (0) target = $region53
  $region52: #{_lambda_.1} parent=0 // pred_region
    _
  $region53: #{_lambda_.1} parent=0 // pred_fallthru
    _

</llo_original>
